<compile_context>
chip_gen: v7x
topology: tpu7x:2x2x1
jax: 0.10.0
libtpu: 0.0.40
codegen_flags: <defaults>
</compile_context>

<pallas_src>
import jax
import jax.numpy as jnp
from jax import lax
from jax.experimental import pallas as pl
from jax.experimental.pallas import tpu as pltpu

DIM = 64
FACTOR = 4
LAYER_NUM = 2
EPS = 1e-5  # PyTorch LayerNorm default


def _lin(w_ref, h_bf16):
    """MXU matmul: (out_f, in_f) bf16 @ (in_f, tm) bf16 -> (out_f, tm) f32."""
    return jnp.dot(w_ref[...], h_bf16, preferred_element_type=jnp.float32)


def _make_ln_relu(bf16_affine):
    """bias-add + LayerNorm over the feature (sublane) axis + ReLU -> bf16.

    v_ref packs [bias, gamma, beta] as columns of an (f, 3) f32 array.
    Statistics (sum / sum-of-squares / rsqrt) always run in f32; the affine +
    ReLU epilogue runs in bf16 when `bf16_affine` (v6e/v7x bf16 VPU path).
    var is clamped at 0 to avoid rsqrt(negative) from cancellation.
    """
    def _ln_relu(y, v_ref):
        v = v_ref[...]
        b, g, be = v[:, 0:1], v[:, 1:2], v[:, 2:3]
        y = y + b
        f = y.shape[0]
        s = jnp.sum(y, axis=0, keepdims=True)
        ss = jnp.sum(y * y, axis=0, keepdims=True)
        mu = s * (1.0 / f)
        var = jnp.maximum(ss * (1.0 / f) - mu * mu, 0.0)
        inv = lax.rsqrt(var + EPS)
        if bf16_affine:
            z = ((y - mu).astype(jnp.bfloat16)
                 * inv.astype(jnp.bfloat16)
                 * g.astype(jnp.bfloat16)
                 + be.astype(jnp.bfloat16))
            return jnp.maximum(z, 0).astype(jnp.bfloat16)
        z = (y - mu) * inv * g + be
        return jnp.maximum(z, 0.0).astype(jnp.bfloat16)
    return _ln_relu


def _make_kernel(bf16_affine):
    ln_relu = _make_ln_relu(bf16_affine)

    def mdnet_kernel(x_ref, wp, vp, w1a, v1a, w1b, v1b, w2a, v2a, w2b, v2b,
                     wh1, vh1, wh2, vh2, wl, bl, out_ref):
        """x_ref: (8, tm) bf16 column tile of pair features; out_ref: (1, tm) f32."""
        x = x_ref[...]                                             # (8, tm) bf16

        # proj: Linear(8 -> dim)   (no LN / activation); residual stream in f32
        h = _lin(wp, x) + vp[...]                                  # (64, tm) f32

        # InvertedResidualBlock x LAYER_NUM: x + ReLU(LN(W2 ReLU(LN(W1 x))))
        for wa, va, wb, vb in ((w1a, v1a, w1b, v1b), (w2a, v2a, w2b, v2b)):
            y = ln_relu(_lin(wa, h.astype(jnp.bfloat16)), va)      # (256, tm) bf16
            y = ln_relu(_lin(wb, y), vb)                           # (64, tm) bf16
            h = h + y                                              # f32 residual

        # head: Linear(dim,64)+LN+ReLU -> Linear(64,32)+LN+ReLU -> Linear(32,1)+Sigmoid
        z = ln_relu(_lin(wh1, h.astype(jnp.bfloat16)), vh1)        # (64, tm) bf16
        z = ln_relu(_lin(wh2, z), vh2)                             # (32, tm) bf16
        # final 32 -> 1 projection as a VPU multiply + feature reduce (avoids a
        # degenerate M=1 matmul); wl is (32, 1) f32, bl is (1, 1) f32.
        z = jnp.sum(z * wl[...], axis=0, keepdims=True) + bl[...]  # (1, tm) f32
        out_ref[...] = jax.nn.sigmoid(z)
    return mdnet_kernel


def _full_spec(shape):
    nd = len(shape)
    return pl.BlockSpec(shape, lambda i, _nd=nd: (0,) * _nd)


def _device_kind():
    try:
        return jax.devices()[0].device_kind.lower()
    except Exception:
        return ""


def _pick_tm(rows, tm_max, num_cores):
    """Largest 128-multiple tile <= tm_max; on multi-core chips keep enough
    grid steps (>= 2 per core when rows permit) so the parallel axis shards
    evenly; on single-core chips never halve for small inputs."""
    tm_max = max(128, (min(int(tm_max), 4096) // 128) * 128)
    rows128 = -(-rows // 128) * 128
    if num_cores <= 1:
        return min(tm_max, rows128)
    target_steps = 2 * num_cores if rows128 >= 2 * num_cores * 128 else num_cores
    per = max(128, ((rows128 // target_steps) // 128) * 128)
    return max(128, min(tm_max, per, rows128))


def match_distance_forward(match_mat, params, tm=4096,
                           bf16_affine=None, num_cores=None):
    """match_mat: [1, N, N, 8] float32 -> {'overlap_pred': [N, N]} float32."""
    b, n, n2, f = match_mat.shape
    assert b == 1 and n == n2 and f == 8

    if bf16_affine is None or num_cores is None:
        kind = _device_kind()
        if bf16_affine is None:
            bf16_affine = ("v6" in kind) or ("v7" in kind)
        if num_cores is None:
            num_cores = 2 if "v7" in kind else 1

    rows = n * n
    tm = _pick_tm(rows, tm, num_cores)
    rows_p = -(-rows // tm) * tm

    # feature-major (8, rows) layout, bf16 cast fused into the same XLA pass;
    # zero-pad ragged tail to a multiple of tm.
    x_t = match_mat.reshape(rows, f).T.astype(jnp.bfloat16)
    if rows_p != rows:
        x_t = jnp.pad(x_t, ((0, 0), (0, rows_p - rows)))

    in_specs = [pl.BlockSpec((f, tm), lambda i: (0, i))]
    in_specs += [_full_spec(p.shape) for p in params]

    # advisory cost estimate (per-row flops dominated by the two 64<->256 dots)
    param_bytes = sum(int(p.size) * p.dtype.itemsize for p in params)
    flops_per_row = (2 * 8 * DIM
                     + LAYER_NUM * 2 * (2 * DIM * DIM * FACTOR)
                     + 2 * DIM * 64 + 2 * 64 * 32 + 2 * 32)
    cost = pl.CostEstimate(
        flops=int(flops_per_row * rows_p),
        transcendentals=int(8 * rows_p),
        bytes_accessed=int(rows_p * (f * 2 + 4) + param_bytes))

    # scoped-VMEM budget: headroom for the (dim*factor, tm) f32 intermediates
    # (~12 copies) -> 48 MiB at tm=4096; always >= 32 MiB, capped under v7x's
    # 64 MiB physical VMEM.
    vmem_limit = int(min(96 << 20, max(32 << 20, 12 * DIM * FACTOR * tm * 4)))

    out = pl.pallas_call(
        _make_kernel(bf16_affine),
        out_shape=jax.ShapeDtypeStruct((1, rows_p), jnp.float32),
        grid_spec=pltpu.PrefetchScalarGridSpec(
            num_scalar_prefetch=0,
            grid=(rows_p // tm,),
            in_specs=in_specs,
            out_specs=pl.BlockSpec((1, tm), lambda i: (0, i)),
        ),
        compiler_params=pltpu.CompilerParams(
            dimension_semantics=("parallel",),
            vmem_limit_bytes=vmem_limit),
        cost_estimate=cost,
    )(x_t, *params)

    overlap = out[0, :rows].reshape(n, n)
    # diagonal zeroing done in XLA (essentially free on the (N, N) output)
    overlap = overlap * (1.0 - jnp.eye(n, dtype=overlap.dtype))
    return {"overlap_pred": overlap}


def init_params(key, dim=DIM, factor=FACTOR, layer_num=LAYER_NUM):
    """Deterministic synthetic parameters in the exact order the kernel consumes them.

    Weights are stored transposed (out_features, in_features) and pre-cast to
    bf16 (MXU fast path); each Linear+LN unit packs [bias, gamma, beta] as
    columns of one (f, 3) f32 array.
    """
    params = []

    def linear_t(k, fan_in, fan_out):
        k1, k2 = jax.random.split(k)
        w = jax.random.normal(k1, (fan_out, fan_in), jnp.float32) / jnp.sqrt(
            jnp.float32(fan_in))
        bb = 0.01 * jax.random.normal(k2, (fan_out, 1), jnp.float32)
        return w, bb

    def pack_vec(bb, fdim):
        return jnp.concatenate(
            [bb, jnp.ones((fdim, 1), jnp.float32), jnp.zeros((fdim, 1), jnp.float32)],
            axis=1)

    keys = jax.random.split(key, 2 + layer_num)
    # proj: Linear(8, dim) — bias only, no LN
    w, bb = linear_t(keys[0], 8, dim)
    params += [w.astype(jnp.bfloat16), bb]

    hid = dim * factor
    for li in range(layer_num):
        k1, k2 = jax.random.split(keys[1 + li])
        w1, b1 = linear_t(k1, dim, hid)
        w2, b2 = linear_t(k2, hid, dim)
        params += [w1.astype(jnp.bfloat16), pack_vec(b1, hid),
                   w2.astype(jnp.bfloat16), pack_vec(b2, dim)]

    kh = jax.random.split(keys[-1], 3)
    w, bb = linear_t(kh[0], dim, 64)
    params += [w.astype(jnp.bfloat16), pack_vec(bb, 64)]
    w, bb = linear_t(kh[1], 64, 32)
    params += [w.astype(jnp.bfloat16), pack_vec(bb, 32)]
    w, bb = linear_t(kh[2], 32, 1)
    # final layer: (in, 1) f32 weight consumed as a VPU reduce + (1, 1) bias
    params += [w.T.astype(jnp.float32), bb]
    return params


def reference_forward(match_mat, params, bf16_affine):
    """Pure-JAX reference mirroring the kernel math exactly (same precisions)."""
    b, n, _, f = match_mat.shape
    x = match_mat.reshape(n * n, f).T
    (wp, vp, w1a, v1a, w1b, v1b, w2a, v2a, w2b, v2b,
     wh1, vh1, wh2, vh2, wl, bl) = params

    def lin(w, h):
        return jnp.dot(w.astype(jnp.bfloat16), h.astype(jnp.bfloat16),
                       preferred_element_type=jnp.float32)

    def ln_relu(y, v):
        y = y + v[:, 0:1]
        fdim = y.shape[0]
        mu = jnp.sum(y, axis=0, keepdims=True) / fdim
        var = jnp.maximum(
            jnp.sum(y * y, axis=0, keepdims=True) / fdim - mu * mu, 0.0)
        inv = lax.rsqrt(var + EPS)
        if bf16_affine:
            z = ((y - mu).astype(jnp.bfloat16) * inv.astype(jnp.bfloat16)
                 * v[:, 1:2].astype(jnp.bfloat16)
                 + v[:, 2:3].astype(jnp.bfloat16))
            return jnp.maximum(z, 0).astype(jnp.bfloat16)
        z = (y - mu) * inv * v[:, 1:2] + v[:, 2:3]
        return jnp.maximum(z, 0.0).astype(jnp.bfloat16)

    h = lin(wp, x) + vp
    for wa, va, wb, vb in ((w1a, v1a, w1b, v1b), (w2a, v2a, w2b, v2b)):
        y = ln_relu(lin(wa, h), va)
        y = ln_relu(lin(wb, y), vb)
        h = h + y
    z = ln_relu(lin(wh1, h), vh1)
    z = ln_relu(lin(wh2, z), vh2)
    z = jnp.sum(z * wl, axis=0, keepdims=True) + bl
    z = jax.nn.sigmoid(z)
    return z.reshape(n, n) * (1.0 - jnp.eye(n, dtype=jnp.float32))


if __name__ == "__main__":
    key = jax.random.PRNGKey(0)
    kp, kx = jax.random.split(key)
    params = init_params(kp)

    N = 16  # 16x16 pairs -> 256 rows -> one 256-wide tile on 1-TC chips
    match_mat = jax.random.normal(kx, (1, N, N, 8), jnp.float32)

    kind = _device_kind()
    bf16_affine = ("v6" in kind) or ("v7" in kind)
    num_cores = 2 if "v7" in kind else 1

    pred = match_distance_forward(match_mat, params,
                                  bf16_affine=bf16_affine, num_cores=num_cores)
    out = jax.block_until_ready(pred["overlap_pred"])
    assert out.shape == (N, N)

    ref = reference_forward(match_mat, params, bf16_affine)
    assert bool(jnp.allclose(out, ref, atol=2e-2, rtol=0)), "mismatch vs reference"
    print("KERNEL_OK")
</pallas_src>

<mosaic_0001>
module attributes {stable_mosaic.version = 11 : i64} {
  func.func @mdnet_kernel(%arg0: i32, %arg1: memref<8x256xbf16, #tpu.memory_space<vmem>>, %arg2: memref<64x8xbf16, #tpu.memory_space<vmem>>, %arg3: memref<64x1xf32, #tpu.memory_space<vmem>>, %arg4: memref<256x64xbf16, #tpu.memory_space<vmem>>, %arg5: memref<256x3xf32, #tpu.memory_space<vmem>>, %arg6: memref<64x256xbf16, #tpu.memory_space<vmem>>, %arg7: memref<64x3xf32, #tpu.memory_space<vmem>>, %arg8: memref<256x64xbf16, #tpu.memory_space<vmem>>, %arg9: memref<256x3xf32, #tpu.memory_space<vmem>>, %arg10: memref<64x256xbf16, #tpu.memory_space<vmem>>, %arg11: memref<64x3xf32, #tpu.memory_space<vmem>>, %arg12: memref<64x64xbf16, #tpu.memory_space<vmem>>, %arg13: memref<64x3xf32, #tpu.memory_space<vmem>>, %arg14: memref<32x64xbf16, #tpu.memory_space<vmem>>, %arg15: memref<32x3xf32, #tpu.memory_space<vmem>>, %arg16: memref<32x1xf32, #tpu.memory_space<vmem>>, %arg17: memref<1x1xf32, #tpu.memory_space<vmem>>, %arg18: memref<1x256xf32, #tpu.memory_space<vmem>>) attributes {dimension_semantics = [#tpu.dimension_semantics<parallel>], iteration_bounds = array<i64: 1>, scalar_prefetch = 0 : i64, scratch_operands = 0 : i64, tpu.core_type = #tpu.core_type<tc>, window_params = [{transform_indices = @transform_0, window_bounds = array<i64: 8, 256>}, {pipeline_mode = #tpu.pipeline_mode<synchronous>, transform_indices = @transform_1, window_bounds = array<i64: 64, 8>}, {pipeline_mode = #tpu.pipeline_mode<synchronous>, transform_indices = @transform_2, window_bounds = array<i64: 64, 1>}, {pipeline_mode = #tpu.pipeline_mode<synchronous>, transform_indices = @transform_3, window_bounds = array<i64: 256, 64>}, {pipeline_mode = #tpu.pipeline_mode<synchronous>, transform_indices = @transform_4, window_bounds = array<i64: 256, 3>}, {pipeline_mode = #tpu.pipeline_mode<synchronous>, transform_indices = @transform_5, window_bounds = array<i64: 64, 256>}, {pipeline_mode = #tpu.pipeline_mode<synchronous>, transform_indices = @transform_6, window_bounds = array<i64: 64, 3>}, {pipeline_mode = #tpu.pipeline_mode<synchronous>, transform_indices = @transform_7, window_bounds = array<i64: 256, 64>}, {pipeline_mode = #tpu.pipeline_mode<synchronous>, transform_indices = @transform_8, window_bounds = array<i64: 256, 3>}, {pipeline_mode = #tpu.pipeline_mode<synchronous>, transform_indices = @transform_9, window_bounds = array<i64: 64, 256>}, {pipeline_mode = #tpu.pipeline_mode<synchronous>, transform_indices = @transform_10, window_bounds = array<i64: 64, 3>}, {pipeline_mode = #tpu.pipeline_mode<synchronous>, transform_indices = @transform_11, window_bounds = array<i64: 64, 64>}, {pipeline_mode = #tpu.pipeline_mode<synchronous>, transform_indices = @transform_12, window_bounds = array<i64: 64, 3>}, {pipeline_mode = #tpu.pipeline_mode<synchronous>, transform_indices = @transform_13, window_bounds = array<i64: 32, 64>}, {pipeline_mode = #tpu.pipeline_mode<synchronous>, transform_indices = @transform_14, window_bounds = array<i64: 32, 3>}, {pipeline_mode = #tpu.pipeline_mode<synchronous>, transform_indices = @transform_15, window_bounds = array<i64: 32, 1>}, {pipeline_mode = #tpu.pipeline_mode<synchronous>, transform_indices = @transform_16, window_bounds = array<i64: 1, 1>}, {transform_indices = @transform_17, window_bounds = array<i64: 1, 256>}]} {
    %c0 = arith.constant 0 : index
    %c0_0 = arith.constant 0 : index
    %0 = vector.load %arg1[%c0, %c0_0] : memref<8x256xbf16, #tpu.memory_space<vmem>>, vector<8x256xbf16>
    %c0_1 = arith.constant 0 : index
    %c0_2 = arith.constant 0 : index
    %1 = vector.load %arg2[%c0_1, %c0_2] : memref<64x8xbf16, #tpu.memory_space<vmem>>, vector<64x8xbf16>
    %cst = arith.constant dense<0.000000e+00> : vector<64x256xf32>
    %2 = tpu.matmul %1, %0, %cst {dimension_numbers = #tpu.dot_dimension_numbers<[1], [0], [0], [1], [0, 0, 1, 1], [], []>} : vector<64x8xbf16>, vector<8x256xbf16>, vector<64x256xf32> -> vector<64x256xf32>
    %c0_3 = arith.constant 0 : index
    %c0_4 = arith.constant 0 : index
    %3 = vector.load %arg3[%c0_3, %c0_4] : memref<64x1xf32, #tpu.memory_space<vmem>>, vector<64x1xf32>
    %4 = vector.broadcast %3 : vector<64x1xf32> to vector<64x256xf32>
    %5 = arith.addf %2, %4 : vector<64x256xf32>
    %6 = arith.truncf %5 : vector<64x256xf32> to vector<64x256xbf16>
    %c0_5 = arith.constant 0 : index
    %c0_6 = arith.constant 0 : index
    %7 = vector.load %arg4[%c0_5, %c0_6] : memref<256x64xbf16, #tpu.memory_space<vmem>>, vector<256x64xbf16>
    %cst_7 = arith.constant dense<0.000000e+00> : vector<256x256xf32>
    %8 = tpu.matmul %7, %6, %cst_7 {dimension_numbers = #tpu.dot_dimension_numbers<[1], [0], [0], [1], [0, 0, 1, 1], [], []>} : vector<256x64xbf16>, vector<64x256xbf16>, vector<256x256xf32> -> vector<256x256xf32>
    %c0_8 = arith.constant 0 : index
    %c0_9 = arith.constant 0 : index
    %9 = vector.load %arg5[%c0_8, %c0_9] : memref<256x3xf32, #tpu.memory_space<vmem>>, vector<256x3xf32>
    %10 = vector.extract_strided_slice %9 {offsets = [0, 0], sizes = [256, 1], strides = [1, 1]} : vector<256x3xf32> to vector<256x1xf32>
    %11 = vector.extract_strided_slice %9 {offsets = [0, 1], sizes = [256, 1], strides = [1, 1]} : vector<256x3xf32> to vector<256x1xf32>
    %12 = vector.extract_strided_slice %9 {offsets = [0, 2], sizes = [256, 1], strides = [1, 1]} : vector<256x3xf32> to vector<256x1xf32>
    %13 = vector.broadcast %10 : vector<256x1xf32> to vector<256x256xf32>
    %14 = arith.addf %8, %13 : vector<256x256xf32>
    %cst_10 = arith.constant dense<0.000000e+00> : vector<256xf32>
    %15 = vector.multi_reduction <add>, %14, %cst_10 [0] : vector<256x256xf32> to vector<256xf32>
    %16 = vector.shape_cast %15 : vector<256xf32> to vector<1x256xf32>
    %17 = arith.mulf %14, %14 : vector<256x256xf32>
    %cst_11 = arith.constant dense<0.000000e+00> : vector<256xf32>
    %18 = vector.multi_reduction <add>, %17, %cst_11 [0] : vector<256x256xf32> to vector<256xf32>
    %19 = vector.shape_cast %18 : vector<256xf32> to vector<1x256xf32>
    %cst_12 = arith.constant 3.906250e-03 : f32
    %20 = vector.broadcast %cst_12 : f32 to vector<1x256xf32>
    %21 = arith.mulf %16, %20 : vector<1x256xf32>
    %cst_13 = arith.constant 3.906250e-03 : f32
    %22 = vector.broadcast %cst_13 : f32 to vector<1x256xf32>
    %23 = arith.mulf %19, %22 : vector<1x256xf32>
    %24 = arith.mulf %21, %21 : vector<1x256xf32>
    %25 = arith.subf %23, %24 : vector<1x256xf32>
    %cst_14 = arith.constant 0.000000e+00 : f32
    %26 = vector.broadcast %cst_14 : f32 to vector<1x256xf32>
    %27 = arith.maximumf %25, %26 : vector<1x256xf32>
    %cst_15 = arith.constant 9.99999974E-6 : f32
    %28 = vector.broadcast %cst_15 : f32 to vector<1x256xf32>
    %29 = arith.addf %27, %28 : vector<1x256xf32>
    %30 = math.rsqrt %29 : vector<1x256xf32>
    %31 = vector.broadcast %21 : vector<1x256xf32> to vector<256x256xf32>
    %32 = arith.subf %14, %31 : vector<256x256xf32>
    %33 = vector.broadcast %30 : vector<1x256xf32> to vector<256x256xf32>
    %34 = arith.mulf %32, %33 : vector<256x256xf32>
    %35 = vector.broadcast %11 : vector<256x1xf32> to vector<256x256xf32>
    %36 = arith.mulf %34, %35 : vector<256x256xf32>
    %37 = vector.broadcast %12 : vector<256x1xf32> to vector<256x256xf32>
    %38 = arith.addf %36, %37 : vector<256x256xf32>
    %cst_16 = arith.constant 0.000000e+00 : f32
    %39 = vector.broadcast %cst_16 : f32 to vector<256x256xf32>
    %40 = arith.maximumf %38, %39 : vector<256x256xf32>
    %41 = arith.truncf %40 : vector<256x256xf32> to vector<256x256xbf16>
    %c0_17 = arith.constant 0 : index
    %c0_18 = arith.constant 0 : index
    %42 = vector.load %arg6[%c0_17, %c0_18] : memref<64x256xbf16, #tpu.memory_space<vmem>>, vector<64x256xbf16>
    %cst_19 = arith.constant dense<0.000000e+00> : vector<64x256xf32>
    %43 = tpu.matmul %42, %41, %cst_19 {dimension_numbers = #tpu.dot_dimension_numbers<[1], [0], [0], [1], [0, 0, 1, 1], [], []>} : vector<64x256xbf16>, vector<256x256xbf16>, vector<64x256xf32> -> vector<64x256xf32>
    %c0_20 = arith.constant 0 : index
    %c0_21 = arith.constant 0 : index
    %44 = vector.load %arg7[%c0_20, %c0_21] : memref<64x3xf32, #tpu.memory_space<vmem>>, vector<64x3xf32>
    %45 = vector.extract_strided_slice %44 {offsets = [0, 0], sizes = [64, 1], strides = [1, 1]} : vector<64x3xf32> to vector<64x1xf32>
    %46 = vector.extract_strided_slice %44 {offsets = [0, 1], sizes = [64, 1], strides = [1, 1]} : vector<64x3xf32> to vector<64x1xf32>
    %47 = vector.extract_strided_slice %44 {offsets = [0, 2], sizes = [64, 1], strides = [1, 1]} : vector<64x3xf32> to vector<64x1xf32>
    %48 = vector.broadcast %45 : vector<64x1xf32> to vector<64x256xf32>
    %49 = arith.addf %43, %48 : vector<64x256xf32>
    %cst_22 = arith.constant dense<0.000000e+00> : vector<256xf32>
    %50 = vector.multi_reduction <add>, %49, %cst_22 [0] : vector<64x256xf32> to vector<256xf32>
    %51 = vector.shape_cast %50 : vector<256xf32> to vector<1x256xf32>
    %52 = arith.mulf %49, %49 : vector<64x256xf32>
    %cst_23 = arith.constant dense<0.000000e+00> : vector<256xf32>
    %53 = vector.multi_reduction <add>, %52, %cst_23 [0] : vector<64x256xf32> to vector<256xf32>
    %54 = vector.shape_cast %53 : vector<256xf32> to vector<1x256xf32>
    %cst_24 = arith.constant 1.562500e-02 : f32
    %55 = vector.broadcast %cst_24 : f32 to vector<1x256xf32>
    %56 = arith.mulf %51, %55 : vector<1x256xf32>
    %cst_25 = arith.constant 1.562500e-02 : f32
    %57 = vector.broadcast %cst_25 : f32 to vector<1x256xf32>
    %58 = arith.mulf %54, %57 : vector<1x256xf32>
    %59 = arith.mulf %56, %56 : vector<1x256xf32>
    %60 = arith.subf %58, %59 : vector<1x256xf32>
    %cst_26 = arith.constant 0.000000e+00 : f32
    %61 = vector.broadcast %cst_26 : f32 to vector<1x256xf32>
    %62 = arith.maximumf %60, %61 : vector<1x256xf32>
    %cst_27 = arith.constant 9.99999974E-6 : f32
    %63 = vector.broadcast %cst_27 : f32 to vector<1x256xf32>
    %64 = arith.addf %62, %63 : vector<1x256xf32>
    %65 = math.rsqrt %64 : vector<1x256xf32>
    %66 = vector.broadcast %56 : vector<1x256xf32> to vector<64x256xf32>
    %67 = arith.subf %49, %66 : vector<64x256xf32>
    %68 = vector.broadcast %65 : vector<1x256xf32> to vector<64x256xf32>
    %69 = arith.mulf %67, %68 : vector<64x256xf32>
    %70 = vector.broadcast %46 : vector<64x1xf32> to vector<64x256xf32>
    %71 = arith.mulf %69, %70 : vector<64x256xf32>
    %72 = vector.broadcast %47 : vector<64x1xf32> to vector<64x256xf32>
    %73 = arith.addf %71, %72 : vector<64x256xf32>
    %cst_28 = arith.constant 0.000000e+00 : f32
    %74 = vector.broadcast %cst_28 : f32 to vector<64x256xf32>
    %75 = arith.maximumf %73, %74 : vector<64x256xf32>
    %76 = arith.truncf %75 : vector<64x256xf32> to vector<64x256xbf16>
    %77 = arith.extf %76 : vector<64x256xbf16> to vector<64x256xf32>
    %78 = arith.addf %5, %77 : vector<64x256xf32>
    %79 = arith.truncf %78 : vector<64x256xf32> to vector<64x256xbf16>
    %c0_29 = arith.constant 0 : index
    %c0_30 = arith.constant 0 : index
    %80 = vector.load %arg8[%c0_29, %c0_30] : memref<256x64xbf16, #tpu.memory_space<vmem>>, vector<256x64xbf16>
    %cst_31 = arith.constant dense<0.000000e+00> : vector<256x256xf32>
    %81 = tpu.matmul %80, %79, %cst_31 {dimension_numbers = #tpu.dot_dimension_numbers<[1], [0], [0], [1], [0, 0, 1, 1], [], []>} : vector<256x64xbf16>, vector<64x256xbf16>, vector<256x256xf32> -> vector<256x256xf32>
    %c0_32 = arith.constant 0 : index
    %c0_33 = arith.constant 0 : index
    %82 = vector.load %arg9[%c0_32, %c0_33] : memref<256x3xf32, #tpu.memory_space<vmem>>, vector<256x3xf32>
    %83 = vector.extract_strided_slice %82 {offsets = [0, 0], sizes = [256, 1], strides = [1, 1]} : vector<256x3xf32> to vector<256x1xf32>
    %84 = vector.extract_strided_slice %82 {offsets = [0, 1], sizes = [256, 1], strides = [1, 1]} : vector<256x3xf32> to vector<256x1xf32>
    %85 = vector.extract_strided_slice %82 {offsets = [0, 2], sizes = [256, 1], strides = [1, 1]} : vector<256x3xf32> to vector<256x1xf32>
    %86 = vector.broadcast %83 : vector<256x1xf32> to vector<256x256xf32>
    %87 = arith.addf %81, %86 : vector<256x256xf32>
    %cst_34 = arith.constant dense<0.000000e+00> : vector<256xf32>
    %88 = vector.multi_reduction <add>, %87, %cst_34 [0] : vector<256x256xf32> to vector<256xf32>
    %89 = vector.shape_cast %88 : vector<256xf32> to vector<1x256xf32>
    %90 = arith.mulf %87, %87 : vector<256x256xf32>
    %cst_35 = arith.constant dense<0.000000e+00> : vector<256xf32>
    %91 = vector.multi_reduction <add>, %90, %cst_35 [0] : vector<256x256xf32> to vector<256xf32>
    %92 = vector.shape_cast %91 : vector<256xf32> to vector<1x256xf32>
    %cst_36 = arith.constant 3.906250e-03 : f32
    %93 = vector.broadcast %cst_36 : f32 to vector<1x256xf32>
    %94 = arith.mulf %89, %93 : vector<1x256xf32>
    %cst_37 = arith.constant 3.906250e-03 : f32
    %95 = vector.broadcast %cst_37 : f32 to vector<1x256xf32>
    %96 = arith.mulf %92, %95 : vector<1x256xf32>
    %97 = arith.mulf %94, %94 : vector<1x256xf32>
    %98 = arith.subf %96, %97 : vector<1x256xf32>
    %cst_38 = arith.constant 0.000000e+00 : f32
    %99 = vector.broadcast %cst_38 : f32 to vector<1x256xf32>
    %100 = arith.maximumf %98, %99 : vector<1x256xf32>
    %cst_39 = arith.constant 9.99999974E-6 : f32
    %101 = vector.broadcast %cst_39 : f32 to vector<1x256xf32>
    %102 = arith.addf %100, %101 : vector<1x256xf32>
    %103 = math.rsqrt %102 : vector<1x256xf32>
    %104 = vector.broadcast %94 : vector<1x256xf32> to vector<256x256xf32>
    %105 = arith.subf %87, %104 : vector<256x256xf32>
    %106 = vector.broadcast %103 : vector<1x256xf32> to vector<256x256xf32>
    %107 = arith.mulf %105, %106 : vector<256x256xf32>
    %108 = vector.broadcast %84 : vector<256x1xf32> to vector<256x256xf32>
    %109 = arith.mulf %107, %108 : vector<256x256xf32>
    %110 = vector.broadcast %85 : vector<256x1xf32> to vector<256x256xf32>
    %111 = arith.addf %109, %110 : vector<256x256xf32>
    %cst_40 = arith.constant 0.000000e+00 : f32
    %112 = vector.broadcast %cst_40 : f32 to vector<256x256xf32>
    %113 = arith.maximumf %111, %112 : vector<256x256xf32>
    %114 = arith.truncf %113 : vector<256x256xf32> to vector<256x256xbf16>
    %c0_41 = arith.constant 0 : index
    %c0_42 = arith.constant 0 : index
    %115 = vector.load %arg10[%c0_41, %c0_42] : memref<64x256xbf16, #tpu.memory_space<vmem>>, vector<64x256xbf16>
    %cst_43 = arith.constant dense<0.000000e+00> : vector<64x256xf32>
    %116 = tpu.matmul %115, %114, %cst_43 {dimension_numbers = #tpu.dot_dimension_numbers<[1], [0], [0], [1], [0, 0, 1, 1], [], []>} : vector<64x256xbf16>, vector<256x256xbf16>, vector<64x256xf32> -> vector<64x256xf32>
    %c0_44 = arith.constant 0 : index
    %c0_45 = arith.constant 0 : index
    %117 = vector.load %arg11[%c0_44, %c0_45] : memref<64x3xf32, #tpu.memory_space<vmem>>, vector<64x3xf32>
    %118 = vector.extract_strided_slice %117 {offsets = [0, 0], sizes = [64, 1], strides = [1, 1]} : vector<64x3xf32> to vector<64x1xf32>
    %119 = vector.extract_strided_slice %117 {offsets = [0, 1], sizes = [64, 1], strides = [1, 1]} : vector<64x3xf32> to vector<64x1xf32>
    %120 = vector.extract_strided_slice %117 {offsets = [0, 2], sizes = [64, 1], strides = [1, 1]} : vector<64x3xf32> to vector<64x1xf32>
    %121 = vector.broadcast %118 : vector<64x1xf32> to vector<64x256xf32>
    %122 = arith.addf %116, %121 : vector<64x256xf32>
    %cst_46 = arith.constant dense<0.000000e+00> : vector<256xf32>
    %123 = vector.multi_reduction <add>, %122, %cst_46 [0] : vector<64x256xf32> to vector<256xf32>
    %124 = vector.shape_cast %123 : vector<256xf32> to vector<1x256xf32>
    %125 = arith.mulf %122, %122 : vector<64x256xf32>
    %cst_47 = arith.constant dense<0.000000e+00> : vector<256xf32>
    %126 = vector.multi_reduction <add>, %125, %cst_47 [0] : vector<64x256xf32> to vector<256xf32>
    %127 = vector.shape_cast %126 : vector<256xf32> to vector<1x256xf32>
    %cst_48 = arith.constant 1.562500e-02 : f32
    %128 = vector.broadcast %cst_48 : f32 to vector<1x256xf32>
    %129 = arith.mulf %124, %128 : vector<1x256xf32>
    %cst_49 = arith.constant 1.562500e-02 : f32
    %130 = vector.broadcast %cst_49 : f32 to vector<1x256xf32>
    %131 = arith.mulf %127, %130 : vector<1x256xf32>
    %132 = arith.mulf %129, %129 : vector<1x256xf32>
    %133 = arith.subf %131, %132 : vector<1x256xf32>
    %cst_50 = arith.constant 0.000000e+00 : f32
    %134 = vector.broadcast %cst_50 : f32 to vector<1x256xf32>
    %135 = arith.maximumf %133, %134 : vector<1x256xf32>
    %cst_51 = arith.constant 9.99999974E-6 : f32
    %136 = vector.broadcast %cst_51 : f32 to vector<1x256xf32>
    %137 = arith.addf %135, %136 : vector<1x256xf32>
    %138 = math.rsqrt %137 : vector<1x256xf32>
    %139 = vector.broadcast %129 : vector<1x256xf32> to vector<64x256xf32>
    %140 = arith.subf %122, %139 : vector<64x256xf32>
    %141 = vector.broadcast %138 : vector<1x256xf32> to vector<64x256xf32>
    %142 = arith.mulf %140, %141 : vector<64x256xf32>
    %143 = vector.broadcast %119 : vector<64x1xf32> to vector<64x256xf32>
    %144 = arith.mulf %142, %143 : vector<64x256xf32>
    %145 = vector.broadcast %120 : vector<64x1xf32> to vector<64x256xf32>
    %146 = arith.addf %144, %145 : vector<64x256xf32>
    %cst_52 = arith.constant 0.000000e+00 : f32
    %147 = vector.broadcast %cst_52 : f32 to vector<64x256xf32>
    %148 = arith.maximumf %146, %147 : vector<64x256xf32>
    %149 = arith.truncf %148 : vector<64x256xf32> to vector<64x256xbf16>
    %150 = arith.extf %149 : vector<64x256xbf16> to vector<64x256xf32>
    %151 = arith.addf %78, %150 : vector<64x256xf32>
    %152 = arith.truncf %151 : vector<64x256xf32> to vector<64x256xbf16>
    %c0_53 = arith.constant 0 : index
    %c0_54 = arith.constant 0 : index
    %153 = vector.load %arg12[%c0_53, %c0_54] : memref<64x64xbf16, #tpu.memory_space<vmem>>, vector<64x64xbf16>
    %cst_55 = arith.constant dense<0.000000e+00> : vector<64x256xf32>
    %154 = tpu.matmul %153, %152, %cst_55 {dimension_numbers = #tpu.dot_dimension_numbers<[1], [0], [0], [1], [0, 0, 1, 1], [], []>} : vector<64x64xbf16>, vector<64x256xbf16>, vector<64x256xf32> -> vector<64x256xf32>
    %c0_56 = arith.constant 0 : index
    %c0_57 = arith.constant 0 : index
    %155 = vector.load %arg13[%c0_56, %c0_57] : memref<64x3xf32, #tpu.memory_space<vmem>>, vector<64x3xf32>
    %156 = vector.extract_strided_slice %155 {offsets = [0, 0], sizes = [64, 1], strides = [1, 1]} : vector<64x3xf32> to vector<64x1xf32>
    %157 = vector.extract_strided_slice %155 {offsets = [0, 1], sizes = [64, 1], strides = [1, 1]} : vector<64x3xf32> to vector<64x1xf32>
    %158 = vector.extract_strided_slice %155 {offsets = [0, 2], sizes = [64, 1], strides = [1, 1]} : vector<64x3xf32> to vector<64x1xf32>
    %159 = vector.broadcast %156 : vector<64x1xf32> to vector<64x256xf32>
    %160 = arith.addf %154, %159 : vector<64x256xf32>
    %cst_58 = arith.constant dense<0.000000e+00> : vector<256xf32>
    %161 = vector.multi_reduction <add>, %160, %cst_58 [0] : vector<64x256xf32> to vector<256xf32>
    %162 = vector.shape_cast %161 : vector<256xf32> to vector<1x256xf32>
    %163 = arith.mulf %160, %160 : vector<64x256xf32>
    %cst_59 = arith.constant dense<0.000000e+00> : vector<256xf32>
    %164 = vector.multi_reduction <add>, %163, %cst_59 [0] : vector<64x256xf32> to vector<256xf32>
    %165 = vector.shape_cast %164 : vector<256xf32> to vector<1x256xf32>
    %cst_60 = arith.constant 1.562500e-02 : f32
    %166 = vector.broadcast %cst_60 : f32 to vector<1x256xf32>
    %167 = arith.mulf %162, %166 : vector<1x256xf32>
    %cst_61 = arith.constant 1.562500e-02 : f32
    %168 = vector.broadcast %cst_61 : f32 to vector<1x256xf32>
    %169 = arith.mulf %165, %168 : vector<1x256xf32>
    %170 = arith.mulf %167, %167 : vector<1x256xf32>
    %171 = arith.subf %169, %170 : vector<1x256xf32>
    %cst_62 = arith.constant 0.000000e+00 : f32
    %172 = vector.broadcast %cst_62 : f32 to vector<1x256xf32>
    %173 = arith.maximumf %171, %172 : vector<1x256xf32>
    %cst_63 = arith.constant 9.99999974E-6 : f32
    %174 = vector.broadcast %cst_63 : f32 to vector<1x256xf32>
    %175 = arith.addf %173, %174 : vector<1x256xf32>
    %176 = math.rsqrt %175 : vector<1x256xf32>
    %177 = vector.broadcast %167 : vector<1x256xf32> to vector<64x256xf32>
    %178 = arith.subf %160, %177 : vector<64x256xf32>
    %179 = vector.broadcast %176 : vector<1x256xf32> to vector<64x256xf32>
    %180 = arith.mulf %178, %179 : vector<64x256xf32>
    %181 = vector.broadcast %157 : vector<64x1xf32> to vector<64x256xf32>
    %182 = arith.mulf %180, %181 : vector<64x256xf32>
    %183 = vector.broadcast %158 : vector<64x1xf32> to vector<64x256xf32>
    %184 = arith.addf %182, %183 : vector<64x256xf32>
    %cst_64 = arith.constant 0.000000e+00 : f32
    %185 = vector.broadcast %cst_64 : f32 to vector<64x256xf32>
    %186 = arith.maximumf %184, %185 : vector<64x256xf32>
    %187 = arith.truncf %186 : vector<64x256xf32> to vector<64x256xbf16>
    %c0_65 = arith.constant 0 : index
    %c0_66 = arith.constant 0 : index
    %188 = vector.load %arg14[%c0_65, %c0_66] : memref<32x64xbf16, #tpu.memory_space<vmem>>, vector<32x64xbf16>
    %cst_67 = arith.constant dense<0.000000e+00> : vector<32x256xf32>
    %189 = tpu.matmul %188, %187, %cst_67 {dimension_numbers = #tpu.dot_dimension_numbers<[1], [0], [0], [1], [0, 0, 1, 1], [], []>} : vector<32x64xbf16>, vector<64x256xbf16>, vector<32x256xf32> -> vector<32x256xf32>
    %c0_68 = arith.constant 0 : index
    %c0_69 = arith.constant 0 : index
    %190 = vector.load %arg15[%c0_68, %c0_69] : memref<32x3xf32, #tpu.memory_space<vmem>>, vector<32x3xf32>
    %191 = vector.extract_strided_slice %190 {offsets = [0, 0], sizes = [32, 1], strides = [1, 1]} : vector<32x3xf32> to vector<32x1xf32>
    %192 = vector.extract_strided_slice %190 {offsets = [0, 1], sizes = [32, 1], strides = [1, 1]} : vector<32x3xf32> to vector<32x1xf32>
    %193 = vector.extract_strided_slice %190 {offsets = [0, 2], sizes = [32, 1], strides = [1, 1]} : vector<32x3xf32> to vector<32x1xf32>
    %194 = vector.broadcast %191 : vector<32x1xf32> to vector<32x256xf32>
    %195 = arith.addf %189, %194 : vector<32x256xf32>
    %cst_70 = arith.constant dense<0.000000e+00> : vector<256xf32>
    %196 = vector.multi_reduction <add>, %195, %cst_70 [0] : vector<32x256xf32> to vector<256xf32>
    %197 = vector.shape_cast %196 : vector<256xf32> to vector<1x256xf32>
    %198 = arith.mulf %195, %195 : vector<32x256xf32>
    %cst_71 = arith.constant dense<0.000000e+00> : vector<256xf32>
    %199 = vector.multi_reduction <add>, %198, %cst_71 [0] : vector<32x256xf32> to vector<256xf32>
    %200 = vector.shape_cast %199 : vector<256xf32> to vector<1x256xf32>
    %cst_72 = arith.constant 3.125000e-02 : f32
    %201 = vector.broadcast %cst_72 : f32 to vector<1x256xf32>
    %202 = arith.mulf %197, %201 : vector<1x256xf32>
    %cst_73 = arith.constant 3.125000e-02 : f32
    %203 = vector.broadcast %cst_73 : f32 to vector<1x256xf32>
    %204 = arith.mulf %200, %203 : vector<1x256xf32>
    %205 = arith.mulf %202, %202 : vector<1x256xf32>
    %206 = arith.subf %204, %205 : vector<1x256xf32>
    %cst_74 = arith.constant 0.000000e+00 : f32
    %207 = vector.broadcast %cst_74 : f32 to vector<1x256xf32>
    %208 = arith.maximumf %206, %207 : vector<1x256xf32>
    %cst_75 = arith.constant 9.99999974E-6 : f32
    %209 = vector.broadcast %cst_75 : f32 to vector<1x256xf32>
    %210 = arith.addf %208, %209 : vector<1x256xf32>
    %211 = math.rsqrt %210 : vector<1x256xf32>
    %212 = vector.broadcast %202 : vector<1x256xf32> to vector<32x256xf32>
    %213 = arith.subf %195, %212 : vector<32x256xf32>
    %214 = vector.broadcast %211 : vector<1x256xf32> to vector<32x256xf32>
    %215 = arith.mulf %213, %214 : vector<32x256xf32>
    %216 = vector.broadcast %192 : vector<32x1xf32> to vector<32x256xf32>
    %217 = arith.mulf %215, %216 : vector<32x256xf32>
    %218 = vector.broadcast %193 : vector<32x1xf32> to vector<32x256xf32>
    %219 = arith.addf %217, %218 : vector<32x256xf32>
    %cst_76 = arith.constant 0.000000e+00 : f32
    %220 = vector.broadcast %cst_76 : f32 to vector<32x256xf32>
    %221 = arith.maximumf %219, %220 : vector<32x256xf32>
    %222 = arith.truncf %221 : vector<32x256xf32> to vector<32x256xbf16>
    %c0_77 = arith.constant 0 : index
    %c0_78 = arith.constant 0 : index
    %223 = vector.load %arg16[%c0_77, %c0_78] : memref<32x1xf32, #tpu.memory_space<vmem>>, vector<32x1xf32>
    %224 = arith.extf %222 : vector<32x256xbf16> to vector<32x256xf32>
    %225 = vector.broadcast %223 : vector<32x1xf32> to vector<32x256xf32>
    %226 = arith.mulf %224, %225 : vector<32x256xf32>
    %cst_79 = arith.constant dense<0.000000e+00> : vector<256xf32>
    %227 = vector.multi_reduction <add>, %226, %cst_79 [0] : vector<32x256xf32> to vector<256xf32>
    %228 = vector.shape_cast %227 : vector<256xf32> to vector<1x256xf32>
    %c0_80 = arith.constant 0 : index
    %c0_81 = arith.constant 0 : index
    %229 = vector.load %arg17[%c0_80, %c0_81] : memref<1x1xf32, #tpu.memory_space<vmem>>, vector<1x1xf32>
    %230 = vector.broadcast %229 : vector<1x1xf32> to vector<1x256xf32>
    %231 = arith.addf %228, %230 : vector<1x256xf32>
    %232 = arith.negf %231 : vector<1x256xf32>
    %233 = math.exp %232 : vector<1x256xf32>
    %cst_82 = arith.constant 1.000000e+00 : f32
    %234 = vector.broadcast %cst_82 : f32 to vector<1x256xf32>
    %235 = arith.addf %234, %233 : vector<1x256xf32>
    %236 = arith.divf %234, %235 : vector<1x256xf32>
    %c0_83 = arith.constant 0 : index
    %c0_84 = arith.constant 0 : index
    %237 = vector.load %arg18[%c0_83, %c0_84] : memref<1x256xf32, #tpu.memory_space<vmem>>, vector<1x256xf32>
    tpu.vector_store %arg18[%c0_83, %c0_84], %236 {strides = array<i32>} : memref<1x256xf32, #tpu.memory_space<vmem>>, vector<1x256xf32>,
    return
  }
  func.func @transform_0(%arg0: i32) -> (i32, i32) {
    %c0_i32 = arith.constant 0 : i32
    %c0_i32_0 = arith.constant 0 : i32
    return %c0_i32, %arg0 : i32, i32
  }
  func.func @transform_1(%arg0: i32) -> (i32, i32) {
    %c0_i32 = arith.constant 0 : i32
    %c0_i32_0 = arith.constant 0 : i32
    %c0_i32_1 = arith.constant 0 : i32
    return %c0_i32, %c0_i32_0 : i32, i32
  }
  func.func @transform_2(%arg0: i32) -> (i32, i32) {
    %c0_i32 = arith.constant 0 : i32
    %c0_i32_0 = arith.constant 0 : i32
    %c0_i32_1 = arith.constant 0 : i32
    return %c0_i32, %c0_i32_0 : i32, i32
  }
  func.func @transform_3(%arg0: i32) -> (i32, i32) {
    %c0_i32 = arith.constant 0 : i32
    %c0_i32_0 = arith.constant 0 : i32
    %c0_i32_1 = arith.constant 0 : i32
    return %c0_i32, %c0_i32_0 : i32, i32
  }
  func.func @transform_4(%arg0: i32) -> (i32, i32) {
    %c0_i32 = arith.constant 0 : i32
    %c0_i32_0 = arith.constant 0 : i32
    %c0_i32_1 = arith.constant 0 : i32
    return %c0_i32, %c0_i32_0 : i32, i32
  }
  func.func @transform_5(%arg0: i32) -> (i32, i32) {
    %c0_i32 = arith.constant 0 : i32
    %c0_i32_0 = arith.constant 0 : i32
    %c0_i32_1 = arith.constant 0 : i32
    return %c0_i32, %c0_i32_0 : i32, i32
  }
  func.func @transform_6(%arg0: i32) -> (i32, i32) {
    %c0_i32 = arith.constant 0 : i32
    %c0_i32_0 = arith.constant 0 : i32
    %c0_i32_1 = arith.constant 0 : i32
    return %c0_i32, %c0_i32_0 : i32, i32
  }
  func.func @transform_7(%arg0: i32) -> (i32, i32) {
    %c0_i32 = arith.constant 0 : i32
    %c0_i32_0 = arith.constant 0 : i32
    %c0_i32_1 = arith.constant 0 : i32
    return %c0_i32, %c0_i32_0 : i32, i32
  }
  func.func @transform_8(%arg0: i32) -> (i32, i32) {
    %c0_i32 = arith.constant 0 : i32
    %c0_i32_0 = arith.constant 0 : i32
    %c0_i32_1 = arith.constant 0 : i32
    return %c0_i32, %c0_i32_0 : i32, i32
  }
  func.func @transform_9(%arg0: i32) -> (i32, i32) {
    %c0_i32 = arith.constant 0 : i32
    %c0_i32_0 = arith.constant 0 : i32
    %c0_i32_1 = arith.constant 0 : i32
    return %c0_i32, %c0_i32_0 : i32, i32
  }
  func.func @transform_10(%arg0: i32) -> (i32, i32) {
    %c0_i32 = arith.constant 0 : i32
    %c0_i32_0 = arith.constant 0 : i32
    %c0_i32_1 = arith.constant 0 : i32
    return %c0_i32, %c0_i32_0 : i32, i32
  }
  func.func @transform_11(%arg0: i32) -> (i32, i32) {
    %c0_i32 = arith.constant 0 : i32
    %c0_i32_0 = arith.constant 0 : i32
    %c0_i32_1 = arith.constant 0 : i32
    return %c0_i32, %c0_i32_0 : i32, i32
  }
  func.func @transform_12(%arg0: i32) -> (i32, i32) {
    %c0_i32 = arith.constant 0 : i32
    %c0_i32_0 = arith.constant 0 : i32
    %c0_i32_1 = arith.constant 0 : i32
    return %c0_i32, %c0_i32_0 : i32, i32
  }
  func.func @transform_13(%arg0: i32) -> (i32, i32) {
    %c0_i32 = arith.constant 0 : i32
    %c0_i32_0 = arith.constant 0 : i32
    %c0_i32_1 = arith.constant 0 : i32
    return %c0_i32, %c0_i32_0 : i32, i32
  }
  func.func @transform_14(%arg0: i32) -> (i32, i32) {
    %c0_i32 = arith.constant 0 : i32
    %c0_i32_0 = arith.constant 0 : i32
    %c0_i32_1 = arith.constant 0 : i32
    return %c0_i32, %c0_i32_0 : i32, i32
  }
  func.func @transform_15(%arg0: i32) -> (i32, i32) {
    %c0_i32 = arith.constant 0 : i32
    %c0_i32_0 = arith.constant 0 : i32
    %c0_i32_1 = arith.constant 0 : i32
    return %c0_i32, %c0_i32_0 : i32, i32
  }
  func.func @transform_16(%arg0: i32) -> (i32, i32) {
    %c0_i32 = arith.constant 0 : i32
    %c0_i32_0 = arith.constant 0 : i32
    %c0_i32_1 = arith.constant 0 : i32
    return %c0_i32, %c0_i32_0 : i32, i32
  }
  func.func @transform_17(%arg0: i32) -> (i32, i32) {
    %c0_i32 = arith.constant 0 : i32
    %c0_i32_0 = arith.constant 0 : i32
    return %c0_i32, %arg0 : i32, i32
  }
}

</mosaic_0001>

<llo_original>
// kernel: tpu_custom_call.1
$region0: #{tpu_custom_call.1}
  #allocation0 [shape = 'u32[]', space=smem, size = 0x4, offset = 0x4, fixed_abs, tag = 'smem constant byte address 0x4 - core index']
  #allocation1 [shape = 'u32[144,128]{1,0:T(1,128)}', space=vmem, size = 0x12000, scoped, tag = 'internal scratch']
  #allocation2 [shape = 'f32[1,1]{1,0:T(1,128)S(1)}', space=vmem, size = 0x200, scoped, tag = 'scoped memory for tpu_custom_call.1']
  %s0 = inlined_call_operand.vmem [shape: bf16[8,256], index: 0, kind: input, shape index: {}]
  %s1 = inlined_call_operand.vmem [shape: bf16[64,8], index: 1, kind: input, shape index: {}]
  %s2 = inlined_call_operand.vmem [shape: f32[64,1], index: 2, kind: input, shape index: {}]
  %s3 = inlined_call_operand.vmem [shape: bf16[256,64], index: 3, kind: input, shape index: {}]
  %s4 = inlined_call_operand.vmem [shape: f32[256,3], index: 4, kind: input, shape index: {}]
  %s5 = inlined_call_operand.vmem [shape: bf16[64,256], index: 5, kind: input, shape index: {}]
  %s6 = inlined_call_operand.vmem [shape: f32[64,3], index: 6, kind: input, shape index: {}]
  %s7 = inlined_call_operand.vmem [shape: bf16[256,64], index: 7, kind: input, shape index: {}]
  %s8 = inlined_call_operand.vmem [shape: f32[256,3], index: 8, kind: input, shape index: {}]
  %s9 = inlined_call_operand.vmem [shape: bf16[64,256], index: 9, kind: input, shape index: {}]
  %s10 = inlined_call_operand.vmem [shape: f32[64,3], index: 10, kind: input, shape index: {}]
  %s11 = inlined_call_operand.vmem [shape: bf16[64,64], index: 11, kind: input, shape index: {}]
  %s12 = inlined_call_operand.vmem [shape: f32[64,3], index: 12, kind: input, shape index: {}]
  %s13 = inlined_call_operand.vmem [shape: bf16[32,64], index: 13, kind: input, shape index: {}]
  %s14 = inlined_call_operand.vmem [shape: f32[32,3], index: 14, kind: input, shape index: {}]
  %s15 = inlined_call_operand.vmem [shape: f32[32,1], index: 15, kind: input, shape index: {}]
  %s16 = inlined_call_operand.<no memory space> [shape: f32[1,1], index: 16, kind: input, shape index: {}]
  %s17 = inlined_call_operand.hbm [shape: f32[1,256], index: 17, kind: output, shape index: {}]
  %s18 = sld [smem:[#allocation0]]
  $region78: #{tpu_custom_call.1} parent=0
    _
  %s20 = ssub.s32 1, %s18
  %s21 = scalar_select 0, %s20, %s18
  %v22 = vstv %s16
  %23 = vst [vmem:[#allocation2] sm:$0x1] %v22
  $region1: #{tpu_custom_call.1} parent=0
    #allocation3 [shape = 'u8[1024]{0}', space=vmem, size = 0x400, scoped, tag = 'output window, operand 0, single buffered']
    #allocation4 [shape = 's32[1]{0}', space=sflag, size = 0x4, scoped, tag = 'scoped memory for tpu_custom_call.1']
    %24 = vsyncpa [#allocation4], 0
    // Predicated region
    $region2: #{tpu_custom_call.1} parent=1 // pred_check
      _
    $region3: #{tpu_custom_call.1} parent=1 // pred_check_branch
      %26 = sbr.rel (0) target = $region5
    $region4: #{tpu_custom_call.1} parent=1 // pred_region
      _
    $region5: #{tpu_custom_call.1} parent=1 // pred_fallthru
      _
    // Predicated region
    $region6: #{tpu_custom_call.1} parent=1 // pred_check
      _
    $region7: #{tpu_custom_call.1} parent=1 // pred_check_branch
      %28 = sbr.rel (0) target = $region9
    $region8: #{tpu_custom_call.1} parent=1 // pred_region
      _
    $region9: #{tpu_custom_call.1} parent=1 // pred_fallthru
      _
    // Predicated region
    $region10: #{tpu_custom_call.1} parent=1 // pred_check
      _
    $region11: #{tpu_custom_call.1} parent=1 // pred_check_branch
      %30 = sbr.rel (0) target = $region13
    $region12: #{tpu_custom_call.1} parent=1 // pred_region
      _
    $region13: #{tpu_custom_call.1} parent=1 // pred_fallthru
      _
    // Predicated region
    $region14: #{tpu_custom_call.1} parent=1 // pred_check
      _
    $region15: #{tpu_custom_call.1} parent=1 // pred_check_branch
      %32 = sbr.rel (0) target = $region17
    $region16: #{tpu_custom_call.1} parent=1 // pred_region
      _
    $region17: #{tpu_custom_call.1} parent=1 // pred_fallthru
      _
    // Predicated region
    $region18: #{tpu_custom_call.1} parent=1 // pred_check
      _
    $region19: #{tpu_custom_call.1} parent=1 // pred_check_branch
      %34 = sbr.rel (0) target = $region21
    $region20: #{tpu_custom_call.1} parent=1 // pred_region
      _
    $region21: #{tpu_custom_call.1} parent=1 // pred_fallthru
      _
    // Predicated region
    $region22: #{tpu_custom_call.1} parent=1 // pred_check
      _
    $region23: #{tpu_custom_call.1} parent=1 // pred_check_branch
      %36 = sbr.rel (0) target = $region25
    $region24: #{tpu_custom_call.1} parent=1 // pred_region
      _
    $region25: #{tpu_custom_call.1} parent=1 // pred_fallthru
      _
    // Predicated region
    $region26: #{tpu_custom_call.1} parent=1 // pred_check
      _
    $region27: #{tpu_custom_call.1} parent=1 // pred_check_branch
      %38 = sbr.rel (0) target = $region29
    $region28: #{tpu_custom_call.1} parent=1 // pred_region
      _
    $region29: #{tpu_custom_call.1} parent=1 // pred_fallthru
      _
    // Predicated region
    $region30: #{tpu_custom_call.1} parent=1 // pred_check
      _
    $region31: #{tpu_custom_call.1} parent=1 // pred_check_branch
      %40 = sbr.rel (0) target = $region33
    $region32: #{tpu_custom_call.1} parent=1 // pred_region
      _
    $region33: #{tpu_custom_call.1} parent=1 // pred_fallthru
      _
    // Predicated region
    $region34: #{tpu_custom_call.1} parent=1 // pred_check
      _
    $region35: #{tpu_custom_call.1} parent=1 // pred_check_branch
      %42 = sbr.rel (0) target = $region37
    $region36: #{tpu_custom_call.1} parent=1 // pred_region
      _
    $region37: #{tpu_custom_call.1} parent=1 // pred_fallthru
      _
    // Predicated region
    $region38: #{tpu_custom_call.1} parent=1 // pred_check
      _
    $region39: #{tpu_custom_call.1} parent=1 // pred_check_branch
      %44 = sbr.rel (0) target = $region41
    $region40: #{tpu_custom_call.1} parent=1 // pred_region
      _
    $region41: #{tpu_custom_call.1} parent=1 // pred_fallthru
      _
    // Predicated region
    $region42: #{tpu_custom_call.1} parent=1 // pred_check
      _
    $region43: #{tpu_custom_call.1} parent=1 // pred_check_branch
      %46 = sbr.rel (0) target = $region45
    $region44: #{tpu_custom_call.1} parent=1 // pred_region
      _
    $region45: #{tpu_custom_call.1} parent=1 // pred_fallthru
      _
    // Predicated region
    $region46: #{tpu_custom_call.1} parent=1 // pred_check
      _
    $region47: #{tpu_custom_call.1} parent=1 // pred_check_branch
      %48 = sbr.rel (0) target = $region49
    $region48: #{tpu_custom_call.1} parent=1 // pred_region
      _
    $region49: #{tpu_custom_call.1} parent=1 // pred_fallthru
      _
    // Predicated region
    $region50: #{tpu_custom_call.1} parent=1 // pred_check
      _
    $region51: #{tpu_custom_call.1} parent=1 // pred_check_branch
      %50 = sbr.rel (0) target = $region53
    $region52: #{tpu_custom_call.1} parent=1 // pred_region
      _
    $region53: #{tpu_custom_call.1} parent=1 // pred_fallthru
      _
    // Predicated region
    $region54: #{tpu_custom_call.1} parent=1 // pred_check
      _
    $region55: #{tpu_custom_call.1} parent=1 // pred_check_branch
      %52 = sbr.rel (0) target = $region57
    $region56: #{tpu_custom_call.1} parent=1 // pred_region
      _
    $region57: #{tpu_custom_call.1} parent=1 // pred_fallthru
      _
    // Predicated region
    $region58: #{tpu_custom_call.1} parent=1 // pred_check
      _
    $region59: #{tpu_custom_call.1} parent=1 // pred_check_branch
      %54 = sbr.rel (0) target = $region61
    $region60: #{tpu_custom_call.1} parent=1 // pred_region
      _
    $region61: #{tpu_custom_call.1} parent=1 // pred_fallthru
      _
    // Predicated region
    $region62: #{tpu_custom_call.1} parent=1 // pred_check
      _
    $region63: #{tpu_custom_call.1} parent=1 // pred_check_branch
      %56 = sbr.rel (0) target = $region65
    $region64: #{tpu_custom_call.1} parent=1 // pred_region
      _
    $region65: #{tpu_custom_call.1} parent=1 // pred_fallthru
      _
    // Predicated region
    $region66: #{tpu_custom_call.1} parent=1 // pred_check
      _
    $region67: #{tpu_custom_call.1} parent=1 // pred_check_branch
      %58 = sbr.rel (0) target = $region69
    $region68: #{tpu_custom_call.1} parent=1 // pred_region
      _
    $region69: #{tpu_custom_call.1} parent=1 // pred_fallthru
      _
    %v60 = vld [vmem:[%s0] sm:$0xff]
    %v61 = vld [vmem:[%s1] sm:$0xf]
    %v62 = vld [vmem:[%s1 + $0x4] sm:$0xf]
    %v63 = vld [vmem:[%s1 + $0x8] sm:$0xf]
    %v64 = vld [vmem:[%s1 + $0xc] sm:$0xf]
    %v65 = vld [vmem:[%s1 + $0x10] sm:$0xf]
    %v66 = vld [vmem:[%s1 + $0x14] sm:$0xf]
    %v67 = vld [vmem:[%s1 + $0x18] sm:$0xf]
    %v68 = vld [vmem:[%s1 + $0x1c] sm:$0xf]
    %v69 = vld [vmem:[%s2] sm:$0xff]
    %v70 = vld [vmem:[%s2 + $0x8] sm:$0xff]
    %v71 = vld [vmem:[%s2 + $0x10] sm:$0xff]
    %v72 = vld [vmem:[%s2 + $0x18] sm:$0xff]
    %v73 = vld [vmem:[%s2 + $0x20] sm:$0xff]
    %v74 = vld [vmem:[%s2 + $0x28] sm:$0xff]
    %v75 = vld [vmem:[%s2 + $0x30] sm:$0xff]
    %v76 = vld [vmem:[%s2 + $0x38] sm:$0xff]
    %78 = vset.pattern.permute.xlu0 0
    %79 = vperm.xlu0 %78, %v69
    %v80 = vpop.permute.xlu0 %79
    %83 = vset.pattern.permute.xlu0 0
    %84 = vperm.xlu0 %83, %v70
    %v85 = vpop.permute.xlu0 %84
    %88 = vset.pattern.permute.xlu0 0
    %89 = vperm.xlu0 %88, %v71
    %v90 = vpop.permute.xlu0 %89
    %93 = vset.pattern.permute.xlu0 0
    %94 = vperm.xlu0 %93, %v72
    %v95 = vpop.permute.xlu0 %94
    %98 = vset.pattern.permute.xlu0 0
    %99 = vperm.xlu0 %98, %v73
    %v100 = vpop.permute.xlu0 %99
    %103 = vset.pattern.permute.xlu0 0
    %104 = vperm.xlu0 %103, %v74
    %v105 = vpop.permute.xlu0 %104
    %108 = vset.pattern.permute.xlu0 0
    %109 = vperm.xlu0 %108, %v75
    %v110 = vpop.permute.xlu0 %109
    %113 = vset.pattern.permute.xlu0 0
    %114 = vperm.xlu0 %113, %v76
    %v115 = vpop.permute.xlu0 %114
    %v125 = vunpack.c.l.b16 %v61
    %v126 = vunpack.c.l.b16 %v62
    %v127 = vunpack.c.l.b16 %v63
    %v128 = vunpack.c.l.b16 %v64
    %v129 = vunpack.c.l.b16 %v65
    %v130 = vunpack.c.l.b16 %v66
    %v131 = vunpack.c.l.b16 %v67
    %v132 = vunpack.c.l.b16 %v68
    %v133 = vpack.c.b16 %v126, %v125
    %v134 = vpack.c.b16 %v128, %v127
    %v135 = vpack.c.b16 %v130, %v129
    %v136 = vpack.c.b16 %v132, %v131
    %v138 = vunpack.c.l.b16 %v60
    %v139 = vunpack.c.h.b16 %v60
    %v140 = vpack.c.b16 %v138, %v138
    %v141 = vpack.c.b16 %v139, %v139
    %vm142 = vcmask 64512
    %v144 = vsel %vm142, %v133, 0
    %v147 = vsel %vm142, %v134, 0
    %v150 = vsel %vm142, %v135, 0
    %v153 = vsel %vm142, %v136, 0
    %vm155 = vcmask 1043456
    %v157 = vsel %vm155, %v140, 0
    %v160 = vsel %vm155, %v141, 0
    %162 = vmatprep.subr.bf16.mxu0 %v160
    %163 = vmatpush1.bf16.msra.mxu0 %v157
    %164 = vmatprep.subr.bf16.mxu0 0
    %165 = vmatpush1.bf16.msra.mxu0 0
    %166 = vmatprep.subr.bf16.mxu0 0
    %167 = vmatpush1.bf16.msra.mxu0 0
    %168 = vmatprep.subr.bf16.mxu0 0
    %169 = vmatpush1.bf16.msra.mxu0 0
    %170 = vmatprep.subr.bf16.mxu0 0
    %171 = vmatpush1.bf16.msra.mxu0 0
    %172 = vmatprep.subr.bf16.mxu0 0
    %173 = vmatpush1.bf16.msra.mxu0 0
    %174 = vmatprep.subr.bf16.mxu0 0
    %175 = vmatpush1.bf16.msra.mxu0 0
    %176 = vmatprep.subr.bf16.mxu0 0
    %177 = vmatpush1.bf16.msra.mxu0 0
    %178 = vmatprep.subr.bf16.mxu0 0
    %179 = vmatpush1.bf16.msra.mxu0 0
    %180 = vmatprep.subr.bf16.mxu0 0
    %181 = vmatpush1.bf16.msra.mxu0 0
    %182 = vmatprep.subr.bf16.mxu0 0
    %183 = vmatpush1.bf16.msra.mxu0 0
    %184 = vmatprep.subr.bf16.mxu0 0
    %185 = vmatpush1.bf16.msra.mxu0 0
    %186 = vmatprep.subr.bf16.mxu0 0
    %187 = vmatpush1.bf16.msra.mxu0 0
    %188 = vmatprep.subr.bf16.mxu0 0
    %189 = vmatpush1.bf16.msra.mxu0 0
    %190 = vmatprep.subr.bf16.mxu0 0
    %191 = vmatpush1.bf16.msra.mxu0 0
    %192 = vmatprep.subr.bf16.mxu0 0
    %193 = vmatpush1.bf16.msra.mxu0 0
    %194 = vmatprep.mubr.bf16.mxu0 0
    %195 = vmatmul.mubr.bf16.gmra.mrb[0].mxu0 %v144
    %v196 = vpop.f32.mrb[0].mxu0
    %v197 = vadd.f32 %v80, %v196
    %v198 = vpop.f32.mrb[0].mxu0
    %v199 = vadd.f32 %v80, %v198
    %v200 = vpop.f32.mrb[0].mxu0
    %v201 = vadd.f32 %v85, %v200
    %v202 = vpop.f32.mrb[0].mxu0
    %v203 = vadd.f32 %v85, %v202
    %204 = vmatprep.mubr.bf16.mxu0 0
    %205 = vmatmul.mubr.bf16.gmra.mrb[0].mxu0 %v147
    %v206 = vpop.f32.mrb[0].mxu0
    %v207 = vadd.f32 %v90, %v206
    %v208 = vpop.f32.mrb[0].mxu0
    %v209 = vadd.f32 %v90, %v208
    %v210 = vpop.f32.mrb[0].mxu0
    %v211 = vadd.f32 %v95, %v210
    %v212 = vpop.f32.mrb[0].mxu0
    %v213 = vadd.f32 %v95, %v212
    %214 = vmatprep.mubr.bf16.mxu0 0
    %215 = vmatmul.mubr.bf16.gmra.mrb[0].mxu0 %v150
    %v216 = vpop.f32.mrb[0].mxu0
    %v217 = vadd.f32 %v100, %v216
    %v218 = vpop.f32.mrb[0].mxu0
    %v219 = vadd.f32 %v100, %v218
    %v220 = vpop.f32.mrb[0].mxu0
    %v221 = vadd.f32 %v105, %v220
    %v222 = vpop.f32.mrb[0].mxu0
    %v223 = vadd.f32 %v105, %v222
    %224 = vmatprep.mubr.bf16.mxu0 0
    %225 = vmatmul.mubr.bf16.gmra.mrb[0].mxu0 %v153
    %v226 = vpop.f32.mrb[0].mxu0
    %v227 = vadd.f32 %v110, %v226
    %v228 = vpop.f32.mrb[0].mxu0
    %v229 = vadd.f32 %v110, %v228
    %v230 = vpop.f32.mrb[0].mxu0
    %v231 = vadd.f32 %v115, %v230
    %v232 = vpop.f32.mrb[0].mxu0
    %v233 = vadd.f32 %v115, %v232
    %234 = vdwg.mxu0
    %v235 = vpack.c.bf16 %v201, %v197
    %v236 = vpack.c.bf16 %v203, %v199
    %v237 = vpack.c.bf16 %v211, %v207
    %v238 = vpack.c.bf16 %v213, %v209
    %v239 = vpack.c.bf16 %v221, %v217
    %v240 = vpack.c.bf16 %v223, %v219
    %v241 = vpack.c.bf16 %v231, %v227
    %v242 = vpack.c.bf16 %v233, %v229
    %v243 = vld [vmem:[%s3] sm:$0xf]
    %v244 = vld [vmem:[%s3 + $0x4] sm:$0xf]
    %v245 = vld [vmem:[%s3 + $0x8] sm:$0xf]
    %v246 = vld [vmem:[%s3 + $0xc] sm:$0xf]
    %v247 = vld [vmem:[%s3 + $0x10] sm:$0xf]
    %v248 = vld [vmem:[%s3 + $0x14] sm:$0xf]
    %v249 = vld [vmem:[%s3 + $0x18] sm:$0xf]
    %v250 = vld [vmem:[%s3 + $0x1c] sm:$0xf]
    %v251 = vld [vmem:[%s3 + $0x20] sm:$0xf]
    %v252 = vld [vmem:[%s3 + $0x24] sm:$0xf]
    %v253 = vld [vmem:[%s3 + $0x28] sm:$0xf]
    %v254 = vld [vmem:[%s3 + $0x2c] sm:$0xf]
    %v255 = vld [vmem:[%s3 + $0x30] sm:$0xf]
    %v256 = vld [vmem:[%s3 + $0x34] sm:$0xf]
    %v257 = vld [vmem:[%s3 + $0x38] sm:$0xf]
    %v258 = vld [vmem:[%s3 + $0x3c] sm:$0xf]
    %v259 = vld [vmem:[%s3 + $0x40] sm:$0xf]
    %v260 = vld [vmem:[%s3 + $0x44] sm:$0xf]
    %v261 = vld [vmem:[%s3 + $0x48] sm:$0xf]
    %v262 = vld [vmem:[%s3 + $0x4c] sm:$0xf]
    %v263 = vld [vmem:[%s3 + $0x50] sm:$0xf]
    %v264 = vld [vmem:[%s3 + $0x54] sm:$0xf]
    %v265 = vld [vmem:[%s3 + $0x58] sm:$0xf]
    %v266 = vld [vmem:[%s3 + $0x5c] sm:$0xf]
    %v267 = vld [vmem:[%s3 + $0x60] sm:$0xf]
    %v268 = vld [vmem:[%s3 + $0x64] sm:$0xf]
    %v269 = vld [vmem:[%s3 + $0x68] sm:$0xf]
    %v270 = vld [vmem:[%s3 + $0x6c] sm:$0xf]
    %v271 = vld [vmem:[%s3 + $0x70] sm:$0xf]
    %v272 = vld [vmem:[%s3 + $0x74] sm:$0xf]
    %v273 = vld [vmem:[%s3 + $0x78] sm:$0xf]
    %v274 = vld [vmem:[%s3 + $0x7c] sm:$0xf]
    %v275 = vld [vmem:[%s4] sm:$0xff]
    %v276 = vld [vmem:[%s4 + $0x8] sm:$0xff]
    %v277 = vld [vmem:[%s4 + $0x10] sm:$0xff]
    %v278 = vld [vmem:[%s4 + $0x18] sm:$0xff]
    %v279 = vld [vmem:[%s4 + $0x20] sm:$0xff]
    %v280 = vld [vmem:[%s4 + $0x28] sm:$0xff]
    %v281 = vld [vmem:[%s4 + $0x30] sm:$0xff]
    %v282 = vld [vmem:[%s4 + $0x38] sm:$0xff]
    %v283 = vld [vmem:[%s4 + $0x40] sm:$0xff]
    %v284 = vld [vmem:[%s4 + $0x48] sm:$0xff]
    %v285 = vld [vmem:[%s4 + $0x50] sm:$0xff]
    %v286 = vld [vmem:[%s4 + $0x58] sm:$0xff]
    %v287 = vld [vmem:[%s4 + $0x60] sm:$0xff]
    %v288 = vld [vmem:[%s4 + $0x68] sm:$0xff]
    %v289 = vld [vmem:[%s4 + $0x70] sm:$0xff]
    %v290 = vld [vmem:[%s4 + $0x78] sm:$0xff]
    %v291 = vld [vmem:[%s4 + $0x80] sm:$0xff]
    %v292 = vld [vmem:[%s4 + $0x88] sm:$0xff]
    %v293 = vld [vmem:[%s4 + $0x90] sm:$0xff]
    %v294 = vld [vmem:[%s4 + $0x98] sm:$0xff]
    %v295 = vld [vmem:[%s4 + $0xa0] sm:$0xff]
    %v296 = vld [vmem:[%s4 + $0xa8] sm:$0xff]
    %v297 = vld [vmem:[%s4 + $0xb0] sm:$0xff]
    %v298 = vld [vmem:[%s4 + $0xb8] sm:$0xff]
    %v299 = vld [vmem:[%s4 + $0xc0] sm:$0xff]
    %v300 = vld [vmem:[%s4 + $0xc8] sm:$0xff]
    %v301 = vld [vmem:[%s4 + $0xd0] sm:$0xff]
    %v302 = vld [vmem:[%s4 + $0xd8] sm:$0xff]
    %v303 = vld [vmem:[%s4 + $0xe0] sm:$0xff]
    %v304 = vld [vmem:[%s4 + $0xe8] sm:$0xff]
    %v305 = vld [vmem:[%s4 + $0xf0] sm:$0xff]
    %v306 = vld [vmem:[%s4 + $0xf8] sm:$0xff]
    %308 = vset.pattern.permute.xlu0 0
    %309 = vperm.xlu0 %308, %v275
    %v310 = vpop.permute.xlu0 %309
    %313 = vset.pattern.permute.xlu0 0
    %314 = vperm.xlu0 %313, %v276
    %v315 = vpop.permute.xlu0 %314
    %318 = vset.pattern.permute.xlu0 0
    %319 = vperm.xlu0 %318, %v277
    %v320 = vpop.permute.xlu0 %319
    %323 = vset.pattern.permute.xlu0 0
    %324 = vperm.xlu0 %323, %v278
    %v325 = vpop.permute.xlu0 %324
    %328 = vset.pattern.permute.xlu0 0
    %329 = vperm.xlu0 %328, %v279
    %v330 = vpop.permute.xlu0 %329
    %333 = vset.pattern.permute.xlu0 0
    %334 = vperm.xlu0 %333, %v280
    %v335 = vpop.permute.xlu0 %334
    %338 = vset.pattern.permute.xlu0 0
    %339 = vperm.xlu0 %338, %v281
    %v340 = vpop.permute.xlu0 %339
    %343 = vset.pattern.permute.xlu0 0
    %344 = vperm.xlu0 %343, %v282
    %v345 = vpop.permute.xlu0 %344
    %348 = vset.pattern.permute.xlu0 0
    %349 = vperm.xlu0 %348, %v283
    %v350 = vpop.permute.xlu0 %349
    %353 = vset.pattern.permute.xlu0 0
    %354 = vperm.xlu0 %353, %v284
    %v355 = vpop.permute.xlu0 %354
    %358 = vset.pattern.permute.xlu0 0
    %359 = vperm.xlu0 %358, %v285
    %v360 = vpop.permute.xlu0 %359
    %363 = vset.pattern.permute.xlu0 0
    %364 = vperm.xlu0 %363, %v286
    %v365 = vpop.permute.xlu0 %364
    %368 = vset.pattern.permute.xlu0 0
    %369 = vperm.xlu0 %368, %v287
    %v370 = vpop.permute.xlu0 %369
    %373 = vset.pattern.permute.xlu0 0
    %374 = vperm.xlu0 %373, %v288
    %v375 = vpop.permute.xlu0 %374
    %378 = vset.pattern.permute.xlu0 0
    %379 = vperm.xlu0 %378, %v289
    %v380 = vpop.permute.xlu0 %379
    %383 = vset.pattern.permute.xlu0 0
    %384 = vperm.xlu0 %383, %v290
    %v385 = vpop.permute.xlu0 %384
    %388 = vset.pattern.permute.xlu0 0
    %389 = vperm.xlu0 %388, %v291
    %v390 = vpop.permute.xlu0 %389
    %393 = vset.pattern.permute.xlu0 0
    %394 = vperm.xlu0 %393, %v292
    %v395 = vpop.permute.xlu0 %394
    %398 = vset.pattern.permute.xlu0 0
    %399 = vperm.xlu0 %398, %v293
    %v400 = vpop.permute.xlu0 %399
    %403 = vset.pattern.permute.xlu0 0
    %404 = vperm.xlu0 %403, %v294
    %v405 = vpop.permute.xlu0 %404
    %408 = vset.pattern.permute.xlu0 0
    %409 = vperm.xlu0 %408, %v295
    %v410 = vpop.permute.xlu0 %409
    %413 = vset.pattern.permute.xlu0 0
    %414 = vperm.xlu0 %413, %v296
    %v415 = vpop.permute.xlu0 %414
    %418 = vset.pattern.permute.xlu0 0
    %419 = vperm.xlu0 %418, %v297
    %v420 = vpop.permute.xlu0 %419
    %423 = vset.pattern.permute.xlu0 0
    %424 = vperm.xlu0 %423, %v298
    %v425 = vpop.permute.xlu0 %424
    %428 = vset.pattern.permute.xlu0 0
    %429 = vperm.xlu0 %428, %v299
    %v430 = vpop.permute.xlu0 %429
    %433 = vset.pattern.permute.xlu0 0
    %434 = vperm.xlu0 %433, %v300
    %v435 = vpop.permute.xlu0 %434
    %438 = vset.pattern.permute.xlu0 0
    %439 = vperm.xlu0 %438, %v301
    %v440 = vpop.permute.xlu0 %439
    %443 = vset.pattern.permute.xlu0 0
    %444 = vperm.xlu0 %443, %v302
    %v445 = vpop.permute.xlu0 %444
    %448 = vset.pattern.permute.xlu0 0
    %449 = vperm.xlu0 %448, %v303
    %v450 = vpop.permute.xlu0 %449
    %453 = vset.pattern.permute.xlu0 0
    %454 = vperm.xlu0 %453, %v304
    %v455 = vpop.permute.xlu0 %454
    %458 = vset.pattern.permute.xlu0 0
    %459 = vperm.xlu0 %458, %v305
    %v460 = vpop.permute.xlu0 %459
    %463 = vset.pattern.permute.xlu0 0
    %464 = vperm.xlu0 %463, %v306
    %v465 = vpop.permute.xlu0 %464
    %v499 = vunpack.c.l.b16 %v243
    %v500 = vunpack.c.l.b16 %v244
    %v501 = vunpack.c.l.b16 %v245
    %v502 = vunpack.c.l.b16 %v246
    %v503 = vunpack.c.l.b16 %v247
    %v504 = vunpack.c.l.b16 %v248
    %v505 = vunpack.c.l.b16 %v249
    %v506 = vunpack.c.l.b16 %v250
    %v507 = vunpack.c.l.b16 %v251
    %v508 = vunpack.c.l.b16 %v252
    %v509 = vunpack.c.l.b16 %v253
    %v510 = vunpack.c.l.b16 %v254
    %v511 = vunpack.c.l.b16 %v255
    %v512 = vunpack.c.l.b16 %v256
    %v513 = vunpack.c.l.b16 %v257
    %v514 = vunpack.c.l.b16 %v258
    %v515 = vunpack.c.l.b16 %v259
    %v516 = vunpack.c.l.b16 %v260
    %v517 = vunpack.c.l.b16 %v261
    %v518 = vunpack.c.l.b16 %v262
    %v519 = vunpack.c.l.b16 %v263
    %v520 = vunpack.c.l.b16 %v264
    %v521 = vunpack.c.l.b16 %v265
    %v522 = vunpack.c.l.b16 %v266
    %v523 = vunpack.c.l.b16 %v267
    %v524 = vunpack.c.l.b16 %v268
    %v525 = vunpack.c.l.b16 %v269
    %v526 = vunpack.c.l.b16 %v270
    %v527 = vunpack.c.l.b16 %v271
    %v528 = vunpack.c.l.b16 %v272
    %v529 = vunpack.c.l.b16 %v273
    %v530 = vunpack.c.l.b16 %v274
    %v531 = vpack.c.b16 %v500, %v499
    %v532 = vpack.c.b16 %v502, %v501
    %v533 = vpack.c.b16 %v504, %v503
    %v534 = vpack.c.b16 %v506, %v505
    %v535 = vpack.c.b16 %v508, %v507
    %v536 = vpack.c.b16 %v510, %v509
    %v537 = vpack.c.b16 %v512, %v511
    %v538 = vpack.c.b16 %v514, %v513
    %v539 = vpack.c.b16 %v516, %v515
    %v540 = vpack.c.b16 %v518, %v517
    %v541 = vpack.c.b16 %v520, %v519
    %v542 = vpack.c.b16 %v522, %v521
    %v543 = vpack.c.b16 %v524, %v523
    %v544 = vpack.c.b16 %v526, %v525
    %v545 = vpack.c.b16 %v528, %v527
    %v546 = vpack.c.b16 %v530, %v529
    %vm547 = vcmask 523264
    %v549 = vsel %vm547, %v531, 0
    %v552 = vsel %vm547, %v532, 0
    %v555 = vsel %vm547, %v533, 0
    %v558 = vsel %vm547, %v534, 0
    %v561 = vsel %vm547, %v535, 0
    %v564 = vsel %vm547, %v536, 0
    %v567 = vsel %vm547, %v537, 0
    %v570 = vsel %vm547, %v538, 0
    %v573 = vsel %vm547, %v539, 0
    %v576 = vsel %vm547, %v540, 0
    %v579 = vsel %vm547, %v541, 0
    %v582 = vsel %vm547, %v542, 0
    %v585 = vsel %vm547, %v543, 0
    %v588 = vsel %vm547, %v544, 0
    %v591 = vsel %vm547, %v545, 0
    %v594 = vsel %vm547, %v546, 0
    %596 = vmatprep.subr.bf16.mxu0 %v236
    %597 = vmatpush1.bf16.msra.mxu0 %v235
    %598 = vmatprep.subr.bf16.mxu0 %v238
    %599 = vmatpush1.bf16.msra.mxu0 %v237
    %600 = vmatprep.subr.bf16.mxu0 %v240
    %601 = vmatpush1.bf16.msra.mxu0 %v239
    %602 = vmatprep.subr.bf16.mxu0 %v242
    %603 = vmatpush1.bf16.msra.mxu0 %v241
    %604 = vmatprep.subr.bf16.mxu0 0
    %605 = vmatpush1.bf16.msra.mxu0 0
    %606 = vmatprep.subr.bf16.mxu0 0
    %607 = vmatpush1.bf16.msra.mxu0 0
    %608 = vmatprep.subr.bf16.mxu0 0
    %609 = vmatpush1.bf16.msra.mxu0 0
    %610 = vmatprep.subr.bf16.mxu0 0
    %611 = vmatpush1.bf16.msra.mxu0 0
    %612 = vmatprep.subr.bf16.mxu0 0
    %613 = vmatpush1.bf16.msra.mxu0 0
    %614 = vmatprep.subr.bf16.mxu0 0
    %615 = vmatpush1.bf16.msra.mxu0 0
    %616 = vmatprep.subr.bf16.mxu0 0
    %617 = vmatpush1.bf16.msra.mxu0 0
    %618 = vmatprep.subr.bf16.mxu0 0
    %619 = vmatpush1.bf16.msra.mxu0 0
    %620 = vmatprep.subr.bf16.mxu0 0
    %621 = vmatpush1.bf16.msra.mxu0 0
    %622 = vmatprep.subr.bf16.mxu0 0
    %623 = vmatpush1.bf16.msra.mxu0 0
    %624 = vmatprep.subr.bf16.mxu0 0
    %625 = vmatpush1.bf16.msra.mxu0 0
    %626 = vmatprep.subr.bf16.mxu0 0
    %627 = vmatpush1.bf16.msra.mxu0 0
    %628 = vmatprep.mubr.bf16.mxu0 0
    %629 = vmatmul.mubr.bf16.gmra.mrb[0].mxu0 %v549
    %v630 = vpop.f32.mrb[0].mxu0
    %v631 = vadd.f32 %v310, %v630
    %v632 = vpop.f32.mrb[0].mxu0
    %v633 = vadd.f32 %v310, %v632
    %v634 = vpop.f32.mrb[0].mxu0
    %v635 = vadd.f32 %v315, %v634
    %v636 = vpop.f32.mrb[0].mxu0
    %v637 = vadd.f32 %v315, %v636
    %638 = vmatprep.mubr.bf16.mxu0 0
    %639 = vmatmul.mubr.bf16.gmra.mrb[0].mxu0 %v552
    %v640 = vpop.f32.mrb[0].mxu0
    %v641 = vadd.f32 %v320, %v640
    %v642 = vpop.f32.mrb[0].mxu0
    %v643 = vadd.f32 %v320, %v642
    %v644 = vpop.f32.mrb[0].mxu0
    %v645 = vadd.f32 %v325, %v644
    %v646 = vpop.f32.mrb[0].mxu0
    %v647 = vadd.f32 %v325, %v646
    %648 = vmatprep.mubr.bf16.mxu0 0
    %649 = vmatmul.mubr.bf16.gmra.mrb[0].mxu0 %v555
    %v650 = vpop.f32.mrb[0].mxu0
    %v651 = vadd.f32 %v330, %v650
    %v652 = vpop.f32.mrb[0].mxu0
    %v653 = vadd.f32 %v330, %v652
    %v654 = vpop.f32.mrb[0].mxu0
    %v655 = vadd.f32 %v335, %v654
    %v656 = vpop.f32.mrb[0].mxu0
    %v657 = vadd.f32 %v335, %v656
    %658 = vmatprep.mubr.bf16.mxu0 0
    %659 = vmatmul.mubr.bf16.gmra.mrb[0].mxu0 %v558
    %v660 = vpop.f32.mrb[0].mxu0
    %v661 = vadd.f32 %v340, %v660
    %v662 = vpop.f32.mrb[0].mxu0
    %v663 = vadd.f32 %v340, %v662
    %v664 = vpop.f32.mrb[0].mxu0
    %v665 = vadd.f32 %v345, %v664
    %v666 = vpop.f32.mrb[0].mxu0
    %v667 = vadd.f32 %v345, %v666
    %668 = vmatprep.mubr.bf16.mxu0 0
    %669 = vmatmul.mubr.bf16.gmra.mrb[0].mxu0 %v561
    %v670 = vpop.f32.mrb[0].mxu0
    %v671 = vadd.f32 %v350, %v670
    %v672 = vpop.f32.mrb[0].mxu0
    %v673 = vadd.f32 %v350, %v672
    %v674 = vpop.f32.mrb[0].mxu0
    %v675 = vadd.f32 %v355, %v674
    %v676 = vpop.f32.mrb[0].mxu0
    %v677 = vadd.f32 %v355, %v676
    %678 = vmatprep.mubr.bf16.mxu0 0
    %679 = vmatmul.mubr.bf16.gmra.mrb[0].mxu0 %v564
    %v680 = vpop.f32.mrb[0].mxu0
    %v681 = vadd.f32 %v360, %v680
    %v682 = vpop.f32.mrb[0].mxu0
    %v683 = vadd.f32 %v360, %v682
    %v684 = vpop.f32.mrb[0].mxu0
    %v685 = vadd.f32 %v365, %v684
    %v686 = vpop.f32.mrb[0].mxu0
    %v687 = vadd.f32 %v365, %v686
    %688 = vmatprep.mubr.bf16.mxu0 0
    %689 = vmatmul.mubr.bf16.gmra.mrb[0].mxu0 %v567
    %v690 = vpop.f32.mrb[0].mxu0
    %v691 = vadd.f32 %v370, %v690
    %v692 = vpop.f32.mrb[0].mxu0
    %v693 = vadd.f32 %v370, %v692
    %v694 = vpop.f32.mrb[0].mxu0
    %v695 = vadd.f32 %v375, %v694
    %v696 = vpop.f32.mrb[0].mxu0
    %v697 = vadd.f32 %v375, %v696
    %698 = vmatprep.mubr.bf16.mxu0 0
    %699 = vmatmul.mubr.bf16.gmra.mrb[0].mxu0 %v570
    %v700 = vpop.f32.mrb[0].mxu0
    %v701 = vadd.f32 %v380, %v700
    %v702 = vpop.f32.mrb[0].mxu0
    %v703 = vadd.f32 %v380, %v702
    %v704 = vpop.f32.mrb[0].mxu0
    %v705 = vadd.f32 %v385, %v704
    %v706 = vpop.f32.mrb[0].mxu0
    %v707 = vadd.f32 %v385, %v706
    %708 = vmatprep.mubr.bf16.mxu0 0
    %709 = vmatmul.mubr.bf16.gmra.mrb[0].mxu0 %v573
    %v710 = vpop.f32.mrb[0].mxu0
    %v711 = vadd.f32 %v390, %v710
    %v712 = vpop.f32.mrb[0].mxu0
    %v713 = vadd.f32 %v390, %v712
    %v714 = vpop.f32.mrb[0].mxu0
    %v715 = vadd.f32 %v395, %v714
    %v716 = vpop.f32.mrb[0].mxu0
    %v717 = vadd.f32 %v395, %v716
    %718 = vmatprep.mubr.bf16.mxu0 0
    %719 = vmatmul.mubr.bf16.gmra.mrb[0].mxu0 %v576
    %v720 = vpop.f32.mrb[0].mxu0
    %v721 = vadd.f32 %v400, %v720
    %v722 = vpop.f32.mrb[0].mxu0
    %v723 = vadd.f32 %v400, %v722
    %v724 = vpop.f32.mrb[0].mxu0
    %v725 = vadd.f32 %v405, %v724
    %v726 = vpop.f32.mrb[0].mxu0
    %v727 = vadd.f32 %v405, %v726
    %728 = vmatprep.mubr.bf16.mxu0 0
    %729 = vmatmul.mubr.bf16.gmra.mrb[0].mxu0 %v579
    %v730 = vpop.f32.mrb[0].mxu0
    %v731 = vadd.f32 %v410, %v730
    %v732 = vpop.f32.mrb[0].mxu0
    %v733 = vadd.f32 %v410, %v732
    %v734 = vpop.f32.mrb[0].mxu0
    %v735 = vadd.f32 %v415, %v734
    %v736 = vpop.f32.mrb[0].mxu0
    %v737 = vadd.f32 %v415, %v736
    %738 = vmatprep.mubr.bf16.mxu0 0
    %739 = vmatmul.mubr.bf16.gmra.mrb[0].mxu0 %v582
    %v740 = vpop.f32.mrb[0].mxu0
    %v741 = vadd.f32 %v420, %v740
    %v742 = vpop.f32.mrb[0].mxu0
    %v743 = vadd.f32 %v420, %v742
    %v744 = vpop.f32.mrb[0].mxu0
    %v745 = vadd.f32 %v425, %v744
    %v746 = vpop.f32.mrb[0].mxu0
    %v747 = vadd.f32 %v425, %v746
    %748 = vmatprep.mubr.bf16.mxu0 0
    %749 = vmatmul.mubr.bf16.gmra.mrb[0].mxu0 %v585
    %v750 = vpop.f32.mrb[0].mxu0
    %v751 = vadd.f32 %v430, %v750
    %v752 = vpop.f32.mrb[0].mxu0
    %v753 = vadd.f32 %v430, %v752
    %v754 = vpop.f32.mrb[0].mxu0
    %v755 = vadd.f32 %v435, %v754
    %v756 = vpop.f32.mrb[0].mxu0
    %v757 = vadd.f32 %v435, %v756
    %758 = vmatprep.mubr.bf16.mxu0 0
    %759 = vmatmul.mubr.bf16.gmra.mrb[0].mxu0 %v588
    %v760 = vpop.f32.mrb[0].mxu0
    %v761 = vadd.f32 %v440, %v760
    %v762 = vpop.f32.mrb[0].mxu0
    %v763 = vadd.f32 %v440, %v762
    %v764 = vpop.f32.mrb[0].mxu0
    %v765 = vadd.f32 %v445, %v764
    %v766 = vpop.f32.mrb[0].mxu0
    %v767 = vadd.f32 %v445, %v766
    %768 = vmatprep.mubr.bf16.mxu0 0
    %769 = vmatmul.mubr.bf16.gmra.mrb[0].mxu0 %v591
    %v770 = vpop.f32.mrb[0].mxu0
    %v771 = vadd.f32 %v450, %v770
    %v772 = vpop.f32.mrb[0].mxu0
    %v773 = vadd.f32 %v450, %v772
    %v774 = vpop.f32.mrb[0].mxu0
    %v775 = vadd.f32 %v455, %v774
    %v776 = vpop.f32.mrb[0].mxu0
    %v777 = vadd.f32 %v455, %v776
    %778 = vmatprep.mubr.bf16.mxu0 0
    %779 = vmatmul.mubr.bf16.gmra.mrb[0].mxu0 %v594
    %v780 = vpop.f32.mrb[0].mxu0
    %v781 = vadd.f32 %v460, %v780
    %v782 = vpop.f32.mrb[0].mxu0
    %v783 = vadd.f32 %v460, %v782
    %v784 = vpop.f32.mrb[0].mxu0
    %v785 = vadd.f32 %v465, %v784
    %v786 = vpop.f32.mrb[0].mxu0
    %v787 = vadd.f32 %v465, %v786
    %788 = vdwg.mxu0
    %v789 = vadd.f32 %v631, %v635
    %v790 = vadd.f32 %v789, %v641
    %v791 = vadd.f32 %v790, %v645
    %v792 = vadd.f32 %v791, %v651
    %v793 = vadd.f32 %v792, %v655
    %v794 = vadd.f32 %v793, %v661
    %v795 = vadd.f32 %v794, %v665
    %v796 = vadd.f32 %v795, %v671
    %v797 = vadd.f32 %v796, %v675
    %v798 = vadd.f32 %v797, %v681
    %v799 = vadd.f32 %v798, %v685
    %v800 = vadd.f32 %v799, %v691
    %v801 = vadd.f32 %v800, %v695
    %v802 = vadd.f32 %v801, %v701
    %v803 = vadd.f32 %v802, %v705
    %v804 = vadd.f32 %v803, %v711
    %v805 = vadd.f32 %v804, %v715
    %v806 = vadd.f32 %v805, %v721
    %v807 = vadd.f32 %v806, %v725
    %v808 = vadd.f32 %v807, %v731
    %v809 = vadd.f32 %v808, %v735
    %v810 = vadd.f32 %v809, %v741
    %v811 = vadd.f32 %v810, %v745
    %v812 = vadd.f32 %v811, %v751
    %v813 = vadd.f32 %v812, %v755
    %v814 = vadd.f32 %v813, %v761
    %v815 = vadd.f32 %v814, %v765
    %v816 = vadd.f32 %v815, %v771
    %v817 = vadd.f32 %v816, %v775
    %v818 = vadd.f32 %v817, %v781
    %v819 = vadd.f32 %v818, %v785
    %v820 = vrot.slane %v819, 4
    %v821 = vadd.f32 %v819, %v820
    %v822 = vrot.slane %v821, 2
    %v823 = vadd.f32 %v821, %v822
    %v824 = vrot.slane %v823, 1
    %v825 = vadd.f32 %v823, %v824
    %v826 = vadd.f32 %v633, %v637
    %v827 = vadd.f32 %v826, %v643
    %v828 = vadd.f32 %v827, %v647
    %v829 = vadd.f32 %v828, %v653
    %v830 = vadd.f32 %v829, %v657
    %v831 = vadd.f32 %v830, %v663
    %v832 = vadd.f32 %v831, %v667
    %v833 = vadd.f32 %v832, %v673
    %v834 = vadd.f32 %v833, %v677
    %v835 = vadd.f32 %v834, %v683
    %v836 = vadd.f32 %v835, %v687
    %v837 = vadd.f32 %v836, %v693
    %v838 = vadd.f32 %v837, %v697
    %v839 = vadd.f32 %v838, %v703
    %v840 = vadd.f32 %v839, %v707
    %v841 = vadd.f32 %v840, %v713
    %v842 = vadd.f32 %v841, %v717
    %v843 = vadd.f32 %v842, %v723
    %v844 = vadd.f32 %v843, %v727
    %v845 = vadd.f32 %v844, %v733
    %v846 = vadd.f32 %v845, %v737
    %v847 = vadd.f32 %v846, %v743
    %v848 = vadd.f32 %v847, %v747
    %v849 = vadd.f32 %v848, %v753
    %v850 = vadd.f32 %v849, %v757
    %v851 = vadd.f32 %v850, %v763
    %v852 = vadd.f32 %v851, %v767
    %v853 = vadd.f32 %v852, %v773
    %v854 = vadd.f32 %v853, %v777
    %v855 = vadd.f32 %v854, %v783
    %v856 = vadd.f32 %v855, %v787
    %v857 = vrot.slane %v856, 4
    %v858 = vadd.f32 %v856, %v857
    %v859 = vrot.slane %v858, 2
    %v860 = vadd.f32 %v858, %v859
    %v861 = vrot.slane %v860, 1
    %v862 = vadd.f32 %v860, %v861
    %v863 = vmul.f32 %v631, %v631
    %v864 = vmul.f32 %v633, %v633
    %v865 = vmul.f32 %v635, %v635
    %v866 = vmul.f32 %v637, %v637
    %v867 = vmul.f32 %v641, %v641
    %v868 = vmul.f32 %v643, %v643
    %v869 = vmul.f32 %v645, %v645
    %v870 = vmul.f32 %v647, %v647
    %v871 = vmul.f32 %v651, %v651
    %v872 = vmul.f32 %v653, %v653
    %v873 = vmul.f32 %v655, %v655
    %v874 = vmul.f32 %v657, %v657
    %v875 = vmul.f32 %v661, %v661
    %v876 = vmul.f32 %v663, %v663
    %v877 = vmul.f32 %v665, %v665
    %v878 = vmul.f32 %v667, %v667
    %v879 = vmul.f32 %v671, %v671
    %v880 = vmul.f32 %v673, %v673
    %v881 = vmul.f32 %v675, %v675
    %v882 = vmul.f32 %v677, %v677
    %v883 = vmul.f32 %v681, %v681
    %v884 = vmul.f32 %v683, %v683
    %v885 = vmul.f32 %v685, %v685
    %v886 = vmul.f32 %v687, %v687
    %v887 = vmul.f32 %v691, %v691
    %v888 = vmul.f32 %v693, %v693
    %v889 = vmul.f32 %v695, %v695
    %v890 = vmul.f32 %v697, %v697
    %v891 = vmul.f32 %v701, %v701
    %v892 = vmul.f32 %v703, %v703
    %v893 = vmul.f32 %v705, %v705
    %v894 = vmul.f32 %v707, %v707
    %v895 = vmul.f32 %v711, %v711
    %v896 = vmul.f32 %v713, %v713
    %v897 = vmul.f32 %v715, %v715
    %v898 = vmul.f32 %v717, %v717
    %v899 = vmul.f32 %v721, %v721
    %v900 = vmul.f32 %v723, %v723
    %v901 = vmul.f32 %v725, %v725
    %v902 = vmul.f32 %v727, %v727
    %v903 = vmul.f32 %v731, %v731
    %v904 = vmul.f32 %v733, %v733
    %v905 = vmul.f32 %v735, %v735
    %v906 = vmul.f32 %v737, %v737
    %v907 = vmul.f32 %v741, %v741
    %v908 = vmul.f32 %v743, %v743
    %v909 = vmul.f32 %v745, %v745
    %v910 = vmul.f32 %v747, %v747
    %v911 = vmul.f32 %v751, %v751
    %v912 = vmul.f32 %v753, %v753
    %v913 = vmul.f32 %v755, %v755
    %v914 = vmul.f32 %v757, %v757
    %v915 = vmul.f32 %v761, %v761
    %v916 = vmul.f32 %v763, %v763
    %v917 = vmul.f32 %v765, %v765
    %v918 = vmul.f32 %v767, %v767
    %v919 = vmul.f32 %v771, %v771
    %v920 = vmul.f32 %v773, %v773
    %v921 = vmul.f32 %v775, %v775
    %v922 = vmul.f32 %v777, %v777
    %v923 = vmul.f32 %v781, %v781
    %v924 = vmul.f32 %v783, %v783
    %v925 = vmul.f32 %v785, %v785
    %v926 = vmul.f32 %v787, %v787
    %v927 = vadd.f32 %v863, %v865
    %v928 = vadd.f32 %v927, %v867
    %v929 = vadd.f32 %v928, %v869
    %v930 = vadd.f32 %v929, %v871
    %v931 = vadd.f32 %v930, %v873
    %v932 = vadd.f32 %v931, %v875
    %v933 = vadd.f32 %v932, %v877
    %v934 = vadd.f32 %v933, %v879
    %v935 = vadd.f32 %v934, %v881
    %v936 = vadd.f32 %v935, %v883
    %v937 = vadd.f32 %v936, %v885
    %v938 = vadd.f32 %v937, %v887
    %v939 = vadd.f32 %v938, %v889
    %v940 = vadd.f32 %v939, %v891
    %v941 = vadd.f32 %v940, %v893
    %v942 = vadd.f32 %v941, %v895
    %v943 = vadd.f32 %v942, %v897
    %v944 = vadd.f32 %v943, %v899
    %v945 = vadd.f32 %v944, %v901
    %v946 = vadd.f32 %v945, %v903
    %v947 = vadd.f32 %v946, %v905
    %v948 = vadd.f32 %v947, %v907
    %v949 = vadd.f32 %v948, %v909
    %v950 = vadd.f32 %v949, %v911
    %v951 = vadd.f32 %v950, %v913
    %v952 = vadd.f32 %v951, %v915
    %v953 = vadd.f32 %v952, %v917
    %v954 = vadd.f32 %v953, %v919
    %v955 = vadd.f32 %v954, %v921
    %v956 = vadd.f32 %v955, %v923
    %v957 = vadd.f32 %v956, %v925
    %v958 = vrot.slane %v957, 4
    %v959 = vadd.f32 %v957, %v958
    %v960 = vrot.slane %v959, 2
    %v961 = vadd.f32 %v959, %v960
    %v962 = vrot.slane %v961, 1
    %v963 = vadd.f32 %v961, %v962
    %v964 = vadd.f32 %v864, %v866
    %v965 = vadd.f32 %v964, %v868
    %v966 = vadd.f32 %v965, %v870
    %v967 = vadd.f32 %v966, %v872
    %v968 = vadd.f32 %v967, %v874
    %v969 = vadd.f32 %v968, %v876
    %v970 = vadd.f32 %v969, %v878
    %v971 = vadd.f32 %v970, %v880
    %v972 = vadd.f32 %v971, %v882
    %v973 = vadd.f32 %v972, %v884
    %v974 = vadd.f32 %v973, %v886
    %v975 = vadd.f32 %v974, %v888
    %v976 = vadd.f32 %v975, %v890
    %v977 = vadd.f32 %v976, %v892
    %v978 = vadd.f32 %v977, %v894
    %v979 = vadd.f32 %v978, %v896
    %v980 = vadd.f32 %v979, %v898
    %v981 = vadd.f32 %v980, %v900
    %v982 = vadd.f32 %v981, %v902
    %v983 = vadd.f32 %v982, %v904
    %v984 = vadd.f32 %v983, %v906
    %v985 = vadd.f32 %v984, %v908
    %v986 = vadd.f32 %v985, %v910
    %v987 = vadd.f32 %v986, %v912
    %v988 = vadd.f32 %v987, %v914
    %v989 = vadd.f32 %v988, %v916
    %v990 = vadd.f32 %v989, %v918
    %v991 = vadd.f32 %v990, %v920
    %v992 = vadd.f32 %v991, %v922
    %v993 = vadd.f32 %v992, %v924
    %v994 = vadd.f32 %v993, %v926
    %v995 = vrot.slane %v994, 4
    %v996 = vadd.f32 %v994, %v995
    %v997 = vrot.slane %v996, 2
    %v998 = vadd.f32 %v996, %v997
    %v999 = vrot.slane %v998, 1
    %v1000 = vadd.f32 %v998, %v999
    %v1001 = vmul.f32 %v825, 0.00390625
    %v1002 = vmul.f32 %v862, 0.00390625
    %v1003 = vmul.f32 %v963, 0.00390625
    %v1004 = vmul.f32 %v1000, 0.00390625
    %v1005 = vmul.f32 %v1001, %v1001
    %v1006 = vmul.f32 %v1002, %v1002
    %v1007 = vsub.f32 %v1003, %v1005
    %v1008 = vsub.f32 %v1004, %v1006
    %v1009 = vmax.f32 %v1007, 0.0
    %v1010 = vmax.f32 %v1008, 0.0
    %v1011 = vadd.f32 %v1009, 1e-05
    %v1012 = vadd.f32 %v1010, 1e-05
    %v1013 = vrsqrt.pop %v1011
    %v1014 = vrsqrt.pop %v1012
    %v1015 = vsub.f32 %v631, %v1001
    %v1016 = vsub.f32 %v633, %v1002
    %v1017 = vsub.f32 %v635, %v1001
    %v1018 = vsub.f32 %v637, %v1002
    %v1019 = vsub.f32 %v641, %v1001
    %v1020 = vsub.f32 %v643, %v1002
    %v1021 = vsub.f32 %v645, %v1001
    %v1022 = vsub.f32 %v647, %v1002
    %v1023 = vsub.f32 %v651, %v1001
    %v1024 = vsub.f32 %v653, %v1002
    %v1025 = vsub.f32 %v655, %v1001
    %v1026 = vsub.f32 %v657, %v1002
    %v1027 = vsub.f32 %v661, %v1001
    %v1028 = vsub.f32 %v663, %v1002
    %v1029 = vsub.f32 %v665, %v1001
    %v1030 = vsub.f32 %v667, %v1002
    %v1031 = vsub.f32 %v671, %v1001
    %v1032 = vsub.f32 %v673, %v1002
    %v1033 = vsub.f32 %v675, %v1001
    %v1034 = vsub.f32 %v677, %v1002
    %v1035 = vsub.f32 %v681, %v1001
    %v1036 = vsub.f32 %v683, %v1002
    %v1037 = vsub.f32 %v685, %v1001
    %v1038 = vsub.f32 %v687, %v1002
    %v1039 = vsub.f32 %v691, %v1001
    %v1040 = vsub.f32 %v693, %v1002
    %v1041 = vsub.f32 %v695, %v1001
    %v1042 = vsub.f32 %v697, %v1002
    %v1043 = vsub.f32 %v701, %v1001
    %v1044 = vsub.f32 %v703, %v1002
    %v1045 = vsub.f32 %v705, %v1001
    %v1046 = vsub.f32 %v707, %v1002
    %v1047 = vsub.f32 %v711, %v1001
    %v1048 = vsub.f32 %v713, %v1002
    %v1049 = vsub.f32 %v715, %v1001
    %v1050 = vsub.f32 %v717, %v1002
    %v1051 = vsub.f32 %v721, %v1001
    %v1052 = vsub.f32 %v723, %v1002
    %v1053 = vsub.f32 %v725, %v1001
    %v1054 = vsub.f32 %v727, %v1002
    %v1055 = vsub.f32 %v731, %v1001
    %v1056 = vsub.f32 %v733, %v1002
    %v1057 = vsub.f32 %v735, %v1001
    %v1058 = vsub.f32 %v737, %v1002
    %v1059 = vsub.f32 %v741, %v1001
    %v1060 = vsub.f32 %v743, %v1002
    %v1061 = vsub.f32 %v745, %v1001
    %v1062 = vsub.f32 %v747, %v1002
    %v1063 = vsub.f32 %v751, %v1001
    %v1064 = vsub.f32 %v753, %v1002
    %v1065 = vsub.f32 %v755, %v1001
    %v1066 = vsub.f32 %v757, %v1002
    %v1067 = vsub.f32 %v761, %v1001
    %v1068 = vsub.f32 %v763, %v1002
    %v1069 = vsub.f32 %v765, %v1001
    %v1070 = vsub.f32 %v767, %v1002
    %v1071 = vsub.f32 %v771, %v1001
    %v1072 = vsub.f32 %v773, %v1002
    %v1073 = vsub.f32 %v775, %v1001
    %v1074 = vsub.f32 %v777, %v1002
    %v1075 = vsub.f32 %v781, %v1001
    %v1076 = vsub.f32 %v783, %v1002
    %v1077 = vsub.f32 %v785, %v1001
    %v1078 = vsub.f32 %v787, %v1002
    %v1079 = vmul.f32 %v1015, %v1013
    %v1080 = vmul.f32 %v1016, %v1014
    %v1081 = vmul.f32 %v1017, %v1013
    %v1082 = vmul.f32 %v1018, %v1014
    %v1083 = vmul.f32 %v1019, %v1013
    %v1084 = vmul.f32 %v1020, %v1014
    %v1085 = vmul.f32 %v1021, %v1013
    %v1086 = vmul.f32 %v1022, %v1014
    %v1087 = vmul.f32 %v1023, %v1013
    %v1088 = vmul.f32 %v1024, %v1014
    %v1089 = vmul.f32 %v1025, %v1013
    %v1090 = vmul.f32 %v1026, %v1014
    %v1091 = vmul.f32 %v1027, %v1013
    %v1092 = vmul.f32 %v1028, %v1014
    %v1093 = vmul.f32 %v1029, %v1013
    %v1094 = vmul.f32 %v1030, %v1014
    %v1095 = vmul.f32 %v1031, %v1013
    %v1096 = vmul.f32 %v1032, %v1014
    %v1097 = vmul.f32 %v1033, %v1013
    %v1098 = vmul.f32 %v1034, %v1014
    %v1099 = vmul.f32 %v1035, %v1013
    %v1100 = vmul.f32 %v1036, %v1014
    %v1101 = vmul.f32 %v1037, %v1013
    %v1102 = vmul.f32 %v1038, %v1014
    %v1103 = vmul.f32 %v1039, %v1013
    %v1104 = vmul.f32 %v1040, %v1014
    %v1105 = vmul.f32 %v1041, %v1013
    %v1106 = vmul.f32 %v1042, %v1014
    %v1107 = vmul.f32 %v1043, %v1013
    %v1108 = vmul.f32 %v1044, %v1014
    %v1109 = vmul.f32 %v1045, %v1013
    %v1110 = vmul.f32 %v1046, %v1014
    %v1111 = vmul.f32 %v1047, %v1013
    %v1112 = vmul.f32 %v1048, %v1014
    %v1113 = vmul.f32 %v1049, %v1013
    %v1114 = vmul.f32 %v1050, %v1014
    %v1115 = vmul.f32 %v1051, %v1013
    %v1116 = vmul.f32 %v1052, %v1014
    %v1117 = vmul.f32 %v1053, %v1013
    %v1118 = vmul.f32 %v1054, %v1014
    %v1119 = vmul.f32 %v1055, %v1013
    %v1120 = vmul.f32 %v1056, %v1014
    %v1121 = vmul.f32 %v1057, %v1013
    %v1122 = vmul.f32 %v1058, %v1014
    %v1123 = vmul.f32 %v1059, %v1013
    %v1124 = vmul.f32 %v1060, %v1014
    %v1125 = vmul.f32 %v1061, %v1013
    %v1126 = vmul.f32 %v1062, %v1014
    %v1127 = vmul.f32 %v1063, %v1013
    %v1128 = vmul.f32 %v1064, %v1014
    %v1129 = vmul.f32 %v1065, %v1013
    %v1130 = vmul.f32 %v1066, %v1014
    %v1131 = vmul.f32 %v1067, %v1013
    %v1132 = vmul.f32 %v1068, %v1014
    %v1133 = vmul.f32 %v1069, %v1013
    %v1134 = vmul.f32 %v1070, %v1014
    %v1135 = vmul.f32 %v1071, %v1013
    %v1136 = vmul.f32 %v1072, %v1014
    %v1137 = vmul.f32 %v1073, %v1013
    %v1138 = vmul.f32 %v1074, %v1014
    %v1139 = vmul.f32 %v1075, %v1013
    %v1140 = vmul.f32 %v1076, %v1014
    %v1141 = vmul.f32 %v1077, %v1013
    %v1142 = vmul.f32 %v1078, %v1014
    %1143 = vset.pattern.permute.xlu0 1
    %1144 = vperm.xlu0 %1143, %v275
    %v1145 = vpop.permute.xlu0 %1144
    %1147 = vset.pattern.permute.xlu0 1
    %1148 = vperm.xlu0 %1147, %v276
    %v1149 = vpop.permute.xlu0 %1148
    %1151 = vset.pattern.permute.xlu0 1
    %1152 = vperm.xlu0 %1151, %v277
    %v1153 = vpop.permute.xlu0 %1152
    %1155 = vset.pattern.permute.xlu0 1
    %1156 = vperm.xlu0 %1155, %v278
    %v1157 = vpop.permute.xlu0 %1156
    %1159 = vset.pattern.permute.xlu0 1
    %1160 = vperm.xlu0 %1159, %v279
    %v1161 = vpop.permute.xlu0 %1160
    %1163 = vset.pattern.permute.xlu0 1
    %1164 = vperm.xlu0 %1163, %v280
    %v1165 = vpop.permute.xlu0 %1164
    %1167 = vset.pattern.permute.xlu0 1
    %1168 = vperm.xlu0 %1167, %v281
    %v1169 = vpop.permute.xlu0 %1168
    %1171 = vset.pattern.permute.xlu0 1
    %1172 = vperm.xlu0 %1171, %v282
    %v1173 = vpop.permute.xlu0 %1172
    %1175 = vset.pattern.permute.xlu0 1
    %1176 = vperm.xlu0 %1175, %v283
    %v1177 = vpop.permute.xlu0 %1176
    %1179 = vset.pattern.permute.xlu0 1
    %1180 = vperm.xlu0 %1179, %v284
    %v1181 = vpop.permute.xlu0 %1180
    %1183 = vset.pattern.permute.xlu0 1
    %1184 = vperm.xlu0 %1183, %v285
    %v1185 = vpop.permute.xlu0 %1184
    %1187 = vset.pattern.permute.xlu0 1
    %1188 = vperm.xlu0 %1187, %v286
    %v1189 = vpop.permute.xlu0 %1188
    %1191 = vset.pattern.permute.xlu0 1
    %1192 = vperm.xlu0 %1191, %v287
    %v1193 = vpop.permute.xlu0 %1192
    %1195 = vset.pattern.permute.xlu0 1
    %1196 = vperm.xlu0 %1195, %v288
    %v1197 = vpop.permute.xlu0 %1196
    %1199 = vset.pattern.permute.xlu0 1
    %1200 = vperm.xlu0 %1199, %v289
    %v1201 = vpop.permute.xlu0 %1200
    %1203 = vset.pattern.permute.xlu0 1
    %1204 = vperm.xlu0 %1203, %v290
    %v1205 = vpop.permute.xlu0 %1204
    %1207 = vset.pattern.permute.xlu0 1
    %1208 = vperm.xlu0 %1207, %v291
    %v1209 = vpop.permute.xlu0 %1208
    %1211 = vset.pattern.permute.xlu0 1
    %1212 = vperm.xlu0 %1211, %v292
    %v1213 = vpop.permute.xlu0 %1212
    %1215 = vset.pattern.permute.xlu0 1
    %1216 = vperm.xlu0 %1215, %v293
    %v1217 = vpop.permute.xlu0 %1216
    %1219 = vset.pattern.permute.xlu0 1
    %1220 = vperm.xlu0 %1219, %v294
    %v1221 = vpop.permute.xlu0 %1220
    %1223 = vset.pattern.permute.xlu0 1
    %1224 = vperm.xlu0 %1223, %v295
    %v1225 = vpop.permute.xlu0 %1224
    %1227 = vset.pattern.permute.xlu0 1
    %1228 = vperm.xlu0 %1227, %v296
    %v1229 = vpop.permute.xlu0 %1228
    %1231 = vset.pattern.permute.xlu0 1
    %1232 = vperm.xlu0 %1231, %v297
    %v1233 = vpop.permute.xlu0 %1232
    %1235 = vset.pattern.permute.xlu0 1
    %1236 = vperm.xlu0 %1235, %v298
    %v1237 = vpop.permute.xlu0 %1236
    %1239 = vset.pattern.permute.xlu0 1
    %1240 = vperm.xlu0 %1239, %v299
    %v1241 = vpop.permute.xlu0 %1240
    %1243 = vset.pattern.permute.xlu0 1
    %1244 = vperm.xlu0 %1243, %v300
    %v1245 = vpop.permute.xlu0 %1244
    %1247 = vset.pattern.permute.xlu0 1
    %1248 = vperm.xlu0 %1247, %v301
    %v1249 = vpop.permute.xlu0 %1248
    %1251 = vset.pattern.permute.xlu0 1
    %1252 = vperm.xlu0 %1251, %v302
    %v1253 = vpop.permute.xlu0 %1252
    %1255 = vset.pattern.permute.xlu0 1
    %1256 = vperm.xlu0 %1255, %v303
    %v1257 = vpop.permute.xlu0 %1256
    %1259 = vset.pattern.permute.xlu0 1
    %1260 = vperm.xlu0 %1259, %v304
    %v1261 = vpop.permute.xlu0 %1260
    %1263 = vset.pattern.permute.xlu0 1
    %1264 = vperm.xlu0 %1263, %v305
    %v1265 = vpop.permute.xlu0 %1264
    %1267 = vset.pattern.permute.xlu0 1
    %1268 = vperm.xlu0 %1267, %v306
    %v1269 = vpop.permute.xlu0 %1268
    %v1271 = vmul.f32 %v1079, %v1145
    %v1272 = vmul.f32 %v1080, %v1145
    %v1273 = vmul.f32 %v1081, %v1149
    %v1274 = vmul.f32 %v1082, %v1149
    %v1275 = vmul.f32 %v1083, %v1153
    %v1276 = vmul.f32 %v1084, %v1153
    %v1277 = vmul.f32 %v1085, %v1157
    %v1278 = vmul.f32 %v1086, %v1157
    %v1279 = vmul.f32 %v1087, %v1161
    %v1280 = vmul.f32 %v1088, %v1161
    %v1281 = vmul.f32 %v1089, %v1165
    %v1282 = vmul.f32 %v1090, %v1165
    %v1283 = vmul.f32 %v1091, %v1169
    %v1284 = vmul.f32 %v1092, %v1169
    %v1285 = vmul.f32 %v1093, %v1173
    %v1286 = vmul.f32 %v1094, %v1173
    %v1287 = vmul.f32 %v1095, %v1177
    %v1288 = vmul.f32 %v1096, %v1177
    %v1289 = vmul.f32 %v1097, %v1181
    %v1290 = vmul.f32 %v1098, %v1181
    %v1291 = vmul.f32 %v1099, %v1185
    %v1292 = vmul.f32 %v1100, %v1185
    %v1293 = vmul.f32 %v1101, %v1189
    %v1294 = vmul.f32 %v1102, %v1189
    %v1295 = vmul.f32 %v1103, %v1193
    %v1296 = vmul.f32 %v1104, %v1193
    %v1297 = vmul.f32 %v1105, %v1197
    %v1298 = vmul.f32 %v1106, %v1197
    %v1299 = vmul.f32 %v1107, %v1201
    %v1300 = vmul.f32 %v1108, %v1201
    %v1301 = vmul.f32 %v1109, %v1205
    %v1302 = vmul.f32 %v1110, %v1205
    %v1303 = vmul.f32 %v1111, %v1209
    %v1304 = vmul.f32 %v1112, %v1209
    %v1305 = vmul.f32 %v1113, %v1213
    %v1306 = vmul.f32 %v1114, %v1213
    %v1307 = vmul.f32 %v1115, %v1217
    %v1308 = vmul.f32 %v1116, %v1217
    %v1309 = vmul.f32 %v1117, %v1221
    %v1310 = vmul.f32 %v1118, %v1221
    %v1311 = vmul.f32 %v1119, %v1225
    %v1312 = vmul.f32 %v1120, %v1225
    %v1313 = vmul.f32 %v1121, %v1229
    %v1314 = vmul.f32 %v1122, %v1229
    %v1315 = vmul.f32 %v1123, %v1233
    %v1316 = vmul.f32 %v1124, %v1233
    %v1317 = vmul.f32 %v1125, %v1237
    %v1318 = vmul.f32 %v1126, %v1237
    %v1319 = vmul.f32 %v1127, %v1241
    %v1320 = vmul.f32 %v1128, %v1241
    %v1321 = vmul.f32 %v1129, %v1245
    %v1322 = vmul.f32 %v1130, %v1245
    %v1323 = vmul.f32 %v1131, %v1249
    %v1324 = vmul.f32 %v1132, %v1249
    %v1325 = vmul.f32 %v1133, %v1253
    %v1326 = vmul.f32 %v1134, %v1253
    %v1327 = vmul.f32 %v1135, %v1257
    %v1328 = vmul.f32 %v1136, %v1257
    %v1329 = vmul.f32 %v1137, %v1261
    %v1330 = vmul.f32 %v1138, %v1261
    %v1331 = vmul.f32 %v1139, %v1265
    %v1332 = vmul.f32 %v1140, %v1265
    %v1333 = vmul.f32 %v1141, %v1269
    %v1334 = vmul.f32 %v1142, %v1269
    %1335 = vset.pattern.permute.xlu0 2
    %1336 = vperm.xlu0 %1335, %v275
    %v1337 = vpop.permute.xlu0 %1336
    %1339 = vset.pattern.permute.xlu0 2
    %1340 = vperm.xlu0 %1339, %v276
    %v1341 = vpop.permute.xlu0 %1340
    %1343 = vset.pattern.permute.xlu0 2
    %1344 = vperm.xlu0 %1343, %v277
    %v1345 = vpop.permute.xlu0 %1344
    %1347 = vset.pattern.permute.xlu0 2
    %1348 = vperm.xlu0 %1347, %v278
    %v1349 = vpop.permute.xlu0 %1348
    %1351 = vset.pattern.permute.xlu0 2
    %1352 = vperm.xlu0 %1351, %v279
    %v1353 = vpop.permute.xlu0 %1352
    %1355 = vset.pattern.permute.xlu0 2
    %1356 = vperm.xlu0 %1355, %v280
    %v1357 = vpop.permute.xlu0 %1356
    %1359 = vset.pattern.permute.xlu0 2
    %1360 = vperm.xlu0 %1359, %v281
    %v1361 = vpop.permute.xlu0 %1360
    %1363 = vset.pattern.permute.xlu0 2
    %1364 = vperm.xlu0 %1363, %v282
    %v1365 = vpop.permute.xlu0 %1364
    %1367 = vset.pattern.permute.xlu0 2
    %1368 = vperm.xlu0 %1367, %v283
    %v1369 = vpop.permute.xlu0 %1368
    %1371 = vset.pattern.permute.xlu0 2
    %1372 = vperm.xlu0 %1371, %v284
    %v1373 = vpop.permute.xlu0 %1372
    %1375 = vset.pattern.permute.xlu0 2
    %1376 = vperm.xlu0 %1375, %v285
    %v1377 = vpop.permute.xlu0 %1376
    %1379 = vset.pattern.permute.xlu0 2
    %1380 = vperm.xlu0 %1379, %v286
    %v1381 = vpop.permute.xlu0 %1380
    %1383 = vset.pattern.permute.xlu0 2
    %1384 = vperm.xlu0 %1383, %v287
    %v1385 = vpop.permute.xlu0 %1384
    %1387 = vset.pattern.permute.xlu0 2
    %1388 = vperm.xlu0 %1387, %v288
    %v1389 = vpop.permute.xlu0 %1388
    %1391 = vset.pattern.permute.xlu0 2
    %1392 = vperm.xlu0 %1391, %v289
    %v1393 = vpop.permute.xlu0 %1392
    %1395 = vset.pattern.permute.xlu0 2
    %1396 = vperm.xlu0 %1395, %v290
    %v1397 = vpop.permute.xlu0 %1396
    %1399 = vset.pattern.permute.xlu0 2
    %1400 = vperm.xlu0 %1399, %v291
    %v1401 = vpop.permute.xlu0 %1400
    %1403 = vset.pattern.permute.xlu0 2
    %1404 = vperm.xlu0 %1403, %v292
    %v1405 = vpop.permute.xlu0 %1404
    %1407 = vset.pattern.permute.xlu0 2
    %1408 = vperm.xlu0 %1407, %v293
    %v1409 = vpop.permute.xlu0 %1408
    %1411 = vset.pattern.permute.xlu0 2
    %1412 = vperm.xlu0 %1411, %v294
    %v1413 = vpop.permute.xlu0 %1412
    %1415 = vset.pattern.permute.xlu0 2
    %1416 = vperm.xlu0 %1415, %v295
    %v1417 = vpop.permute.xlu0 %1416
    %1419 = vset.pattern.permute.xlu0 2
    %1420 = vperm.xlu0 %1419, %v296
    %v1421 = vpop.permute.xlu0 %1420
    %1423 = vset.pattern.permute.xlu0 2
    %1424 = vperm.xlu0 %1423, %v297
    %v1425 = vpop.permute.xlu0 %1424
    %1427 = vset.pattern.permute.xlu0 2
    %1428 = vperm.xlu0 %1427, %v298
    %v1429 = vpop.permute.xlu0 %1428
    %1431 = vset.pattern.permute.xlu0 2
    %1432 = vperm.xlu0 %1431, %v299
    %v1433 = vpop.permute.xlu0 %1432
    %1435 = vset.pattern.permute.xlu0 2
    %1436 = vperm.xlu0 %1435, %v300
    %v1437 = vpop.permute.xlu0 %1436
    %1439 = vset.pattern.permute.xlu0 2
    %1440 = vperm.xlu0 %1439, %v301
    %v1441 = vpop.permute.xlu0 %1440
    %1443 = vset.pattern.permute.xlu0 2
    %1444 = vperm.xlu0 %1443, %v302
    %v1445 = vpop.permute.xlu0 %1444
    %1447 = vset.pattern.permute.xlu0 2
    %1448 = vperm.xlu0 %1447, %v303
    %v1449 = vpop.permute.xlu0 %1448
    %1451 = vset.pattern.permute.xlu0 2
    %1452 = vperm.xlu0 %1451, %v304
    %v1453 = vpop.permute.xlu0 %1452
    %1455 = vset.pattern.permute.xlu0 2
    %1456 = vperm.xlu0 %1455, %v305
    %v1457 = vpop.permute.xlu0 %1456
    %1459 = vset.pattern.permute.xlu0 2
    %1460 = vperm.xlu0 %1459, %v306
    %v1461 = vpop.permute.xlu0 %1460
    %v1463 = vadd.f32 %v1271, %v1337
    %v1464 = vadd.f32 %v1272, %v1337
    %v1465 = vadd.f32 %v1273, %v1341
    %v1466 = vadd.f32 %v1274, %v1341
    %v1467 = vadd.f32 %v1275, %v1345
    %v1468 = vadd.f32 %v1276, %v1345
    %v1469 = vadd.f32 %v1277, %v1349
    %v1470 = vadd.f32 %v1278, %v1349
    %v1471 = vadd.f32 %v1279, %v1353
    %v1472 = vadd.f32 %v1280, %v1353
    %v1473 = vadd.f32 %v1281, %v1357
    %v1474 = vadd.f32 %v1282, %v1357
    %v1475 = vadd.f32 %v1283, %v1361
    %v1476 = vadd.f32 %v1284, %v1361
    %v1477 = vadd.f32 %v1285, %v1365
    %v1478 = vadd.f32 %v1286, %v1365
    %v1479 = vadd.f32 %v1287, %v1369
    %v1480 = vadd.f32 %v1288, %v1369
    %v1481 = vadd.f32 %v1289, %v1373
    %v1482 = vadd.f32 %v1290, %v1373
    %v1483 = vadd.f32 %v1291, %v1377
    %v1484 = vadd.f32 %v1292, %v1377
    %v1485 = vadd.f32 %v1293, %v1381
    %v1486 = vadd.f32 %v1294, %v1381
    %v1487 = vadd.f32 %v1295, %v1385
    %v1488 = vadd.f32 %v1296, %v1385
    %v1489 = vadd.f32 %v1297, %v1389
    %v1490 = vadd.f32 %v1298, %v1389
    %v1491 = vadd.f32 %v1299, %v1393
    %v1492 = vadd.f32 %v1300, %v1393
    %v1493 = vadd.f32 %v1301, %v1397
    %v1494 = vadd.f32 %v1302, %v1397
    %v1495 = vadd.f32 %v1303, %v1401
    %v1496 = vadd.f32 %v1304, %v1401
    %v1497 = vadd.f32 %v1305, %v1405
    %v1498 = vadd.f32 %v1306, %v1405
    %v1499 = vadd.f32 %v1307, %v1409
    %v1500 = vadd.f32 %v1308, %v1409
    %v1501 = vadd.f32 %v1309, %v1413
    %v1502 = vadd.f32 %v1310, %v1413
    %v1503 = vadd.f32 %v1311, %v1417
    %v1504 = vadd.f32 %v1312, %v1417
    %v1505 = vadd.f32 %v1313, %v1421
    %v1506 = vadd.f32 %v1314, %v1421
    %v1507 = vadd.f32 %v1315, %v1425
    %v1508 = vadd.f32 %v1316, %v1425
    %v1509 = vadd.f32 %v1317, %v1429
    %v1510 = vadd.f32 %v1318, %v1429
    %v1511 = vadd.f32 %v1319, %v1433
    %v1512 = vadd.f32 %v1320, %v1433
    %v1513 = vadd.f32 %v1321, %v1437
    %v1514 = vadd.f32 %v1322, %v1437
    %v1515 = vadd.f32 %v1323, %v1441
    %v1516 = vadd.f32 %v1324, %v1441
    %v1517 = vadd.f32 %v1325, %v1445
    %v1518 = vadd.f32 %v1326, %v1445
    %v1519 = vadd.f32 %v1327, %v1449
    %v1520 = vadd.f32 %v1328, %v1449
    %v1521 = vadd.f32 %v1329, %v1453
    %v1522 = vadd.f32 %v1330, %v1453
    %v1523 = vadd.f32 %v1331, %v1457
    %v1524 = vadd.f32 %v1332, %v1457
    %v1525 = vadd.f32 %v1333, %v1461
    %v1526 = vadd.f32 %v1334, %v1461
    %v1527 = vmax.f32 %v1463, 0.0
    %v1528 = vmax.f32 %v1464, 0.0
    %v1529 = vmax.f32 %v1465, 0.0
    %v1530 = vmax.f32 %v1466, 0.0
    %v1531 = vmax.f32 %v1467, 0.0
    %v1532 = vmax.f32 %v1468, 0.0
    %v1533 = vmax.f32 %v1469, 0.0
    %v1534 = vmax.f32 %v1470, 0.0
    %v1535 = vmax.f32 %v1471, 0.0
    %v1536 = vmax.f32 %v1472, 0.0
    %v1537 = vmax.f32 %v1473, 0.0
    %v1538 = vmax.f32 %v1474, 0.0
    %v1539 = vmax.f32 %v1475, 0.0
    %v1540 = vmax.f32 %v1476, 0.0
    %v1541 = vmax.f32 %v1477, 0.0
    %v1542 = vmax.f32 %v1478, 0.0
    %v1543 = vmax.f32 %v1479, 0.0
    %v1544 = vmax.f32 %v1480, 0.0
    %v1545 = vmax.f32 %v1481, 0.0
    %v1546 = vmax.f32 %v1482, 0.0
    %v1547 = vmax.f32 %v1483, 0.0
    %v1548 = vmax.f32 %v1484, 0.0
    %v1549 = vmax.f32 %v1485, 0.0
    %v1550 = vmax.f32 %v1486, 0.0
    %v1551 = vmax.f32 %v1487, 0.0
    %v1552 = vmax.f32 %v1488, 0.0
    %v1553 = vmax.f32 %v1489, 0.0
    %v1554 = vmax.f32 %v1490, 0.0
    %v1555 = vmax.f32 %v1491, 0.0
    %v1556 = vmax.f32 %v1492, 0.0
    %v1557 = vmax.f32 %v1493, 0.0
    %v1558 = vmax.f32 %v1494, 0.0
    %v1559 = vmax.f32 %v1495, 0.0
    %v1560 = vmax.f32 %v1496, 0.0
    %v1561 = vmax.f32 %v1497, 0.0
    %v1562 = vmax.f32 %v1498, 0.0
    %v1563 = vmax.f32 %v1499, 0.0
    %v1564 = vmax.f32 %v1500, 0.0
    %v1565 = vmax.f32 %v1501, 0.0
    %v1566 = vmax.f32 %v1502, 0.0
    %v1567 = vmax.f32 %v1503, 0.0
    %v1568 = vmax.f32 %v1504, 0.0
    %v1569 = vmax.f32 %v1505, 0.0
    %v1570 = vmax.f32 %v1506, 0.0
    %v1571 = vmax.f32 %v1507, 0.0
    %v1572 = vmax.f32 %v1508, 0.0
    %v1573 = vmax.f32 %v1509, 0.0
    %v1574 = vmax.f32 %v1510, 0.0
    %v1575 = vmax.f32 %v1511, 0.0
    %v1576 = vmax.f32 %v1512, 0.0
    %v1577 = vmax.f32 %v1513, 0.0
    %v1578 = vmax.f32 %v1514, 0.0
    %v1579 = vmax.f32 %v1515, 0.0
    %v1580 = vmax.f32 %v1516, 0.0
    %v1581 = vmax.f32 %v1517, 0.0
    %v1582 = vmax.f32 %v1518, 0.0
    %v1583 = vmax.f32 %v1519, 0.0
    %v1584 = vmax.f32 %v1520, 0.0
    %v1585 = vmax.f32 %v1521, 0.0
    %v1586 = vmax.f32 %v1522, 0.0
    %v1587 = vmax.f32 %v1523, 0.0
    %v1588 = vmax.f32 %v1524, 0.0
    %v1589 = vmax.f32 %v1525, 0.0
    %v1590 = vmax.f32 %v1526, 0.0
    %v1591 = vpack.c.bf16 %v1529, %v1527
    %v1592 = vpack.c.bf16 %v1530, %v1528
    %v1593 = vpack.c.bf16 %v1533, %v1531
    %v1594 = vpack.c.bf16 %v1534, %v1532
    %v1595 = vpack.c.bf16 %v1537, %v1535
    %v1596 = vpack.c.bf16 %v1538, %v1536
    %v1597 = vpack.c.bf16 %v1541, %v1539
    %v1598 = vpack.c.bf16 %v1542, %v1540
    %v1599 = vpack.c.bf16 %v1545, %v1543
    %v1600 = vpack.c.bf16 %v1546, %v1544
    %v1601 = vpack.c.bf16 %v1549, %v1547
    %v1602 = vpack.c.bf16 %v1550, %v1548
    %v1603 = vpack.c.bf16 %v1553, %v1551
    %v1604 = vpack.c.bf16 %v1554, %v1552
    %v1605 = vpack.c.bf16 %v1557, %v1555
    %v1606 = vpack.c.bf16 %v1558, %v1556
    %v1607 = vpack.c.bf16 %v1561, %v1559
    %v1608 = vpack.c.bf16 %v1562, %v1560
    %v1609 = vpack.c.bf16 %v1565, %v1563
    %v1610 = vpack.c.bf16 %v1566, %v1564
    %v1611 = vpack.c.bf16 %v1569, %v1567
    %v1612 = vpack.c.bf16 %v1570, %v1568
    %v1613 = vpack.c.bf16 %v1573, %v1571
    %v1614 = vpack.c.bf16 %v1574, %v1572
    %v1615 = vpack.c.bf16 %v1577, %v1575
    %v1616 = vpack.c.bf16 %v1578, %v1576
    %v1617 = vpack.c.bf16 %v1581, %v1579
    %v1618 = vpack.c.bf16 %v1582, %v1580
    %v1619 = vpack.c.bf16 %v1585, %v1583
    %v1620 = vpack.c.bf16 %v1586, %v1584
    %v1621 = vpack.c.bf16 %v1589, %v1587
    %v1622 = vpack.c.bf16 %v1590, %v1588
    %v1623 = vld [vmem:[%s5] sm:$0xff]
    %v1624 = vld [vmem:[%s5 + $0x8] sm:$0xff]
    %v1625 = vld [vmem:[%s5 + $0x10] sm:$0xff]
    %v1626 = vld [vmem:[%s5 + $0x18] sm:$0xff]
    %v1627 = vld [vmem:[%s5 + $0x20] sm:$0xff]
    %v1628 = vld [vmem:[%s5 + $0x28] sm:$0xff]
    %v1629 = vld [vmem:[%s5 + $0x30] sm:$0xff]
    %v1630 = vld [vmem:[%s5 + $0x38] sm:$0xff]
    %v1631 = vld [vmem:[%s6] sm:$0xff]
    %v1632 = vld [vmem:[%s6 + $0x8] sm:$0xff]
    %v1633 = vld [vmem:[%s6 + $0x10] sm:$0xff]
    %v1634 = vld [vmem:[%s6 + $0x18] sm:$0xff]
    %v1635 = vld [vmem:[%s6 + $0x20] sm:$0xff]
    %v1636 = vld [vmem:[%s6 + $0x28] sm:$0xff]
    %v1637 = vld [vmem:[%s6 + $0x30] sm:$0xff]
    %v1638 = vld [vmem:[%s6 + $0x38] sm:$0xff]
    %1640 = vset.pattern.permute.xlu0 0
    %1641 = vperm.xlu0 %1640, %v1631
    %v1642 = vpop.permute.xlu0 %1641
    %1645 = vset.pattern.permute.xlu0 0
    %1646 = vperm.xlu0 %1645, %v1632
    %v1647 = vpop.permute.xlu0 %1646
    %1650 = vset.pattern.permute.xlu0 0
    %1651 = vperm.xlu0 %1650, %v1633
    %v1652 = vpop.permute.xlu0 %1651
    %1655 = vset.pattern.permute.xlu0 0
    %1656 = vperm.xlu0 %1655, %v1634
    %v1657 = vpop.permute.xlu0 %1656
    %1660 = vset.pattern.permute.xlu0 0
    %1661 = vperm.xlu0 %1660, %v1635
    %v1662 = vpop.permute.xlu0 %1661
    %1665 = vset.pattern.permute.xlu0 0
    %1666 = vperm.xlu0 %1665, %v1636
    %v1667 = vpop.permute.xlu0 %1666
    %1670 = vset.pattern.permute.xlu0 0
    %1671 = vperm.xlu0 %1670, %v1637
    %v1672 = vpop.permute.xlu0 %1671
    %1675 = vset.pattern.permute.xlu0 0
    %1676 = vperm.xlu0 %1675, %v1638
    %v1677 = vpop.permute.xlu0 %1676
    %v1687 = vunpack.c.l.b16 %v1623
    %v1688 = vunpack.c.h.b16 %v1623
    %v1689 = vunpack.c.l.b16 %v1624
    %v1690 = vunpack.c.h.b16 %v1624
    %v1691 = vunpack.c.l.b16 %v1625
    %v1692 = vunpack.c.h.b16 %v1625
    %v1693 = vunpack.c.l.b16 %v1626
    %v1694 = vunpack.c.h.b16 %v1626
    %v1695 = vunpack.c.l.b16 %v1627
    %v1696 = vunpack.c.h.b16 %v1627
    %v1697 = vunpack.c.l.b16 %v1628
    %v1698 = vunpack.c.h.b16 %v1628
    %v1699 = vunpack.c.l.b16 %v1629
    %v1700 = vunpack.c.h.b16 %v1629
    %v1701 = vunpack.c.l.b16 %v1630
    %v1702 = vunpack.c.h.b16 %v1630
    %v1703 = vpack.c.b16 %v1689, %v1687
    %v1704 = vpack.c.b16 %v1690, %v1688
    %v1705 = vpack.c.b16 %v1693, %v1691
    %v1706 = vpack.c.b16 %v1694, %v1692
    %v1707 = vpack.c.b16 %v1697, %v1695
    %v1708 = vpack.c.b16 %v1698, %v1696
    %v1709 = vpack.c.b16 %v1701, %v1699
    %v1710 = vpack.c.b16 %v1702, %v1700
    %1719 = vmatprep.subr.bf16.mxu0 %v1592
    %1720 = vmatpush1.bf16.msra.mxu0 %v1591
    %1721 = vmatprep.subr.bf16.mxu0 %v1594
    %1722 = vmatpush1.bf16.msra.mxu0 %v1593
    %1723 = vmatprep.subr.bf16.mxu0 %v1596
    %1724 = vmatpush1.bf16.msra.mxu0 %v1595
    %1725 = vmatprep.subr.bf16.mxu0 %v1598
    %1726 = vmatpush1.bf16.msra.mxu0 %v1597
    %1727 = vmatprep.subr.bf16.mxu0 %v1600
    %1728 = vmatpush1.bf16.msra.mxu0 %v1599
    %1729 = vmatprep.subr.bf16.mxu0 %v1602
    %1730 = vmatpush1.bf16.msra.mxu0 %v1601
    %1731 = vmatprep.subr.bf16.mxu0 %v1604
    %1732 = vmatpush1.bf16.msra.mxu0 %v1603
    %1733 = vmatprep.subr.bf16.mxu0 %v1606
    %1734 = vmatpush1.bf16.msra.mxu0 %v1605
    %1735 = vmatprep.subr.bf16.mxu0 %v1608
    %1736 = vmatpush1.bf16.msra.mxu0 %v1607
    %1737 = vmatprep.subr.bf16.mxu0 %v1610
    %1738 = vmatpush1.bf16.msra.mxu0 %v1609
    %1739 = vmatprep.subr.bf16.mxu0 %v1612
    %1740 = vmatpush1.bf16.msra.mxu0 %v1611
    %1741 = vmatprep.subr.bf16.mxu0 %v1614
    %1742 = vmatpush1.bf16.msra.mxu0 %v1613
    %1743 = vmatprep.subr.bf16.mxu0 %v1616
    %1744 = vmatpush1.bf16.msra.mxu0 %v1615
    %1745 = vmatprep.subr.bf16.mxu0 %v1618
    %1746 = vmatpush1.bf16.msra.mxu0 %v1617
    %1747 = vmatprep.subr.bf16.mxu0 %v1620
    %1748 = vmatpush1.bf16.msra.mxu0 %v1619
    %1749 = vmatprep.subr.bf16.mxu0 %v1622
    %1750 = vmatpush1.bf16.msra.mxu0 %v1621
    %1751 = vmatprep.mubr.bf16.mxu0 %v1704
    %1752 = vmatmul.mubr.bf16.gmra.mrb[0].mxu0 %v1703
    %v1753 = vpop.f32.mrb[0].mxu0
    %v1754 = vadd.f32 %v1642, %v1753
    %v1755 = vpop.f32.mrb[0].mxu0
    %v1756 = vadd.f32 %v1642, %v1755
    %v1757 = vpop.f32.mrb[0].mxu0
    %v1758 = vadd.f32 %v1647, %v1757
    %v1759 = vpop.f32.mrb[0].mxu0
    %v1760 = vadd.f32 %v1647, %v1759
    %1761 = vmatprep.mubr.bf16.mxu0 %v1706
    %1762 = vmatmul.mubr.bf16.gmra.mrb[0].mxu0 %v1705
    %v1763 = vpop.f32.mrb[0].mxu0
    %v1764 = vadd.f32 %v1652, %v1763
    %v1765 = vpop.f32.mrb[0].mxu0
    %v1766 = vadd.f32 %v1652, %v1765
    %v1767 = vpop.f32.mrb[0].mxu0
    %v1768 = vadd.f32 %v1657, %v1767
    %v1769 = vpop.f32.mrb[0].mxu0
    %v1770 = vadd.f32 %v1657, %v1769
    %1771 = vmatprep.mubr.bf16.mxu0 %v1708
    %1772 = vmatmul.mubr.bf16.gmra.mrb[0].mxu0 %v1707
    %v1773 = vpop.f32.mrb[0].mxu0
    %v1774 = vadd.f32 %v1662, %v1773
    %v1775 = vpop.f32.mrb[0].mxu0
    %v1776 = vadd.f32 %v1662, %v1775
    %v1777 = vpop.f32.mrb[0].mxu0
    %v1778 = vadd.f32 %v1667, %v1777
    %v1779 = vpop.f32.mrb[0].mxu0
    %v1780 = vadd.f32 %v1667, %v1779
    %1781 = vmatprep.mubr.bf16.mxu0 %v1710
    %1782 = vmatmul.mubr.bf16.gmra.mrb[0].mxu0 %v1709
    %v1783 = vpop.f32.mrb[0].mxu0
    %v1784 = vadd.f32 %v1672, %v1783
    %v1785 = vpop.f32.mrb[0].mxu0
    %v1786 = vadd.f32 %v1672, %v1785
    %v1787 = vpop.f32.mrb[0].mxu0
    %v1788 = vadd.f32 %v1677, %v1787
    %v1789 = vpop.f32.mrb[0].mxu0
    %v1790 = vadd.f32 %v1677, %v1789
    %1791 = vdwg.mxu0
    %v1792 = vadd.f32 %v1754, %v1758
    %v1793 = vadd.f32 %v1792, %v1764
    %v1794 = vadd.f32 %v1793, %v1768
    %v1795 = vadd.f32 %v1794, %v1774
    %v1796 = vadd.f32 %v1795, %v1778
    %v1797 = vadd.f32 %v1796, %v1784
    %v1798 = vadd.f32 %v1797, %v1788
    %v1799 = vrot.slane %v1798, 4
    %v1800 = vadd.f32 %v1798, %v1799
    %v1801 = vrot.slane %v1800, 2
    %v1802 = vadd.f32 %v1800, %v1801
    %v1803 = vrot.slane %v1802, 1
    %v1804 = vadd.f32 %v1802, %v1803
    %v1805 = vadd.f32 %v1756, %v1760
    %v1806 = vadd.f32 %v1805, %v1766
    %v1807 = vadd.f32 %v1806, %v1770
    %v1808 = vadd.f32 %v1807, %v1776
    %v1809 = vadd.f32 %v1808, %v1780
    %v1810 = vadd.f32 %v1809, %v1786
    %v1811 = vadd.f32 %v1810, %v1790
    %v1812 = vrot.slane %v1811, 4
    %v1813 = vadd.f32 %v1811, %v1812
    %v1814 = vrot.slane %v1813, 2
    %v1815 = vadd.f32 %v1813, %v1814
    %v1816 = vrot.slane %v1815, 1
    %v1817 = vadd.f32 %v1815, %v1816
    %v1818 = vmul.f32 %v1754, %v1754
    %v1819 = vmul.f32 %v1756, %v1756
    %v1820 = vmul.f32 %v1758, %v1758
    %v1821 = vmul.f32 %v1760, %v1760
    %v1822 = vmul.f32 %v1764, %v1764
    %v1823 = vmul.f32 %v1766, %v1766
    %v1824 = vmul.f32 %v1768, %v1768
    %v1825 = vmul.f32 %v1770, %v1770
    %v1826 = vmul.f32 %v1774, %v1774
    %v1827 = vmul.f32 %v1776, %v1776
    %v1828 = vmul.f32 %v1778, %v1778
    %v1829 = vmul.f32 %v1780, %v1780
    %v1830 = vmul.f32 %v1784, %v1784
    %v1831 = vmul.f32 %v1786, %v1786
    %v1832 = vmul.f32 %v1788, %v1788
    %v1833 = vmul.f32 %v1790, %v1790
    %v1834 = vadd.f32 %v1818, %v1820
    %v1835 = vadd.f32 %v1834, %v1822
    %v1836 = vadd.f32 %v1835, %v1824
    %v1837 = vadd.f32 %v1836, %v1826
    %v1838 = vadd.f32 %v1837, %v1828
    %v1839 = vadd.f32 %v1838, %v1830
    %v1840 = vadd.f32 %v1839, %v1832
    %v1841 = vrot.slane %v1840, 4
    %v1842 = vadd.f32 %v1840, %v1841
    %v1843 = vrot.slane %v1842, 2
    %v1844 = vadd.f32 %v1842, %v1843
    %v1845 = vrot.slane %v1844, 1
    %v1846 = vadd.f32 %v1844, %v1845
    %v1847 = vadd.f32 %v1819, %v1821
    %v1848 = vadd.f32 %v1847, %v1823
    %v1849 = vadd.f32 %v1848, %v1825
    %v1850 = vadd.f32 %v1849, %v1827
    %v1851 = vadd.f32 %v1850, %v1829
    %v1852 = vadd.f32 %v1851, %v1831
    %v1853 = vadd.f32 %v1852, %v1833
    %v1854 = vrot.slane %v1853, 4
    %v1855 = vadd.f32 %v1853, %v1854
    %v1856 = vrot.slane %v1855, 2
    %v1857 = vadd.f32 %v1855, %v1856
    %v1858 = vrot.slane %v1857, 1
    %v1859 = vadd.f32 %v1857, %v1858
    %v1860 = vmul.f32 %v1804, 0.015625
    %v1861 = vmul.f32 %v1817, 0.015625
    %v1862 = vmul.f32 %v1846, 0.015625
    %v1863 = vmul.f32 %v1859, 0.015625
    %v1864 = vmul.f32 %v1860, %v1860
    %v1865 = vmul.f32 %v1861, %v1861
    %v1866 = vsub.f32 %v1862, %v1864
    %v1867 = vsub.f32 %v1863, %v1865
    %v1868 = vmax.f32 %v1866, 0.0
    %v1869 = vmax.f32 %v1867, 0.0
    %v1870 = vadd.f32 %v1868, 1e-05
    %v1871 = vadd.f32 %v1869, 1e-05
    %v1872 = vrsqrt.pop %v1870
    %v1873 = vrsqrt.pop %v1871
    %v1874 = vsub.f32 %v1754, %v1860
    %v1875 = vsub.f32 %v1756, %v1861
    %v1876 = vsub.f32 %v1758, %v1860
    %v1877 = vsub.f32 %v1760, %v1861
    %v1878 = vsub.f32 %v1764, %v1860
    %v1879 = vsub.f32 %v1766, %v1861
    %v1880 = vsub.f32 %v1768, %v1860
    %v1881 = vsub.f32 %v1770, %v1861
    %v1882 = vsub.f32 %v1774, %v1860
    %v1883 = vsub.f32 %v1776, %v1861
    %v1884 = vsub.f32 %v1778, %v1860
    %v1885 = vsub.f32 %v1780, %v1861
    %v1886 = vsub.f32 %v1784, %v1860
    %v1887 = vsub.f32 %v1786, %v1861
    %v1888 = vsub.f32 %v1788, %v1860
    %v1889 = vsub.f32 %v1790, %v1861
    %v1890 = vmul.f32 %v1874, %v1872
    %v1891 = vmul.f32 %v1875, %v1873
    %v1892 = vmul.f32 %v1876, %v1872
    %v1893 = vmul.f32 %v1877, %v1873
    %v1894 = vmul.f32 %v1878, %v1872
    %v1895 = vmul.f32 %v1879, %v1873
    %v1896 = vmul.f32 %v1880, %v1872
    %v1897 = vmul.f32 %v1881, %v1873
    %v1898 = vmul.f32 %v1882, %v1872
    %v1899 = vmul.f32 %v1883, %v1873
    %v1900 = vmul.f32 %v1884, %v1872
    %v1901 = vmul.f32 %v1885, %v1873
    %v1902 = vmul.f32 %v1886, %v1872
    %v1903 = vmul.f32 %v1887, %v1873
    %v1904 = vmul.f32 %v1888, %v1872
    %v1905 = vmul.f32 %v1889, %v1873
    %1906 = vset.pattern.permute.xlu0 1
    %1907 = vperm.xlu0 %1906, %v1631
    %v1908 = vpop.permute.xlu0 %1907
    %1910 = vset.pattern.permute.xlu0 1
    %1911 = vperm.xlu0 %1910, %v1632
    %v1912 = vpop.permute.xlu0 %1911
    %1914 = vset.pattern.permute.xlu0 1
    %1915 = vperm.xlu0 %1914, %v1633
    %v1916 = vpop.permute.xlu0 %1915
    %1918 = vset.pattern.permute.xlu0 1
    %1919 = vperm.xlu0 %1918, %v1634
    %v1920 = vpop.permute.xlu0 %1919
    %1922 = vset.pattern.permute.xlu0 1
    %1923 = vperm.xlu0 %1922, %v1635
    %v1924 = vpop.permute.xlu0 %1923
    %1926 = vset.pattern.permute.xlu0 1
    %1927 = vperm.xlu0 %1926, %v1636
    %v1928 = vpop.permute.xlu0 %1927
    %1930 = vset.pattern.permute.xlu0 1
    %1931 = vperm.xlu0 %1930, %v1637
    %v1932 = vpop.permute.xlu0 %1931
    %1934 = vset.pattern.permute.xlu0 1
    %1935 = vperm.xlu0 %1934, %v1638
    %v1936 = vpop.permute.xlu0 %1935
    %v1938 = vmul.f32 %v1890, %v1908
    %v1939 = vmul.f32 %v1891, %v1908
    %v1940 = vmul.f32 %v1892, %v1912
    %v1941 = vmul.f32 %v1893, %v1912
    %v1942 = vmul.f32 %v1894, %v1916
    %v1943 = vmul.f32 %v1895, %v1916
    %v1944 = vmul.f32 %v1896, %v1920
    %v1945 = vmul.f32 %v1897, %v1920
    %v1946 = vmul.f32 %v1898, %v1924
    %v1947 = vmul.f32 %v1899, %v1924
    %v1948 = vmul.f32 %v1900, %v1928
    %v1949 = vmul.f32 %v1901, %v1928
    %v1950 = vmul.f32 %v1902, %v1932
    %v1951 = vmul.f32 %v1903, %v1932
    %v1952 = vmul.f32 %v1904, %v1936
    %v1953 = vmul.f32 %v1905, %v1936
    %1954 = vset.pattern.permute.xlu0 2
    %1955 = vperm.xlu0 %1954, %v1631
    %v1956 = vpop.permute.xlu0 %1955
    %1958 = vset.pattern.permute.xlu0 2
    %1959 = vperm.xlu0 %1958, %v1632
    %v1960 = vpop.permute.xlu0 %1959
    %1962 = vset.pattern.permute.xlu0 2
    %1963 = vperm.xlu0 %1962, %v1633
    %v1964 = vpop.permute.xlu0 %1963
    %1966 = vset.pattern.permute.xlu0 2
    %1967 = vperm.xlu0 %1966, %v1634
    %v1968 = vpop.permute.xlu0 %1967
    %1970 = vset.pattern.permute.xlu0 2
    %1971 = vperm.xlu0 %1970, %v1635
    %v1972 = vpop.permute.xlu0 %1971
    %1974 = vset.pattern.permute.xlu0 2
    %1975 = vperm.xlu0 %1974, %v1636
    %v1976 = vpop.permute.xlu0 %1975
    %1978 = vset.pattern.permute.xlu0 2
    %1979 = vperm.xlu0 %1978, %v1637
    %v1980 = vpop.permute.xlu0 %1979
    %1982 = vset.pattern.permute.xlu0 2
    %1983 = vperm.xlu0 %1982, %v1638
    %v1984 = vpop.permute.xlu0 %1983
    %v1986 = vadd.f32 %v1938, %v1956
    %v1987 = vadd.f32 %v1939, %v1956
    %v1988 = vadd.f32 %v1940, %v1960
    %v1989 = vadd.f32 %v1941, %v1960
    %v1990 = vadd.f32 %v1942, %v1964
    %v1991 = vadd.f32 %v1943, %v1964
    %v1992 = vadd.f32 %v1944, %v1968
    %v1993 = vadd.f32 %v1945, %v1968
    %v1994 = vadd.f32 %v1946, %v1972
    %v1995 = vadd.f32 %v1947, %v1972
    %v1996 = vadd.f32 %v1948, %v1976
    %v1997 = vadd.f32 %v1949, %v1976
    %v1998 = vadd.f32 %v1950, %v1980
    %v1999 = vadd.f32 %v1951, %v1980
    %v2000 = vadd.f32 %v1952, %v1984
    %v2001 = vadd.f32 %v1953, %v1984
    %v2002 = vmax.f32 %v1986, 0.0
    %v2003 = vmax.f32 %v1987, 0.0
    %v2004 = vmax.f32 %v1988, 0.0
    %v2005 = vmax.f32 %v1989, 0.0
    %v2006 = vmax.f32 %v1990, 0.0
    %v2007 = vmax.f32 %v1991, 0.0
    %v2008 = vmax.f32 %v1992, 0.0
    %v2009 = vmax.f32 %v1993, 0.0
    %v2010 = vmax.f32 %v1994, 0.0
    %v2011 = vmax.f32 %v1995, 0.0
    %v2012 = vmax.f32 %v1996, 0.0
    %v2013 = vmax.f32 %v1997, 0.0
    %v2014 = vmax.f32 %v1998, 0.0
    %v2015 = vmax.f32 %v1999, 0.0
    %v2016 = vmax.f32 %v2000, 0.0
    %v2017 = vmax.f32 %v2001, 0.0
    %v2018 = vpack.c.bf16 %v2004, %v2002
    %v2019 = vpack.c.bf16 %v2005, %v2003
    %v2020 = vpack.c.bf16 %v2008, %v2006
    %v2021 = vpack.c.bf16 %v2009, %v2007
    %v2022 = vpack.c.bf16 %v2012, %v2010
    %v2023 = vpack.c.bf16 %v2013, %v2011
    %v2024 = vpack.c.bf16 %v2016, %v2014
    %v2025 = vpack.c.bf16 %v2017, %v2015
    %v2026 = vunpack.c.l.bf16 %v2018
    %v2027 = vunpack.c.l.bf16 %v2019
    %v2028 = vunpack.c.h.bf16 %v2018
    %v2029 = vunpack.c.h.bf16 %v2019
    %v2030 = vunpack.c.l.bf16 %v2020
    %v2031 = vunpack.c.l.bf16 %v2021
    %v2032 = vunpack.c.h.bf16 %v2020
    %v2033 = vunpack.c.h.bf16 %v2021
    %v2034 = vunpack.c.l.bf16 %v2022
    %v2035 = vunpack.c.l.bf16 %v2023
    %v2036 = vunpack.c.h.bf16 %v2022
    %v2037 = vunpack.c.h.bf16 %v2023
    %v2038 = vunpack.c.l.bf16 %v2024
    %v2039 = vunpack.c.l.bf16 %v2025
    %v2040 = vunpack.c.h.bf16 %v2024
    %v2041 = vunpack.c.h.bf16 %v2025
    %v2042 = vadd.f32 %v197, %v2026
    %v2043 = vadd.f32 %v199, %v2027
    %v2044 = vadd.f32 %v201, %v2028
    %v2045 = vadd.f32 %v203, %v2029
    %v2046 = vadd.f32 %v207, %v2030
    %v2047 = vadd.f32 %v209, %v2031
    %v2048 = vadd.f32 %v211, %v2032
    %v2049 = vadd.f32 %v213, %v2033
    %v2050 = vadd.f32 %v217, %v2034
    %v2051 = vadd.f32 %v219, %v2035
    %v2052 = vadd.f32 %v221, %v2036
    %v2053 = vadd.f32 %v223, %v2037
    %v2054 = vadd.f32 %v227, %v2038
    %v2055 = vadd.f32 %v229, %v2039
    %v2056 = vadd.f32 %v231, %v2040
    %v2057 = vadd.f32 %v233, %v2041
    %v2058 = vpack.c.bf16 %v2044, %v2042
    %v2059 = vpack.c.bf16 %v2045, %v2043
    %v2060 = vpack.c.bf16 %v2048, %v2046
    %v2061 = vpack.c.bf16 %v2049, %v2047
    %v2062 = vpack.c.bf16 %v2052, %v2050
    %v2063 = vpack.c.bf16 %v2053, %v2051
    %v2064 = vpack.c.bf16 %v2056, %v2054
    %v2065 = vpack.c.bf16 %v2057, %v2055
    %v2066 = vld [vmem:[%s7] sm:$0xf]
    %v2067 = vld [vmem:[%s7 + $0x4] sm:$0xf]
    %v2068 = vld [vmem:[%s7 + $0x8] sm:$0xf]
    %v2069 = vld [vmem:[%s7 + $0xc] sm:$0xf]
    %v2070 = vld [vmem:[%s7 + $0x10] sm:$0xf]
    %v2071 = vld [vmem:[%s7 + $0x14] sm:$0xf]
    %v2072 = vld [vmem:[%s7 + $0x18] sm:$0xf]
    %v2073 = vld [vmem:[%s7 + $0x1c] sm:$0xf]
    %v2074 = vld [vmem:[%s7 + $0x20] sm:$0xf]
    %v2075 = vld [vmem:[%s7 + $0x24] sm:$0xf]
    %v2076 = vld [vmem:[%s7 + $0x28] sm:$0xf]
    %v2077 = vld [vmem:[%s7 + $0x2c] sm:$0xf]
    %v2078 = vld [vmem:[%s7 + $0x30] sm:$0xf]
    %v2079 = vld [vmem:[%s7 + $0x34] sm:$0xf]
    %v2080 = vld [vmem:[%s7 + $0x38] sm:$0xf]
    %v2081 = vld [vmem:[%s7 + $0x3c] sm:$0xf]
    %v2082 = vld [vmem:[%s7 + $0x40] sm:$0xf]
    %v2083 = vld [vmem:[%s7 + $0x44] sm:$0xf]
    %v2084 = vld [vmem:[%s7 + $0x48] sm:$0xf]
    %v2085 = vld [vmem:[%s7 + $0x4c] sm:$0xf]
    %v2086 = vld [vmem:[%s7 + $0x50] sm:$0xf]
    %v2087 = vld [vmem:[%s7 + $0x54] sm:$0xf]
    %v2088 = vld [vmem:[%s7 + $0x58] sm:$0xf]
    %v2089 = vld [vmem:[%s7 + $0x5c] sm:$0xf]
    %v2090 = vld [vmem:[%s7 + $0x60] sm:$0xf]
    %v2091 = vld [vmem:[%s7 + $0x64] sm:$0xf]
    %v2092 = vld [vmem:[%s7 + $0x68] sm:$0xf]
    %v2093 = vld [vmem:[%s7 + $0x6c] sm:$0xf]
    %v2094 = vld [vmem:[%s7 + $0x70] sm:$0xf]
    %v2095 = vld [vmem:[%s7 + $0x74] sm:$0xf]
    %v2096 = vld [vmem:[%s7 + $0x78] sm:$0xf]
    %v2097 = vld [vmem:[%s7 + $0x7c] sm:$0xf]
    %v2098 = vld [vmem:[%s8] sm:$0xff]
    %v2099 = vld [vmem:[%s8 + $0x8] sm:$0xff]
    %v2100 = vld [vmem:[%s8 + $0x10] sm:$0xff]
    %v2101 = vld [vmem:[%s8 + $0x18] sm:$0xff]
    %v2102 = vld [vmem:[%s8 + $0x20] sm:$0xff]
    %v2103 = vld [vmem:[%s8 + $0x28] sm:$0xff]
    %v2104 = vld [vmem:[%s8 + $0x30] sm:$0xff]
    %v2105 = vld [vmem:[%s8 + $0x38] sm:$0xff]
    %v2106 = vld [vmem:[%s8 + $0x40] sm:$0xff]
    %v2107 = vld [vmem:[%s8 + $0x48] sm:$0xff]
    %v2108 = vld [vmem:[%s8 + $0x50] sm:$0xff]
    %v2109 = vld [vmem:[%s8 + $0x58] sm:$0xff]
    %v2110 = vld [vmem:[%s8 + $0x60] sm:$0xff]
    %v2111 = vld [vmem:[%s8 + $0x68] sm:$0xff]
    %v2112 = vld [vmem:[%s8 + $0x70] sm:$0xff]
    %v2113 = vld [vmem:[%s8 + $0x78] sm:$0xff]
    %v2114 = vld [vmem:[%s8 + $0x80] sm:$0xff]
    %v2115 = vld [vmem:[%s8 + $0x88] sm:$0xff]
    %v2116 = vld [vmem:[%s8 + $0x90] sm:$0xff]
    %v2117 = vld [vmem:[%s8 + $0x98] sm:$0xff]
    %v2118 = vld [vmem:[%s8 + $0xa0] sm:$0xff]
    %v2119 = vld [vmem:[%s8 + $0xa8] sm:$0xff]
    %v2120 = vld [vmem:[%s8 + $0xb0] sm:$0xff]
    %v2121 = vld [vmem:[%s8 + $0xb8] sm:$0xff]
    %v2122 = vld [vmem:[%s8 + $0xc0] sm:$0xff]
    %v2123 = vld [vmem:[%s8 + $0xc8] sm:$0xff]
    %v2124 = vld [vmem:[%s8 + $0xd0] sm:$0xff]
    %v2125 = vld [vmem:[%s8 + $0xd8] sm:$0xff]
    %v2126 = vld [vmem:[%s8 + $0xe0] sm:$0xff]
    %v2127 = vld [vmem:[%s8 + $0xe8] sm:$0xff]
    %v2128 = vld [vmem:[%s8 + $0xf0] sm:$0xff]
    %v2129 = vld [vmem:[%s8 + $0xf8] sm:$0xff]
    %2131 = vset.pattern.permute.xlu0 0
    %2132 = vperm.xlu0 %2131, %v2098
    %v2133 = vpop.permute.xlu0 %2132
    %2136 = vset.pattern.permute.xlu0 0
    %2137 = vperm.xlu0 %2136, %v2099
    %v2138 = vpop.permute.xlu0 %2137
    %2141 = vset.pattern.permute.xlu0 0
    %2142 = vperm.xlu0 %2141, %v2100
    %v2143 = vpop.permute.xlu0 %2142
    %2146 = vset.pattern.permute.xlu0 0
    %2147 = vperm.xlu0 %2146, %v2101
    %v2148 = vpop.permute.xlu0 %2147
    %2151 = vset.pattern.permute.xlu0 0
    %2152 = vperm.xlu0 %2151, %v2102
    %v2153 = vpop.permute.xlu0 %2152
    %2156 = vset.pattern.permute.xlu0 0
    %2157 = vperm.xlu0 %2156, %v2103
    %v2158 = vpop.permute.xlu0 %2157
    %2161 = vset.pattern.permute.xlu0 0
    %2162 = vperm.xlu0 %2161, %v2104
    %v2163 = vpop.permute.xlu0 %2162
    %2166 = vset.pattern.permute.xlu0 0
    %2167 = vperm.xlu0 %2166, %v2105
    %v2168 = vpop.permute.xlu0 %2167
    %2171 = vset.pattern.permute.xlu0 0
    %2172 = vperm.xlu0 %2171, %v2106
    %v2173 = vpop.permute.xlu0 %2172
    %2176 = vset.pattern.permute.xlu0 0
    %2177 = vperm.xlu0 %2176, %v2107
    %v2178 = vpop.permute.xlu0 %2177
    %2181 = vset.pattern.permute.xlu0 0
    %2182 = vperm.xlu0 %2181, %v2108
    %v2183 = vpop.permute.xlu0 %2182
    %2186 = vset.pattern.permute.xlu0 0
    %2187 = vperm.xlu0 %2186, %v2109
    %v2188 = vpop.permute.xlu0 %2187
    %2191 = vset.pattern.permute.xlu0 0
    %2192 = vperm.xlu0 %2191, %v2110
    %v2193 = vpop.permute.xlu0 %2192
    %2196 = vset.pattern.permute.xlu0 0
    %2197 = vperm.xlu0 %2196, %v2111
    %v2198 = vpop.permute.xlu0 %2197
    %2201 = vset.pattern.permute.xlu0 0
    %2202 = vperm.xlu0 %2201, %v2112
    %v2203 = vpop.permute.xlu0 %2202
    %2206 = vset.pattern.permute.xlu0 0
    %2207 = vperm.xlu0 %2206, %v2113
    %v2208 = vpop.permute.xlu0 %2207
    %2211 = vset.pattern.permute.xlu0 0
    %2212 = vperm.xlu0 %2211, %v2114
    %v2213 = vpop.permute.xlu0 %2212
    %2216 = vset.pattern.permute.xlu0 0
    %2217 = vperm.xlu0 %2216, %v2115
    %v2218 = vpop.permute.xlu0 %2217
    %2221 = vset.pattern.permute.xlu0 0
    %2222 = vperm.xlu0 %2221, %v2116
    %v2223 = vpop.permute.xlu0 %2222
    %2226 = vset.pattern.permute.xlu0 0
    %2227 = vperm.xlu0 %2226, %v2117
    %v2228 = vpop.permute.xlu0 %2227
    %2231 = vset.pattern.permute.xlu0 0
    %2232 = vperm.xlu0 %2231, %v2118
    %v2233 = vpop.permute.xlu0 %2232
    %2236 = vset.pattern.permute.xlu0 0
    %2237 = vperm.xlu0 %2236, %v2119
    %v2238 = vpop.permute.xlu0 %2237
    %2241 = vset.pattern.permute.xlu0 0
    %2242 = vperm.xlu0 %2241, %v2120
    %v2243 = vpop.permute.xlu0 %2242
    %2246 = vset.pattern.permute.xlu0 0
    %2247 = vperm.xlu0 %2246, %v2121
    %v2248 = vpop.permute.xlu0 %2247
    %2251 = vset.pattern.permute.xlu0 0
    %2252 = vperm.xlu0 %2251, %v2122
    %v2253 = vpop.permute.xlu0 %2252
    %2256 = vset.pattern.permute.xlu0 0
    %2257 = vperm.xlu0 %2256, %v2123
    %v2258 = vpop.permute.xlu0 %2257
    %2261 = vset.pattern.permute.xlu0 0
    %2262 = vperm.xlu0 %2261, %v2124
    %v2263 = vpop.permute.xlu0 %2262
    %2266 = vset.pattern.permute.xlu0 0
    %2267 = vperm.xlu0 %2266, %v2125
    %v2268 = vpop.permute.xlu0 %2267
    %2271 = vset.pattern.permute.xlu0 0
    %2272 = vperm.xlu0 %2271, %v2126
    %v2273 = vpop.permute.xlu0 %2272
    %2276 = vset.pattern.permute.xlu0 0
    %2277 = vperm.xlu0 %2276, %v2127
    %v2278 = vpop.permute.xlu0 %2277
    %2281 = vset.pattern.permute.xlu0 0
    %2282 = vperm.xlu0 %2281, %v2128
    %v2283 = vpop.permute.xlu0 %2282
    %2286 = vset.pattern.permute.xlu0 0
    %2287 = vperm.xlu0 %2286, %v2129
    %v2288 = vpop.permute.xlu0 %2287
    %v2322 = vunpack.c.l.b16 %v2066
    %v2323 = vunpack.c.l.b16 %v2067
    %v2324 = vunpack.c.l.b16 %v2068
    %v2325 = vunpack.c.l.b16 %v2069
    %v2326 = vunpack.c.l.b16 %v2070
    %v2327 = vunpack.c.l.b16 %v2071
    %v2328 = vunpack.c.l.b16 %v2072
    %v2329 = vunpack.c.l.b16 %v2073
    %v2330 = vunpack.c.l.b16 %v2074
    %v2331 = vunpack.c.l.b16 %v2075
    %v2332 = vunpack.c.l.b16 %v2076
    %v2333 = vunpack.c.l.b16 %v2077
    %v2334 = vunpack.c.l.b16 %v2078
    %v2335 = vunpack.c.l.b16 %v2079
    %v2336 = vunpack.c.l.b16 %v2080
    %v2337 = vunpack.c.l.b16 %v2081
    %v2338 = vunpack.c.l.b16 %v2082
    %v2339 = vunpack.c.l.b16 %v2083
    %v2340 = vunpack.c.l.b16 %v2084
    %v2341 = vunpack.c.l.b16 %v2085
    %v2342 = vunpack.c.l.b16 %v2086
    %v2343 = vunpack.c.l.b16 %v2087
    %v2344 = vunpack.c.l.b16 %v2088
    %v2345 = vunpack.c.l.b16 %v2089
    %v2346 = vunpack.c.l.b16 %v2090
    %v2347 = vunpack.c.l.b16 %v2091
    %v2348 = vunpack.c.l.b16 %v2092
    %v2349 = vunpack.c.l.b16 %v2093
    %v2350 = vunpack.c.l.b16 %v2094
    %v2351 = vunpack.c.l.b16 %v2095
    %v2352 = vunpack.c.l.b16 %v2096
    %v2353 = vunpack.c.l.b16 %v2097
    %v2354 = vpack.c.b16 %v2323, %v2322
    %v2355 = vpack.c.b16 %v2325, %v2324
    %v2356 = vpack.c.b16 %v2327, %v2326
    %v2357 = vpack.c.b16 %v2329, %v2328
    %v2358 = vpack.c.b16 %v2331, %v2330
    %v2359 = vpack.c.b16 %v2333, %v2332
    %v2360 = vpack.c.b16 %v2335, %v2334
    %v2361 = vpack.c.b16 %v2337, %v2336
    %v2362 = vpack.c.b16 %v2339, %v2338
    %v2363 = vpack.c.b16 %v2341, %v2340
    %v2364 = vpack.c.b16 %v2343, %v2342
    %v2365 = vpack.c.b16 %v2345, %v2344
    %v2366 = vpack.c.b16 %v2347, %v2346
    %v2367 = vpack.c.b16 %v2349, %v2348
    %v2368 = vpack.c.b16 %v2351, %v2350
    %v2369 = vpack.c.b16 %v2353, %v2352
    %v2371 = vsel %vm547, %v2354, 0
    %v2374 = vsel %vm547, %v2355, 0
    %v2377 = vsel %vm547, %v2356, 0
    %v2380 = vsel %vm547, %v2357, 0
    %v2383 = vsel %vm547, %v2358, 0
    %v2386 = vsel %vm547, %v2359, 0
    %v2389 = vsel %vm547, %v2360, 0
    %v2392 = vsel %vm547, %v2361, 0
    %v2395 = vsel %vm547, %v2362, 0
    %v2398 = vsel %vm547, %v2363, 0
    %v2401 = vsel %vm547, %v2364, 0
    %v2404 = vsel %vm547, %v2365, 0
    %v2407 = vsel %vm547, %v2366, 0
    %v2410 = vsel %vm547, %v2367, 0
    %v2413 = vsel %vm547, %v2368, 0
    %v2416 = vsel %vm547, %v2369, 0
    %2418 = vmatprep.subr.bf16.mxu0 %v2059
    %2419 = vmatpush1.bf16.msra.mxu0 %v2058
    %2420 = vmatprep.subr.bf16.mxu0 %v2061
    %2421 = vmatpush1.bf16.msra.mxu0 %v2060
    %2422 = vmatprep.subr.bf16.mxu0 %v2063
    %2423 = vmatpush1.bf16.msra.mxu0 %v2062
    %2424 = vmatprep.subr.bf16.mxu0 %v2065
    %2425 = vmatpush1.bf16.msra.mxu0 %v2064
    %2426 = vmatprep.subr.bf16.mxu0 0
    %2427 = vmatpush1.bf16.msra.mxu0 0
    %2428 = vmatprep.subr.bf16.mxu0 0
    %2429 = vmatpush1.bf16.msra.mxu0 0
    %2430 = vmatprep.subr.bf16.mxu0 0
    %2431 = vmatpush1.bf16.msra.mxu0 0
    %2432 = vmatprep.subr.bf16.mxu0 0
    %2433 = vmatpush1.bf16.msra.mxu0 0
    %2434 = vmatprep.subr.bf16.mxu0 0
    %2435 = vmatpush1.bf16.msra.mxu0 0
    %2436 = vmatprep.subr.bf16.mxu0 0
    %2437 = vmatpush1.bf16.msra.mxu0 0
    %2438 = vmatprep.subr.bf16.mxu0 0
    %2439 = vmatpush1.bf16.msra.mxu0 0
    %2440 = vmatprep.subr.bf16.mxu0 0
    %2441 = vmatpush1.bf16.msra.mxu0 0
    %2442 = vmatprep.subr.bf16.mxu0 0
    %2443 = vmatpush1.bf16.msra.mxu0 0
    %2444 = vmatprep.subr.bf16.mxu0 0
    %2445 = vmatpush1.bf16.msra.mxu0 0
    %2446 = vmatprep.subr.bf16.mxu0 0
    %2447 = vmatpush1.bf16.msra.mxu0 0
    %2448 = vmatprep.subr.bf16.mxu0 0
    %2449 = vmatpush1.bf16.msra.mxu0 0
    %2450 = vmatprep.mubr.bf16.mxu0 0
    %2451 = vmatmul.mubr.bf16.gmra.mrb[0].mxu0 %v2371
    %v2452 = vpop.f32.mrb[0].mxu0
    %v2453 = vadd.f32 %v2133, %v2452
    %v2454 = vpop.f32.mrb[0].mxu0
    %v2455 = vadd.f32 %v2133, %v2454
    %v2456 = vpop.f32.mrb[0].mxu0
    %v2457 = vadd.f32 %v2138, %v2456
    %v2458 = vpop.f32.mrb[0].mxu0
    %v2459 = vadd.f32 %v2138, %v2458
    %2460 = vmatprep.mubr.bf16.mxu0 0
    %2461 = vmatmul.mubr.bf16.gmra.mrb[0].mxu0 %v2374
    %v2462 = vpop.f32.mrb[0].mxu0
    %v2463 = vadd.f32 %v2143, %v2462
    %v2464 = vpop.f32.mrb[0].mxu0
    %v2465 = vadd.f32 %v2143, %v2464
    %v2466 = vpop.f32.mrb[0].mxu0
    %v2467 = vadd.f32 %v2148, %v2466
    %v2468 = vpop.f32.mrb[0].mxu0
    %v2469 = vadd.f32 %v2148, %v2468
    %2470 = vmatprep.mubr.bf16.mxu0 0
    %2471 = vmatmul.mubr.bf16.gmra.mrb[0].mxu0 %v2377
    %v2472 = vpop.f32.mrb[0].mxu0
    %v2473 = vadd.f32 %v2153, %v2472
    %v2474 = vpop.f32.mrb[0].mxu0
    %v2475 = vadd.f32 %v2153, %v2474
    %v2476 = vpop.f32.mrb[0].mxu0
    %v2477 = vadd.f32 %v2158, %v2476
    %v2478 = vpop.f32.mrb[0].mxu0
    %v2479 = vadd.f32 %v2158, %v2478
    %2480 = vmatprep.mubr.bf16.mxu0 0
    %2481 = vmatmul.mubr.bf16.gmra.mrb[0].mxu0 %v2380
    %v2482 = vpop.f32.mrb[0].mxu0
    %v2483 = vadd.f32 %v2163, %v2482
    %v2484 = vpop.f32.mrb[0].mxu0
    %v2485 = vadd.f32 %v2163, %v2484
    %v2486 = vpop.f32.mrb[0].mxu0
    %v2487 = vadd.f32 %v2168, %v2486
    %v2488 = vpop.f32.mrb[0].mxu0
    %v2489 = vadd.f32 %v2168, %v2488
    %2490 = vmatprep.mubr.bf16.mxu0 0
    %2491 = vmatmul.mubr.bf16.gmra.mrb[0].mxu0 %v2383
    %v2492 = vpop.f32.mrb[0].mxu0
    %v2493 = vadd.f32 %v2173, %v2492
    %v2494 = vpop.f32.mrb[0].mxu0
    %v2495 = vadd.f32 %v2173, %v2494
    %v2496 = vpop.f32.mrb[0].mxu0
    %v2497 = vadd.f32 %v2178, %v2496
    %v2498 = vpop.f32.mrb[0].mxu0
    %v2499 = vadd.f32 %v2178, %v2498
    %2500 = vmatprep.mubr.bf16.mxu0 0
    %2501 = vmatmul.mubr.bf16.gmra.mrb[0].mxu0 %v2386
    %v2502 = vpop.f32.mrb[0].mxu0
    %v2503 = vadd.f32 %v2183, %v2502
    %v2504 = vpop.f32.mrb[0].mxu0
    %v2505 = vadd.f32 %v2183, %v2504
    %v2506 = vpop.f32.mrb[0].mxu0
    %v2507 = vadd.f32 %v2188, %v2506
    %v2508 = vpop.f32.mrb[0].mxu0
    %v2509 = vadd.f32 %v2188, %v2508
    %2510 = vmatprep.mubr.bf16.mxu0 0
    %2511 = vmatmul.mubr.bf16.gmra.mrb[0].mxu0 %v2389
    %v2512 = vpop.f32.mrb[0].mxu0
    %v2513 = vadd.f32 %v2193, %v2512
    %v2514 = vpop.f32.mrb[0].mxu0
    %v2515 = vadd.f32 %v2193, %v2514
    %v2516 = vpop.f32.mrb[0].mxu0
    %v2517 = vadd.f32 %v2198, %v2516
    %v2518 = vpop.f32.mrb[0].mxu0
    %v2519 = vadd.f32 %v2198, %v2518
    %2520 = vmatprep.mubr.bf16.mxu0 0
    %2521 = vmatmul.mubr.bf16.gmra.mrb[0].mxu0 %v2392
    %v2522 = vpop.f32.mrb[0].mxu0
    %v2523 = vadd.f32 %v2203, %v2522
    %v2524 = vpop.f32.mrb[0].mxu0
    %v2525 = vadd.f32 %v2203, %v2524
    %v2526 = vpop.f32.mrb[0].mxu0
    %v2527 = vadd.f32 %v2208, %v2526
    %v2528 = vpop.f32.mrb[0].mxu0
    %v2529 = vadd.f32 %v2208, %v2528
    %2530 = vmatprep.mubr.bf16.mxu0 0
    %2531 = vmatmul.mubr.bf16.gmra.mrb[0].mxu0 %v2395
    %v2532 = vpop.f32.mrb[0].mxu0
    %v2533 = vadd.f32 %v2213, %v2532
    %v2534 = vpop.f32.mrb[0].mxu0
    %v2535 = vadd.f32 %v2213, %v2534
    %v2536 = vpop.f32.mrb[0].mxu0
    %v2537 = vadd.f32 %v2218, %v2536
    %v2538 = vpop.f32.mrb[0].mxu0
    %v2539 = vadd.f32 %v2218, %v2538
    %2540 = vmatprep.mubr.bf16.mxu0 0
    %2541 = vmatmul.mubr.bf16.gmra.mrb[0].mxu0 %v2398
    %v2542 = vpop.f32.mrb[0].mxu0
    %v2543 = vadd.f32 %v2223, %v2542
    %v2544 = vpop.f32.mrb[0].mxu0
    %v2545 = vadd.f32 %v2223, %v2544
    %v2546 = vpop.f32.mrb[0].mxu0
    %v2547 = vadd.f32 %v2228, %v2546
    %v2548 = vpop.f32.mrb[0].mxu0
    %v2549 = vadd.f32 %v2228, %v2548
    %2550 = vmatprep.mubr.bf16.mxu0 0
    %2551 = vmatmul.mubr.bf16.gmra.mrb[0].mxu0 %v2401
    %v2552 = vpop.f32.mrb[0].mxu0
    %v2553 = vadd.f32 %v2233, %v2552
    %v2554 = vpop.f32.mrb[0].mxu0
    %v2555 = vadd.f32 %v2233, %v2554
    %v2556 = vpop.f32.mrb[0].mxu0
    %v2557 = vadd.f32 %v2238, %v2556
    %v2558 = vpop.f32.mrb[0].mxu0
    %v2559 = vadd.f32 %v2238, %v2558
    %2560 = vmatprep.mubr.bf16.mxu0 0
    %2561 = vmatmul.mubr.bf16.gmra.mrb[0].mxu0 %v2404
    %v2562 = vpop.f32.mrb[0].mxu0
    %v2563 = vadd.f32 %v2243, %v2562
    %v2564 = vpop.f32.mrb[0].mxu0
    %v2565 = vadd.f32 %v2243, %v2564
    %v2566 = vpop.f32.mrb[0].mxu0
    %v2567 = vadd.f32 %v2248, %v2566
    %v2568 = vpop.f32.mrb[0].mxu0
    %v2569 = vadd.f32 %v2248, %v2568
    %2570 = vmatprep.mubr.bf16.mxu0 0
    %2571 = vmatmul.mubr.bf16.gmra.mrb[0].mxu0 %v2407
    %v2572 = vpop.f32.mrb[0].mxu0
    %v2573 = vadd.f32 %v2253, %v2572
    %v2574 = vpop.f32.mrb[0].mxu0
    %v2575 = vadd.f32 %v2253, %v2574
    %v2576 = vpop.f32.mrb[0].mxu0
    %v2577 = vadd.f32 %v2258, %v2576
    %v2578 = vpop.f32.mrb[0].mxu0
    %v2579 = vadd.f32 %v2258, %v2578
    %2580 = vmatprep.mubr.bf16.mxu0 0
    %2581 = vmatmul.mubr.bf16.gmra.mrb[0].mxu0 %v2410
    %v2582 = vpop.f32.mrb[0].mxu0
    %v2583 = vadd.f32 %v2263, %v2582
    %v2584 = vpop.f32.mrb[0].mxu0
    %v2585 = vadd.f32 %v2263, %v2584
    %v2586 = vpop.f32.mrb[0].mxu0
    %v2587 = vadd.f32 %v2268, %v2586
    %v2588 = vpop.f32.mrb[0].mxu0
    %v2589 = vadd.f32 %v2268, %v2588
    %2590 = vmatprep.mubr.bf16.mxu0 0
    %2591 = vmatmul.mubr.bf16.gmra.mrb[0].mxu0 %v2413
    %v2592 = vpop.f32.mrb[0].mxu0
    %v2593 = vadd.f32 %v2273, %v2592
    %v2594 = vpop.f32.mrb[0].mxu0
    %v2595 = vadd.f32 %v2273, %v2594
    %v2596 = vpop.f32.mrb[0].mxu0
    %v2597 = vadd.f32 %v2278, %v2596
    %v2598 = vpop.f32.mrb[0].mxu0
    %v2599 = vadd.f32 %v2278, %v2598
    %2600 = vmatprep.mubr.bf16.mxu0 0
    %2601 = vmatmul.mubr.bf16.gmra.mrb[0].mxu0 %v2416
    %v2602 = vpop.f32.mrb[0].mxu0
    %v2603 = vadd.f32 %v2283, %v2602
    %v2604 = vpop.f32.mrb[0].mxu0
    %v2605 = vadd.f32 %v2283, %v2604
    %v2606 = vpop.f32.mrb[0].mxu0
    %v2607 = vadd.f32 %v2288, %v2606
    %v2608 = vpop.f32.mrb[0].mxu0
    %v2609 = vadd.f32 %v2288, %v2608
    %2610 = vdwg.mxu0
    %v2611 = vadd.f32 %v2453, %v2457
    %v2612 = vadd.f32 %v2611, %v2463
    %v2613 = vadd.f32 %v2612, %v2467
    %v2614 = vadd.f32 %v2613, %v2473
    %v2615 = vadd.f32 %v2614, %v2477
    %v2616 = vadd.f32 %v2615, %v2483
    %v2617 = vadd.f32 %v2616, %v2487
    %v2618 = vadd.f32 %v2617, %v2493
    %v2619 = vadd.f32 %v2618, %v2497
    %v2620 = vadd.f32 %v2619, %v2503
    %v2621 = vadd.f32 %v2620, %v2507
    %v2622 = vadd.f32 %v2621, %v2513
    %v2623 = vadd.f32 %v2622, %v2517
    %v2624 = vadd.f32 %v2623, %v2523
    %v2625 = vadd.f32 %v2624, %v2527
    %v2626 = vadd.f32 %v2625, %v2533
    %v2627 = vadd.f32 %v2626, %v2537
    %v2628 = vadd.f32 %v2627, %v2543
    %v2629 = vadd.f32 %v2628, %v2547
    %v2630 = vadd.f32 %v2629, %v2553
    %v2631 = vadd.f32 %v2630, %v2557
    %v2632 = vadd.f32 %v2631, %v2563
    %v2633 = vadd.f32 %v2632, %v2567
    %v2634 = vadd.f32 %v2633, %v2573
    %v2635 = vadd.f32 %v2634, %v2577
    %v2636 = vadd.f32 %v2635, %v2583
    %v2637 = vadd.f32 %v2636, %v2587
    %v2638 = vadd.f32 %v2637, %v2593
    %v2639 = vadd.f32 %v2638, %v2597
    %v2640 = vadd.f32 %v2639, %v2603
    %v2641 = vadd.f32 %v2640, %v2607
    %v2642 = vrot.slane %v2641, 4
    %v2643 = vadd.f32 %v2641, %v2642
    %v2644 = vrot.slane %v2643, 2
    %v2645 = vadd.f32 %v2643, %v2644
    %v2646 = vrot.slane %v2645, 1
    %v2647 = vadd.f32 %v2645, %v2646
    %v2648 = vadd.f32 %v2455, %v2459
    %v2649 = vadd.f32 %v2648, %v2465
    %v2650 = vadd.f32 %v2649, %v2469
    %v2651 = vadd.f32 %v2650, %v2475
    %v2652 = vadd.f32 %v2651, %v2479
    %v2653 = vadd.f32 %v2652, %v2485
    %v2654 = vadd.f32 %v2653, %v2489
    %v2655 = vadd.f32 %v2654, %v2495
    %v2656 = vadd.f32 %v2655, %v2499
    %v2657 = vadd.f32 %v2656, %v2505
    %v2658 = vadd.f32 %v2657, %v2509
    %v2659 = vadd.f32 %v2658, %v2515
    %v2660 = vadd.f32 %v2659, %v2519
    %v2661 = vadd.f32 %v2660, %v2525
    %v2662 = vadd.f32 %v2661, %v2529
    %v2663 = vadd.f32 %v2662, %v2535
    %v2664 = vadd.f32 %v2663, %v2539
    %v2665 = vadd.f32 %v2664, %v2545
    %v2666 = vadd.f32 %v2665, %v2549
    %v2667 = vadd.f32 %v2666, %v2555
    %v2668 = vadd.f32 %v2667, %v2559
    %v2669 = vadd.f32 %v2668, %v2565
    %v2670 = vadd.f32 %v2669, %v2569
    %v2671 = vadd.f32 %v2670, %v2575
    %v2672 = vadd.f32 %v2671, %v2579
    %v2673 = vadd.f32 %v2672, %v2585
    %v2674 = vadd.f32 %v2673, %v2589
    %v2675 = vadd.f32 %v2674, %v2595
    %v2676 = vadd.f32 %v2675, %v2599
    %v2677 = vadd.f32 %v2676, %v2605
    %v2678 = vadd.f32 %v2677, %v2609
    %v2679 = vrot.slane %v2678, 4
    %v2680 = vadd.f32 %v2678, %v2679
    %v2681 = vrot.slane %v2680, 2
    %v2682 = vadd.f32 %v2680, %v2681
    %v2683 = vrot.slane %v2682, 1
    %v2684 = vadd.f32 %v2682, %v2683
    %v2685 = vmul.f32 %v2453, %v2453
    %v2686 = vmul.f32 %v2455, %v2455
    %v2687 = vmul.f32 %v2457, %v2457
    %v2688 = vmul.f32 %v2459, %v2459
    %v2689 = vmul.f32 %v2463, %v2463
    %v2690 = vmul.f32 %v2465, %v2465
    %v2691 = vmul.f32 %v2467, %v2467
    %v2692 = vmul.f32 %v2469, %v2469
    %v2693 = vmul.f32 %v2473, %v2473
    %v2694 = vmul.f32 %v2475, %v2475
    %v2695 = vmul.f32 %v2477, %v2477
    %v2696 = vmul.f32 %v2479, %v2479
    %v2697 = vmul.f32 %v2483, %v2483
    %v2698 = vmul.f32 %v2485, %v2485
    %v2699 = vmul.f32 %v2487, %v2487
    %v2700 = vmul.f32 %v2489, %v2489
    %v2701 = vmul.f32 %v2493, %v2493
    %v2702 = vmul.f32 %v2495, %v2495
    %v2703 = vmul.f32 %v2497, %v2497
    %v2704 = vmul.f32 %v2499, %v2499
    %v2705 = vmul.f32 %v2503, %v2503
    %v2706 = vmul.f32 %v2505, %v2505
    %v2707 = vmul.f32 %v2507, %v2507
    %v2708 = vmul.f32 %v2509, %v2509
    %v2709 = vmul.f32 %v2513, %v2513
    %v2710 = vmul.f32 %v2515, %v2515
    %v2711 = vmul.f32 %v2517, %v2517
    %v2712 = vmul.f32 %v2519, %v2519
    %v2713 = vmul.f32 %v2523, %v2523
    %v2714 = vmul.f32 %v2525, %v2525
    %v2715 = vmul.f32 %v2527, %v2527
    %v2716 = vmul.f32 %v2529, %v2529
    %v2717 = vmul.f32 %v2533, %v2533
    %v2718 = vmul.f32 %v2535, %v2535
    %v2719 = vmul.f32 %v2537, %v2537
    %v2720 = vmul.f32 %v2539, %v2539
    %v2721 = vmul.f32 %v2543, %v2543
    %v2722 = vmul.f32 %v2545, %v2545
    %v2723 = vmul.f32 %v2547, %v2547
    %v2724 = vmul.f32 %v2549, %v2549
    %v2725 = vmul.f32 %v2553, %v2553
    %v2726 = vmul.f32 %v2555, %v2555
    %v2727 = vmul.f32 %v2557, %v2557
    %v2728 = vmul.f32 %v2559, %v2559
    %v2729 = vmul.f32 %v2563, %v2563
    %v2730 = vmul.f32 %v2565, %v2565
    %v2731 = vmul.f32 %v2567, %v2567
    %v2732 = vmul.f32 %v2569, %v2569
    %v2733 = vmul.f32 %v2573, %v2573
    %v2734 = vmul.f32 %v2575, %v2575
    %v2735 = vmul.f32 %v2577, %v2577
    %v2736 = vmul.f32 %v2579, %v2579
    %v2737 = vmul.f32 %v2583, %v2583
    %v2738 = vmul.f32 %v2585, %v2585
    %v2739 = vmul.f32 %v2587, %v2587
    %v2740 = vmul.f32 %v2589, %v2589
    %v2741 = vmul.f32 %v2593, %v2593
    %v2742 = vmul.f32 %v2595, %v2595
    %v2743 = vmul.f32 %v2597, %v2597
    %v2744 = vmul.f32 %v2599, %v2599
    %v2745 = vmul.f32 %v2603, %v2603
    %v2746 = vmul.f32 %v2605, %v2605
    %v2747 = vmul.f32 %v2607, %v2607
    %v2748 = vmul.f32 %v2609, %v2609
    %v2749 = vadd.f32 %v2685, %v2687
    %v2750 = vadd.f32 %v2749, %v2689
    %v2751 = vadd.f32 %v2750, %v2691
    %v2752 = vadd.f32 %v2751, %v2693
    %v2753 = vadd.f32 %v2752, %v2695
    %v2754 = vadd.f32 %v2753, %v2697
    %v2755 = vadd.f32 %v2754, %v2699
    %v2756 = vadd.f32 %v2755, %v2701
    %v2757 = vadd.f32 %v2756, %v2703
    %v2758 = vadd.f32 %v2757, %v2705
    %v2759 = vadd.f32 %v2758, %v2707
    %v2760 = vadd.f32 %v2759, %v2709
    %v2761 = vadd.f32 %v2760, %v2711
    %v2762 = vadd.f32 %v2761, %v2713
    %v2763 = vadd.f32 %v2762, %v2715
    %v2764 = vadd.f32 %v2763, %v2717
    %v2765 = vadd.f32 %v2764, %v2719
    %v2766 = vadd.f32 %v2765, %v2721
    %v2767 = vadd.f32 %v2766, %v2723
    %v2768 = vadd.f32 %v2767, %v2725
    %v2769 = vadd.f32 %v2768, %v2727
    %v2770 = vadd.f32 %v2769, %v2729
    %v2771 = vadd.f32 %v2770, %v2731
    %v2772 = vadd.f32 %v2771, %v2733
    %v2773 = vadd.f32 %v2772, %v2735
    %v2774 = vadd.f32 %v2773, %v2737
    %v2775 = vadd.f32 %v2774, %v2739
    %v2776 = vadd.f32 %v2775, %v2741
    %v2777 = vadd.f32 %v2776, %v2743
    %v2778 = vadd.f32 %v2777, %v2745
    %v2779 = vadd.f32 %v2778, %v2747
    %v2780 = vrot.slane %v2779, 4
    %v2781 = vadd.f32 %v2779, %v2780
    %v2782 = vrot.slane %v2781, 2
    %v2783 = vadd.f32 %v2781, %v2782
    %v2784 = vrot.slane %v2783, 1
    %v2785 = vadd.f32 %v2783, %v2784
    %v2786 = vadd.f32 %v2686, %v2688
    %v2787 = vadd.f32 %v2786, %v2690
    %v2788 = vadd.f32 %v2787, %v2692
    %v2789 = vadd.f32 %v2788, %v2694
    %v2790 = vadd.f32 %v2789, %v2696
    %v2791 = vadd.f32 %v2790, %v2698
    %v2792 = vadd.f32 %v2791, %v2700
    %v2793 = vadd.f32 %v2792, %v2702
    %v2794 = vadd.f32 %v2793, %v2704
    %v2795 = vadd.f32 %v2794, %v2706
    %v2796 = vadd.f32 %v2795, %v2708
    %v2797 = vadd.f32 %v2796, %v2710
    %v2798 = vadd.f32 %v2797, %v2712
    %v2799 = vadd.f32 %v2798, %v2714
    %v2800 = vadd.f32 %v2799, %v2716
    %v2801 = vadd.f32 %v2800, %v2718
    %v2802 = vadd.f32 %v2801, %v2720
    %v2803 = vadd.f32 %v2802, %v2722
    %v2804 = vadd.f32 %v2803, %v2724
    %v2805 = vadd.f32 %v2804, %v2726
    %v2806 = vadd.f32 %v2805, %v2728
    %v2807 = vadd.f32 %v2806, %v2730
    %v2808 = vadd.f32 %v2807, %v2732
    %v2809 = vadd.f32 %v2808, %v2734
    %v2810 = vadd.f32 %v2809, %v2736
    %v2811 = vadd.f32 %v2810, %v2738
    %v2812 = vadd.f32 %v2811, %v2740
    %v2813 = vadd.f32 %v2812, %v2742
    %v2814 = vadd.f32 %v2813, %v2744
    %v2815 = vadd.f32 %v2814, %v2746
    %v2816 = vadd.f32 %v2815, %v2748
    %v2817 = vrot.slane %v2816, 4
    %v2818 = vadd.f32 %v2816, %v2817
    %v2819 = vrot.slane %v2818, 2
    %v2820 = vadd.f32 %v2818, %v2819
    %v2821 = vrot.slane %v2820, 1
    %v2822 = vadd.f32 %v2820, %v2821
    %v2823 = vmul.f32 %v2647, 0.00390625
    %v2824 = vmul.f32 %v2684, 0.00390625
    %v2825 = vmul.f32 %v2785, 0.00390625
    %v2826 = vmul.f32 %v2822, 0.00390625
    %v2827 = vmul.f32 %v2823, %v2823
    %v2828 = vmul.f32 %v2824, %v2824
    %v2829 = vsub.f32 %v2825, %v2827
    %v2830 = vsub.f32 %v2826, %v2828
    %v2831 = vmax.f32 %v2829, 0.0
    %v2832 = vmax.f32 %v2830, 0.0
    %v2833 = vadd.f32 %v2831, 1e-05
    %v2834 = vadd.f32 %v2832, 1e-05
    %v2835 = vrsqrt.pop %v2833
    %v2836 = vrsqrt.pop %v2834
    %v2837 = vsub.f32 %v2453, %v2823
    %v2838 = vsub.f32 %v2455, %v2824
    %v2839 = vsub.f32 %v2457, %v2823
    %v2840 = vsub.f32 %v2459, %v2824
    %v2841 = vsub.f32 %v2463, %v2823
    %v2842 = vsub.f32 %v2465, %v2824
    %v2843 = vsub.f32 %v2467, %v2823
    %v2844 = vsub.f32 %v2469, %v2824
    %v2845 = vsub.f32 %v2473, %v2823
    %v2846 = vsub.f32 %v2475, %v2824
    %v2847 = vsub.f32 %v2477, %v2823
    %v2848 = vsub.f32 %v2479, %v2824
    %v2849 = vsub.f32 %v2483, %v2823
    %v2850 = vsub.f32 %v2485, %v2824
    %v2851 = vsub.f32 %v2487, %v2823
    %v2852 = vsub.f32 %v2489, %v2824
    %v2853 = vsub.f32 %v2493, %v2823
    %v2854 = vsub.f32 %v2495, %v2824
    %v2855 = vsub.f32 %v2497, %v2823
    %v2856 = vsub.f32 %v2499, %v2824
    %v2857 = vsub.f32 %v2503, %v2823
    %v2858 = vsub.f32 %v2505, %v2824
    %v2859 = vsub.f32 %v2507, %v2823
    %v2860 = vsub.f32 %v2509, %v2824
    %v2861 = vsub.f32 %v2513, %v2823
    %v2862 = vsub.f32 %v2515, %v2824
    %v2863 = vsub.f32 %v2517, %v2823
    %v2864 = vsub.f32 %v2519, %v2824
    %v2865 = vsub.f32 %v2523, %v2823
    %v2866 = vsub.f32 %v2525, %v2824
    %v2867 = vsub.f32 %v2527, %v2823
    %v2868 = vsub.f32 %v2529, %v2824
    %v2869 = vsub.f32 %v2533, %v2823
    %v2870 = vsub.f32 %v2535, %v2824
    %v2871 = vsub.f32 %v2537, %v2823
    %v2872 = vsub.f32 %v2539, %v2824
    %v2873 = vsub.f32 %v2543, %v2823
    %v2874 = vsub.f32 %v2545, %v2824
    %v2875 = vsub.f32 %v2547, %v2823
    %v2876 = vsub.f32 %v2549, %v2824
    %v2877 = vsub.f32 %v2553, %v2823
    %v2878 = vsub.f32 %v2555, %v2824
    %v2879 = vsub.f32 %v2557, %v2823
    %v2880 = vsub.f32 %v2559, %v2824
    %v2881 = vsub.f32 %v2563, %v2823
    %v2882 = vsub.f32 %v2565, %v2824
    %v2883 = vsub.f32 %v2567, %v2823
    %v2884 = vsub.f32 %v2569, %v2824
    %v2885 = vsub.f32 %v2573, %v2823
    %v2886 = vsub.f32 %v2575, %v2824
    %v2887 = vsub.f32 %v2577, %v2823
    %v2888 = vsub.f32 %v2579, %v2824
    %v2889 = vsub.f32 %v2583, %v2823
    %v2890 = vsub.f32 %v2585, %v2824
    %v2891 = vsub.f32 %v2587, %v2823
    %v2892 = vsub.f32 %v2589, %v2824
    %v2893 = vsub.f32 %v2593, %v2823
    %v2894 = vsub.f32 %v2595, %v2824
    %v2895 = vsub.f32 %v2597, %v2823
    %v2896 = vsub.f32 %v2599, %v2824
    %v2897 = vsub.f32 %v2603, %v2823
    %v2898 = vsub.f32 %v2605, %v2824
    %v2899 = vsub.f32 %v2607, %v2823
    %v2900 = vsub.f32 %v2609, %v2824
    %v2901 = vmul.f32 %v2837, %v2835
    %v2902 = vmul.f32 %v2838, %v2836
    %v2903 = vmul.f32 %v2839, %v2835
    %v2904 = vmul.f32 %v2840, %v2836
    %v2905 = vmul.f32 %v2841, %v2835
    %v2906 = vmul.f32 %v2842, %v2836
    %v2907 = vmul.f32 %v2843, %v2835
    %v2908 = vmul.f32 %v2844, %v2836
    %v2909 = vmul.f32 %v2845, %v2835
    %v2910 = vmul.f32 %v2846, %v2836
    %v2911 = vmul.f32 %v2847, %v2835
    %v2912 = vmul.f32 %v2848, %v2836
    %v2913 = vmul.f32 %v2849, %v2835
    %v2914 = vmul.f32 %v2850, %v2836
    %v2915 = vmul.f32 %v2851, %v2835
    %v2916 = vmul.f32 %v2852, %v2836
    %v2917 = vmul.f32 %v2853, %v2835
    %v2918 = vmul.f32 %v2854, %v2836
    %v2919 = vmul.f32 %v2855, %v2835
    %v2920 = vmul.f32 %v2856, %v2836
    %v2921 = vmul.f32 %v2857, %v2835
    %v2922 = vmul.f32 %v2858, %v2836
    %v2923 = vmul.f32 %v2859, %v2835
    %v2924 = vmul.f32 %v2860, %v2836
    %v2925 = vmul.f32 %v2861, %v2835
    %v2926 = vmul.f32 %v2862, %v2836
    %v2927 = vmul.f32 %v2863, %v2835
    %v2928 = vmul.f32 %v2864, %v2836
    %v2929 = vmul.f32 %v2865, %v2835
    %v2930 = vmul.f32 %v2866, %v2836
    %v2931 = vmul.f32 %v2867, %v2835
    %v2932 = vmul.f32 %v2868, %v2836
    %v2933 = vmul.f32 %v2869, %v2835
    %v2934 = vmul.f32 %v2870, %v2836
    %v2935 = vmul.f32 %v2871, %v2835
    %v2936 = vmul.f32 %v2872, %v2836
    %v2937 = vmul.f32 %v2873, %v2835
    %v2938 = vmul.f32 %v2874, %v2836
    %v2939 = vmul.f32 %v2875, %v2835
    %v2940 = vmul.f32 %v2876, %v2836
    %v2941 = vmul.f32 %v2877, %v2835
    %v2942 = vmul.f32 %v2878, %v2836
    %v2943 = vmul.f32 %v2879, %v2835
    %v2944 = vmul.f32 %v2880, %v2836
    %v2945 = vmul.f32 %v2881, %v2835
    %v2946 = vmul.f32 %v2882, %v2836
    %v2947 = vmul.f32 %v2883, %v2835
    %v2948 = vmul.f32 %v2884, %v2836
    %v2949 = vmul.f32 %v2885, %v2835
    %v2950 = vmul.f32 %v2886, %v2836
    %v2951 = vmul.f32 %v2887, %v2835
    %v2952 = vmul.f32 %v2888, %v2836
    %v2953 = vmul.f32 %v2889, %v2835
    %v2954 = vmul.f32 %v2890, %v2836
    %v2955 = vmul.f32 %v2891, %v2835
    %v2956 = vmul.f32 %v2892, %v2836
    %v2957 = vmul.f32 %v2893, %v2835
    %v2958 = vmul.f32 %v2894, %v2836
    %v2959 = vmul.f32 %v2895, %v2835
    %v2960 = vmul.f32 %v2896, %v2836
    %v2961 = vmul.f32 %v2897, %v2835
    %v2962 = vmul.f32 %v2898, %v2836
    %v2963 = vmul.f32 %v2899, %v2835
    %v2964 = vmul.f32 %v2900, %v2836
    %2965 = vset.pattern.permute.xlu0 1
    %2966 = vperm.xlu0 %2965, %v2098
    %v2967 = vpop.permute.xlu0 %2966
    %2969 = vset.pattern.permute.xlu0 1
    %2970 = vperm.xlu0 %2969, %v2099
    %v2971 = vpop.permute.xlu0 %2970
    %2973 = vset.pattern.permute.xlu0 1
    %2974 = vperm.xlu0 %2973, %v2100
    %v2975 = vpop.permute.xlu0 %2974
    %2977 = vset.pattern.permute.xlu0 1
    %2978 = vperm.xlu0 %2977, %v2101
    %v2979 = vpop.permute.xlu0 %2978
    %2981 = vset.pattern.permute.xlu0 1
    %2982 = vperm.xlu0 %2981, %v2102
    %v2983 = vpop.permute.xlu0 %2982
    %2985 = vset.pattern.permute.xlu0 1
    %2986 = vperm.xlu0 %2985, %v2103
    %v2987 = vpop.permute.xlu0 %2986
    %2989 = vset.pattern.permute.xlu0 1
    %2990 = vperm.xlu0 %2989, %v2104
    %v2991 = vpop.permute.xlu0 %2990
    %2993 = vset.pattern.permute.xlu0 1
    %2994 = vperm.xlu0 %2993, %v2105
    %v2995 = vpop.permute.xlu0 %2994
    %2997 = vset.pattern.permute.xlu0 1
    %2998 = vperm.xlu0 %2997, %v2106
    %v2999 = vpop.permute.xlu0 %2998
    %3001 = vset.pattern.permute.xlu0 1
    %3002 = vperm.xlu0 %3001, %v2107
    %v3003 = vpop.permute.xlu0 %3002
    %3005 = vset.pattern.permute.xlu0 1
    %3006 = vperm.xlu0 %3005, %v2108
    %v3007 = vpop.permute.xlu0 %3006
    %3009 = vset.pattern.permute.xlu0 1
    %3010 = vperm.xlu0 %3009, %v2109
    %v3011 = vpop.permute.xlu0 %3010
    %3013 = vset.pattern.permute.xlu0 1
    %3014 = vperm.xlu0 %3013, %v2110
    %v3015 = vpop.permute.xlu0 %3014
    %3017 = vset.pattern.permute.xlu0 1
    %3018 = vperm.xlu0 %3017, %v2111
    %v3019 = vpop.permute.xlu0 %3018
    %3021 = vset.pattern.permute.xlu0 1
    %3022 = vperm.xlu0 %3021, %v2112
    %v3023 = vpop.permute.xlu0 %3022
    %3025 = vset.pattern.permute.xlu0 1
    %3026 = vperm.xlu0 %3025, %v2113
    %v3027 = vpop.permute.xlu0 %3026
    %3029 = vset.pattern.permute.xlu0 1
    %3030 = vperm.xlu0 %3029, %v2114
    %v3031 = vpop.permute.xlu0 %3030
    %3033 = vset.pattern.permute.xlu0 1
    %3034 = vperm.xlu0 %3033, %v2115
    %v3035 = vpop.permute.xlu0 %3034
    %3037 = vset.pattern.permute.xlu0 1
    %3038 = vperm.xlu0 %3037, %v2116
    %v3039 = vpop.permute.xlu0 %3038
    %3041 = vset.pattern.permute.xlu0 1
    %3042 = vperm.xlu0 %3041, %v2117
    %v3043 = vpop.permute.xlu0 %3042
    %3045 = vset.pattern.permute.xlu0 1
    %3046 = vperm.xlu0 %3045, %v2118
    %v3047 = vpop.permute.xlu0 %3046
    %3049 = vset.pattern.permute.xlu0 1
    %3050 = vperm.xlu0 %3049, %v2119
    %v3051 = vpop.permute.xlu0 %3050
    %3053 = vset.pattern.permute.xlu0 1
    %3054 = vperm.xlu0 %3053, %v2120
    %v3055 = vpop.permute.xlu0 %3054
    %3057 = vset.pattern.permute.xlu0 1
    %3058 = vperm.xlu0 %3057, %v2121
    %v3059 = vpop.permute.xlu0 %3058
    %3061 = vset.pattern.permute.xlu0 1
    %3062 = vperm.xlu0 %3061, %v2122
    %v3063 = vpop.permute.xlu0 %3062
    %3065 = vset.pattern.permute.xlu0 1
    %3066 = vperm.xlu0 %3065, %v2123
    %v3067 = vpop.permute.xlu0 %3066
    %3069 = vset.pattern.permute.xlu0 1
    %3070 = vperm.xlu0 %3069, %v2124
    %v3071 = vpop.permute.xlu0 %3070
    %3073 = vset.pattern.permute.xlu0 1
    %3074 = vperm.xlu0 %3073, %v2125
    %v3075 = vpop.permute.xlu0 %3074
    %3077 = vset.pattern.permute.xlu0 1
    %3078 = vperm.xlu0 %3077, %v2126
    %v3079 = vpop.permute.xlu0 %3078
    %3081 = vset.pattern.permute.xlu0 1
    %3082 = vperm.xlu0 %3081, %v2127
    %v3083 = vpop.permute.xlu0 %3082
    %3085 = vset.pattern.permute.xlu0 1
    %3086 = vperm.xlu0 %3085, %v2128
    %v3087 = vpop.permute.xlu0 %3086
    %3089 = vset.pattern.permute.xlu0 1
    %3090 = vperm.xlu0 %3089, %v2129
    %v3091 = vpop.permute.xlu0 %3090
    %v3093 = vmul.f32 %v2901, %v2967
    %v3094 = vmul.f32 %v2902, %v2967
    %v3095 = vmul.f32 %v2903, %v2971
    %v3096 = vmul.f32 %v2904, %v2971
    %v3097 = vmul.f32 %v2905, %v2975
    %v3098 = vmul.f32 %v2906, %v2975
    %v3099 = vmul.f32 %v2907, %v2979
    %v3100 = vmul.f32 %v2908, %v2979
    %v3101 = vmul.f32 %v2909, %v2983
    %v3102 = vmul.f32 %v2910, %v2983
    %v3103 = vmul.f32 %v2911, %v2987
    %v3104 = vmul.f32 %v2912, %v2987
    %v3105 = vmul.f32 %v2913, %v2991
    %v3106 = vmul.f32 %v2914, %v2991
    %v3107 = vmul.f32 %v2915, %v2995
    %v3108 = vmul.f32 %v2916, %v2995
    %v3109 = vmul.f32 %v2917, %v2999
    %v3110 = vmul.f32 %v2918, %v2999
    %v3111 = vmul.f32 %v2919, %v3003
    %v3112 = vmul.f32 %v2920, %v3003
    %v3113 = vmul.f32 %v2921, %v3007
    %v3114 = vmul.f32 %v2922, %v3007
    %v3115 = vmul.f32 %v2923, %v3011
    %v3116 = vmul.f32 %v2924, %v3011
    %v3117 = vmul.f32 %v2925, %v3015
    %v3118 = vmul.f32 %v2926, %v3015
    %v3119 = vmul.f32 %v2927, %v3019
    %v3120 = vmul.f32 %v2928, %v3019
    %v3121 = vmul.f32 %v2929, %v3023
    %v3122 = vmul.f32 %v2930, %v3023
    %v3123 = vmul.f32 %v2931, %v3027
    %v3124 = vmul.f32 %v2932, %v3027
    %v3125 = vmul.f32 %v2933, %v3031
    %v3126 = vmul.f32 %v2934, %v3031
    %v3127 = vmul.f32 %v2935, %v3035
    %v3128 = vmul.f32 %v2936, %v3035
    %v3129 = vmul.f32 %v2937, %v3039
    %v3130 = vmul.f32 %v2938, %v3039
    %v3131 = vmul.f32 %v2939, %v3043
    %v3132 = vmul.f32 %v2940, %v3043
    %v3133 = vmul.f32 %v2941, %v3047
    %v3134 = vmul.f32 %v2942, %v3047
    %v3135 = vmul.f32 %v2943, %v3051
    %v3136 = vmul.f32 %v2944, %v3051
    %v3137 = vmul.f32 %v2945, %v3055
    %v3138 = vmul.f32 %v2946, %v3055
    %v3139 = vmul.f32 %v2947, %v3059
    %v3140 = vmul.f32 %v2948, %v3059
    %v3141 = vmul.f32 %v2949, %v3063
    %v3142 = vmul.f32 %v2950, %v3063
    %v3143 = vmul.f32 %v2951, %v3067
    %v3144 = vmul.f32 %v2952, %v3067
    %v3145 = vmul.f32 %v2953, %v3071
    %v3146 = vmul.f32 %v2954, %v3071
    %v3147 = vmul.f32 %v2955, %v3075
    %v3148 = vmul.f32 %v2956, %v3075
    %v3149 = vmul.f32 %v2957, %v3079
    %v3150 = vmul.f32 %v2958, %v3079
    %v3151 = vmul.f32 %v2959, %v3083
    %v3152 = vmul.f32 %v2960, %v3083
    %v3153 = vmul.f32 %v2961, %v3087
    %v3154 = vmul.f32 %v2962, %v3087
    %v3155 = vmul.f32 %v2963, %v3091
    %v3156 = vmul.f32 %v2964, %v3091
    %3157 = vset.pattern.permute.xlu0 2
    %3158 = vperm.xlu0 %3157, %v2098
    %v3159 = vpop.permute.xlu0 %3158
    %3161 = vset.pattern.permute.xlu0 2
    %3162 = vperm.xlu0 %3161, %v2099
    %v3163 = vpop.permute.xlu0 %3162
    %3165 = vset.pattern.permute.xlu0 2
    %3166 = vperm.xlu0 %3165, %v2100
    %v3167 = vpop.permute.xlu0 %3166
    %3169 = vset.pattern.permute.xlu0 2
    %3170 = vperm.xlu0 %3169, %v2101
    %v3171 = vpop.permute.xlu0 %3170
    %3173 = vset.pattern.permute.xlu0 2
    %3174 = vperm.xlu0 %3173, %v2102
    %v3175 = vpop.permute.xlu0 %3174
    %3177 = vset.pattern.permute.xlu0 2
    %3178 = vperm.xlu0 %3177, %v2103
    %v3179 = vpop.permute.xlu0 %3178
    %3181 = vset.pattern.permute.xlu0 2
    %3182 = vperm.xlu0 %3181, %v2104
    %v3183 = vpop.permute.xlu0 %3182
    %3185 = vset.pattern.permute.xlu0 2
    %3186 = vperm.xlu0 %3185, %v2105
    %v3187 = vpop.permute.xlu0 %3186
    %3189 = vset.pattern.permute.xlu0 2
    %3190 = vperm.xlu0 %3189, %v2106
    %v3191 = vpop.permute.xlu0 %3190
    %3193 = vset.pattern.permute.xlu0 2
    %3194 = vperm.xlu0 %3193, %v2107
    %v3195 = vpop.permute.xlu0 %3194
    %3197 = vset.pattern.permute.xlu0 2
    %3198 = vperm.xlu0 %3197, %v2108
    %v3199 = vpop.permute.xlu0 %3198
    %3201 = vset.pattern.permute.xlu0 2
    %3202 = vperm.xlu0 %3201, %v2109
    %v3203 = vpop.permute.xlu0 %3202
    %3205 = vset.pattern.permute.xlu0 2
    %3206 = vperm.xlu0 %3205, %v2110
    %v3207 = vpop.permute.xlu0 %3206
    %3209 = vset.pattern.permute.xlu0 2
    %3210 = vperm.xlu0 %3209, %v2111
    %v3211 = vpop.permute.xlu0 %3210
    %3213 = vset.pattern.permute.xlu0 2
    %3214 = vperm.xlu0 %3213, %v2112
    %v3215 = vpop.permute.xlu0 %3214
    %3217 = vset.pattern.permute.xlu0 2
    %3218 = vperm.xlu0 %3217, %v2113
    %v3219 = vpop.permute.xlu0 %3218
    %3221 = vset.pattern.permute.xlu0 2
    %3222 = vperm.xlu0 %3221, %v2114
    %v3223 = vpop.permute.xlu0 %3222
    %3225 = vset.pattern.permute.xlu0 2
    %3226 = vperm.xlu0 %3225, %v2115
    %v3227 = vpop.permute.xlu0 %3226
    %3229 = vset.pattern.permute.xlu0 2
    %3230 = vperm.xlu0 %3229, %v2116
    %v3231 = vpop.permute.xlu0 %3230
    %3233 = vset.pattern.permute.xlu0 2
    %3234 = vperm.xlu0 %3233, %v2117
    %v3235 = vpop.permute.xlu0 %3234
    %3237 = vset.pattern.permute.xlu0 2
    %3238 = vperm.xlu0 %3237, %v2118
    %v3239 = vpop.permute.xlu0 %3238
    %3241 = vset.pattern.permute.xlu0 2
    %3242 = vperm.xlu0 %3241, %v2119
    %v3243 = vpop.permute.xlu0 %3242
    %3245 = vset.pattern.permute.xlu0 2
    %3246 = vperm.xlu0 %3245, %v2120
    %v3247 = vpop.permute.xlu0 %3246
    %3249 = vset.pattern.permute.xlu0 2
    %3250 = vperm.xlu0 %3249, %v2121
    %v3251 = vpop.permute.xlu0 %3250
    %3253 = vset.pattern.permute.xlu0 2
    %3254 = vperm.xlu0 %3253, %v2122
    %v3255 = vpop.permute.xlu0 %3254
    %3257 = vset.pattern.permute.xlu0 2
    %3258 = vperm.xlu0 %3257, %v2123
    %v3259 = vpop.permute.xlu0 %3258
    %3261 = vset.pattern.permute.xlu0 2
    %3262 = vperm.xlu0 %3261, %v2124
    %v3263 = vpop.permute.xlu0 %3262
    %3265 = vset.pattern.permute.xlu0 2
    %3266 = vperm.xlu0 %3265, %v2125
    %v3267 = vpop.permute.xlu0 %3266
    %3269 = vset.pattern.permute.xlu0 2
    %3270 = vperm.xlu0 %3269, %v2126
    %v3271 = vpop.permute.xlu0 %3270
    %3273 = vset.pattern.permute.xlu0 2
    %3274 = vperm.xlu0 %3273, %v2127
    %v3275 = vpop.permute.xlu0 %3274
    %3277 = vset.pattern.permute.xlu0 2
    %3278 = vperm.xlu0 %3277, %v2128
    %v3279 = vpop.permute.xlu0 %3278
    %3281 = vset.pattern.permute.xlu0 2
    %3282 = vperm.xlu0 %3281, %v2129
    %v3283 = vpop.permute.xlu0 %3282
    %v3285 = vadd.f32 %v3093, %v3159
    %v3286 = vadd.f32 %v3094, %v3159
    %v3287 = vadd.f32 %v3095, %v3163
    %v3288 = vadd.f32 %v3096, %v3163
    %v3289 = vadd.f32 %v3097, %v3167
    %v3290 = vadd.f32 %v3098, %v3167
    %v3291 = vadd.f32 %v3099, %v3171
    %v3292 = vadd.f32 %v3100, %v3171
    %v3293 = vadd.f32 %v3101, %v3175
    %v3294 = vadd.f32 %v3102, %v3175
    %v3295 = vadd.f32 %v3103, %v3179
    %v3296 = vadd.f32 %v3104, %v3179
    %v3297 = vadd.f32 %v3105, %v3183
    %v3298 = vadd.f32 %v3106, %v3183
    %v3299 = vadd.f32 %v3107, %v3187
    %v3300 = vadd.f32 %v3108, %v3187
    %v3301 = vadd.f32 %v3109, %v3191
    %v3302 = vadd.f32 %v3110, %v3191
    %v3303 = vadd.f32 %v3111, %v3195
    %v3304 = vadd.f32 %v3112, %v3195
    %v3305 = vadd.f32 %v3113, %v3199
    %v3306 = vadd.f32 %v3114, %v3199
    %v3307 = vadd.f32 %v3115, %v3203
    %v3308 = vadd.f32 %v3116, %v3203
    %v3309 = vadd.f32 %v3117, %v3207
    %v3310 = vadd.f32 %v3118, %v3207
    %v3311 = vadd.f32 %v3119, %v3211
    %v3312 = vadd.f32 %v3120, %v3211
    %v3313 = vadd.f32 %v3121, %v3215
    %v3314 = vadd.f32 %v3122, %v3215
    %v3315 = vadd.f32 %v3123, %v3219
    %v3316 = vadd.f32 %v3124, %v3219
    %v3317 = vadd.f32 %v3125, %v3223
    %v3318 = vadd.f32 %v3126, %v3223
    %v3319 = vadd.f32 %v3127, %v3227
    %v3320 = vadd.f32 %v3128, %v3227
    %v3321 = vadd.f32 %v3129, %v3231
    %v3322 = vadd.f32 %v3130, %v3231
    %v3323 = vadd.f32 %v3131, %v3235
    %v3324 = vadd.f32 %v3132, %v3235
    %v3325 = vadd.f32 %v3133, %v3239
    %v3326 = vadd.f32 %v3134, %v3239
    %v3327 = vadd.f32 %v3135, %v3243
    %v3328 = vadd.f32 %v3136, %v3243
    %v3329 = vadd.f32 %v3137, %v3247
    %v3330 = vadd.f32 %v3138, %v3247
    %v3331 = vadd.f32 %v3139, %v3251
    %v3332 = vadd.f32 %v3140, %v3251
    %v3333 = vadd.f32 %v3141, %v3255
    %v3334 = vadd.f32 %v3142, %v3255
    %v3335 = vadd.f32 %v3143, %v3259
    %v3336 = vadd.f32 %v3144, %v3259
    %v3337 = vadd.f32 %v3145, %v3263
    %v3338 = vadd.f32 %v3146, %v3263
    %v3339 = vadd.f32 %v3147, %v3267
    %v3340 = vadd.f32 %v3148, %v3267
    %v3341 = vadd.f32 %v3149, %v3271
    %v3342 = vadd.f32 %v3150, %v3271
    %v3343 = vadd.f32 %v3151, %v3275
    %v3344 = vadd.f32 %v3152, %v3275
    %v3345 = vadd.f32 %v3153, %v3279
    %v3346 = vadd.f32 %v3154, %v3279
    %v3347 = vadd.f32 %v3155, %v3283
    %v3348 = vadd.f32 %v3156, %v3283
    %v3349 = vmax.f32 %v3285, 0.0
    %v3350 = vmax.f32 %v3286, 0.0
    %v3351 = vmax.f32 %v3287, 0.0
    %v3352 = vmax.f32 %v3288, 0.0
    %v3353 = vmax.f32 %v3289, 0.0
    %v3354 = vmax.f32 %v3290, 0.0
    %v3355 = vmax.f32 %v3291, 0.0
    %v3356 = vmax.f32 %v3292, 0.0
    %v3357 = vmax.f32 %v3293, 0.0
    %v3358 = vmax.f32 %v3294, 0.0
    %v3359 = vmax.f32 %v3295, 0.0
    %v3360 = vmax.f32 %v3296, 0.0
    %v3361 = vmax.f32 %v3297, 0.0
    %v3362 = vmax.f32 %v3298, 0.0
    %v3363 = vmax.f32 %v3299, 0.0
    %v3364 = vmax.f32 %v3300, 0.0
    %v3365 = vmax.f32 %v3301, 0.0
    %v3366 = vmax.f32 %v3302, 0.0
    %v3367 = vmax.f32 %v3303, 0.0
    %v3368 = vmax.f32 %v3304, 0.0
    %v3369 = vmax.f32 %v3305, 0.0
    %v3370 = vmax.f32 %v3306, 0.0
    %v3371 = vmax.f32 %v3307, 0.0
    %v3372 = vmax.f32 %v3308, 0.0
    %v3373 = vmax.f32 %v3309, 0.0
    %v3374 = vmax.f32 %v3310, 0.0
    %v3375 = vmax.f32 %v3311, 0.0
    %v3376 = vmax.f32 %v3312, 0.0
    %v3377 = vmax.f32 %v3313, 0.0
    %v3378 = vmax.f32 %v3314, 0.0
    %v3379 = vmax.f32 %v3315, 0.0
    %v3380 = vmax.f32 %v3316, 0.0
    %v3381 = vmax.f32 %v3317, 0.0
    %v3382 = vmax.f32 %v3318, 0.0
    %v3383 = vmax.f32 %v3319, 0.0
    %v3384 = vmax.f32 %v3320, 0.0
    %v3385 = vmax.f32 %v3321, 0.0
    %v3386 = vmax.f32 %v3322, 0.0
    %v3387 = vmax.f32 %v3323, 0.0
    %v3388 = vmax.f32 %v3324, 0.0
    %v3389 = vmax.f32 %v3325, 0.0
    %v3390 = vmax.f32 %v3326, 0.0
    %v3391 = vmax.f32 %v3327, 0.0
    %v3392 = vmax.f32 %v3328, 0.0
    %v3393 = vmax.f32 %v3329, 0.0
    %v3394 = vmax.f32 %v3330, 0.0
    %v3395 = vmax.f32 %v3331, 0.0
    %v3396 = vmax.f32 %v3332, 0.0
    %v3397 = vmax.f32 %v3333, 0.0
    %v3398 = vmax.f32 %v3334, 0.0
    %v3399 = vmax.f32 %v3335, 0.0
    %v3400 = vmax.f32 %v3336, 0.0
    %v3401 = vmax.f32 %v3337, 0.0
    %v3402 = vmax.f32 %v3338, 0.0
    %v3403 = vmax.f32 %v3339, 0.0
    %v3404 = vmax.f32 %v3340, 0.0
    %v3405 = vmax.f32 %v3341, 0.0
    %v3406 = vmax.f32 %v3342, 0.0
    %v3407 = vmax.f32 %v3343, 0.0
    %v3408 = vmax.f32 %v3344, 0.0
    %v3409 = vmax.f32 %v3345, 0.0
    %v3410 = vmax.f32 %v3346, 0.0
    %v3411 = vmax.f32 %v3347, 0.0
    %v3412 = vmax.f32 %v3348, 0.0
    %v3413 = vpack.c.bf16 %v3351, %v3349
    %v3414 = vpack.c.bf16 %v3352, %v3350
    %v3415 = vpack.c.bf16 %v3355, %v3353
    %v3416 = vpack.c.bf16 %v3356, %v3354
    %v3417 = vpack.c.bf16 %v3359, %v3357
    %v3418 = vpack.c.bf16 %v3360, %v3358
    %v3419 = vpack.c.bf16 %v3363, %v3361
    %v3420 = vpack.c.bf16 %v3364, %v3362
    %v3421 = vpack.c.bf16 %v3367, %v3365
    %v3422 = vpack.c.bf16 %v3368, %v3366
    %v3423 = vpack.c.bf16 %v3371, %v3369
    %v3424 = vpack.c.bf16 %v3372, %v3370
    %v3425 = vpack.c.bf16 %v3375, %v3373
    %v3426 = vpack.c.bf16 %v3376, %v3374
    %v3427 = vpack.c.bf16 %v3379, %v3377
    %v3428 = vpack.c.bf16 %v3380, %v3378
    %v3429 = vpack.c.bf16 %v3383, %v3381
    %v3430 = vpack.c.bf16 %v3384, %v3382
    %v3431 = vpack.c.bf16 %v3387, %v3385
    %v3432 = vpack.c.bf16 %v3388, %v3386
    %v3433 = vpack.c.bf16 %v3391, %v3389
    %v3434 = vpack.c.bf16 %v3392, %v3390
    %v3435 = vpack.c.bf16 %v3395, %v3393
    %v3436 = vpack.c.bf16 %v3396, %v3394
    %v3437 = vpack.c.bf16 %v3399, %v3397
    %v3438 = vpack.c.bf16 %v3400, %v3398
    %v3439 = vpack.c.bf16 %v3403, %v3401
    %v3440 = vpack.c.bf16 %v3404, %v3402
    %v3441 = vpack.c.bf16 %v3407, %v3405
    %v3442 = vpack.c.bf16 %v3408, %v3406
    %v3443 = vpack.c.bf16 %v3411, %v3409
    %v3444 = vpack.c.bf16 %v3412, %v3410
    %v3445 = vld [vmem:[%s9] sm:$0xff]
    %v3446 = vld [vmem:[%s9 + $0x8] sm:$0xff]
    %v3447 = vld [vmem:[%s9 + $0x10] sm:$0xff]
    %v3448 = vld [vmem:[%s9 + $0x18] sm:$0xff]
    %v3449 = vld [vmem:[%s9 + $0x20] sm:$0xff]
    %v3450 = vld [vmem:[%s9 + $0x28] sm:$0xff]
    %v3451 = vld [vmem:[%s9 + $0x30] sm:$0xff]
    %v3452 = vld [vmem:[%s9 + $0x38] sm:$0xff]
    %v3453 = vld [vmem:[%s10] sm:$0xff]
    %v3454 = vld [vmem:[%s10 + $0x8] sm:$0xff]
    %v3455 = vld [vmem:[%s10 + $0x10] sm:$0xff]
    %v3456 = vld [vmem:[%s10 + $0x18] sm:$0xff]
    %v3457 = vld [vmem:[%s10 + $0x20] sm:$0xff]
    %v3458 = vld [vmem:[%s10 + $0x28] sm:$0xff]
    %v3459 = vld [vmem:[%s10 + $0x30] sm:$0xff]
    %v3460 = vld [vmem:[%s10 + $0x38] sm:$0xff]
    %3462 = vset.pattern.permute.xlu0 0
    %3463 = vperm.xlu0 %3462, %v3453
    %v3464 = vpop.permute.xlu0 %3463
    %3467 = vset.pattern.permute.xlu0 0
    %3468 = vperm.xlu0 %3467, %v3454
    %v3469 = vpop.permute.xlu0 %3468
    %3472 = vset.pattern.permute.xlu0 0
    %3473 = vperm.xlu0 %3472, %v3455
    %v3474 = vpop.permute.xlu0 %3473
    %3477 = vset.pattern.permute.xlu0 0
    %3478 = vperm.xlu0 %3477, %v3456
    %v3479 = vpop.permute.xlu0 %3478
    %3482 = vset.pattern.permute.xlu0 0
    %3483 = vperm.xlu0 %3482, %v3457
    %v3484 = vpop.permute.xlu0 %3483
    %3487 = vset.pattern.permute.xlu0 0
    %3488 = vperm.xlu0 %3487, %v3458
    %v3489 = vpop.permute.xlu0 %3488
    %3492 = vset.pattern.permute.xlu0 0
    %3493 = vperm.xlu0 %3492, %v3459
    %v3494 = vpop.permute.xlu0 %3493
    %3497 = vset.pattern.permute.xlu0 0
    %3498 = vperm.xlu0 %3497, %v3460
    %v3499 = vpop.permute.xlu0 %3498
    %v3509 = vunpack.c.l.b16 %v3445
    %v3510 = vunpack.c.h.b16 %v3445
    %v3511 = vunpack.c.l.b16 %v3446
    %v3512 = vunpack.c.h.b16 %v3446
    %v3513 = vunpack.c.l.b16 %v3447
    %v3514 = vunpack.c.h.b16 %v3447
    %v3515 = vunpack.c.l.b16 %v3448
    %v3516 = vunpack.c.h.b16 %v3448
    %v3517 = vunpack.c.l.b16 %v3449
    %v3518 = vunpack.c.h.b16 %v3449
    %v3519 = vunpack.c.l.b16 %v3450
    %v3520 = vunpack.c.h.b16 %v3450
    %v3521 = vunpack.c.l.b16 %v3451
    %v3522 = vunpack.c.h.b16 %v3451
    %v3523 = vunpack.c.l.b16 %v3452
    %v3524 = vunpack.c.h.b16 %v3452
    %v3525 = vpack.c.b16 %v3511, %v3509
    %v3526 = vpack.c.b16 %v3512, %v3510
    %v3527 = vpack.c.b16 %v3515, %v3513
    %v3528 = vpack.c.b16 %v3516, %v3514
    %v3529 = vpack.c.b16 %v3519, %v3517
    %v3530 = vpack.c.b16 %v3520, %v3518
    %v3531 = vpack.c.b16 %v3523, %v3521
    %v3532 = vpack.c.b16 %v3524, %v3522
    %3541 = vmatprep.subr.bf16.mxu0 %v3414
    %3542 = vmatpush1.bf16.msra.mxu0 %v3413
    %3543 = vmatprep.subr.bf16.mxu0 %v3416
    %3544 = vmatpush1.bf16.msra.mxu0 %v3415
    %3545 = vmatprep.subr.bf16.mxu0 %v3418
    %3546 = vmatpush1.bf16.msra.mxu0 %v3417
    %3547 = vmatprep.subr.bf16.mxu0 %v3420
    %3548 = vmatpush1.bf16.msra.mxu0 %v3419
    %3549 = vmatprep.subr.bf16.mxu0 %v3422
    %3550 = vmatpush1.bf16.msra.mxu0 %v3421
    %3551 = vmatprep.subr.bf16.mxu0 %v3424
    %3552 = vmatpush1.bf16.msra.mxu0 %v3423
    %3553 = vmatprep.subr.bf16.mxu0 %v3426
    %3554 = vmatpush1.bf16.msra.mxu0 %v3425
    %3555 = vmatprep.subr.bf16.mxu0 %v3428
    %3556 = vmatpush1.bf16.msra.mxu0 %v3427
    %3557 = vmatprep.subr.bf16.mxu0 %v3430
    %3558 = vmatpush1.bf16.msra.mxu0 %v3429
    %3559 = vmatprep.subr.bf16.mxu0 %v3432
    %3560 = vmatpush1.bf16.msra.mxu0 %v3431
    %3561 = vmatprep.subr.bf16.mxu0 %v3434
    %3562 = vmatpush1.bf16.msra.mxu0 %v3433
    %3563 = vmatprep.subr.bf16.mxu0 %v3436
    %3564 = vmatpush1.bf16.msra.mxu0 %v3435
    %3565 = vmatprep.subr.bf16.mxu0 %v3438
    %3566 = vmatpush1.bf16.msra.mxu0 %v3437
    %3567 = vmatprep.subr.bf16.mxu0 %v3440
    %3568 = vmatpush1.bf16.msra.mxu0 %v3439
    %3569 = vmatprep.subr.bf16.mxu0 %v3442
    %3570 = vmatpush1.bf16.msra.mxu0 %v3441
    %3571 = vmatprep.subr.bf16.mxu0 %v3444
    %3572 = vmatpush1.bf16.msra.mxu0 %v3443
    %3573 = vmatprep.mubr.bf16.mxu0 %v3526
    %3574 = vmatmul.mubr.bf16.gmra.mrb[0].mxu0 %v3525
    %v3575 = vpop.f32.mrb[0].mxu0
    %v3576 = vadd.f32 %v3464, %v3575
    %v3577 = vpop.f32.mrb[0].mxu0
    %v3578 = vadd.f32 %v3464, %v3577
    %v3579 = vpop.f32.mrb[0].mxu0
    %v3580 = vadd.f32 %v3469, %v3579
    %v3581 = vpop.f32.mrb[0].mxu0
    %v3582 = vadd.f32 %v3469, %v3581
    %3583 = vmatprep.mubr.bf16.mxu0 %v3528
    %3584 = vmatmul.mubr.bf16.gmra.mrb[0].mxu0 %v3527
    %v3585 = vpop.f32.mrb[0].mxu0
    %v3586 = vadd.f32 %v3474, %v3585
    %v3587 = vpop.f32.mrb[0].mxu0
    %v3588 = vadd.f32 %v3474, %v3587
    %v3589 = vpop.f32.mrb[0].mxu0
    %v3590 = vadd.f32 %v3479, %v3589
    %v3591 = vpop.f32.mrb[0].mxu0
    %v3592 = vadd.f32 %v3479, %v3591
    %3593 = vmatprep.mubr.bf16.mxu0 %v3530
    %3594 = vmatmul.mubr.bf16.gmra.mrb[0].mxu0 %v3529
    %v3595 = vpop.f32.mrb[0].mxu0
    %v3596 = vadd.f32 %v3484, %v3595
    %v3597 = vpop.f32.mrb[0].mxu0
    %v3598 = vadd.f32 %v3484, %v3597
    %v3599 = vpop.f32.mrb[0].mxu0
    %v3600 = vadd.f32 %v3489, %v3599
    %v3601 = vpop.f32.mrb[0].mxu0
    %v3602 = vadd.f32 %v3489, %v3601
    %3603 = vmatprep.mubr.bf16.mxu0 %v3532
    %3604 = vmatmul.mubr.bf16.gmra.mrb[0].mxu0 %v3531
    %v3605 = vpop.f32.mrb[0].mxu0
    %v3606 = vadd.f32 %v3494, %v3605
    %v3607 = vpop.f32.mrb[0].mxu0
    %v3608 = vadd.f32 %v3494, %v3607
    %v3609 = vpop.f32.mrb[0].mxu0
    %v3610 = vadd.f32 %v3499, %v3609
    %v3611 = vpop.f32.mrb[0].mxu0
    %v3612 = vadd.f32 %v3499, %v3611
    %3613 = vdwg.mxu0
    %v3614 = vadd.f32 %v3576, %v3580
    %v3615 = vadd.f32 %v3614, %v3586
    %v3616 = vadd.f32 %v3615, %v3590
    %v3617 = vadd.f32 %v3616, %v3596
    %v3618 = vadd.f32 %v3617, %v3600
    %v3619 = vadd.f32 %v3618, %v3606
    %v3620 = vadd.f32 %v3619, %v3610
    %v3621 = vrot.slane %v3620, 4
    %v3622 = vadd.f32 %v3620, %v3621
    %v3623 = vrot.slane %v3622, 2
    %v3624 = vadd.f32 %v3622, %v3623
    %v3625 = vrot.slane %v3624, 1
    %v3626 = vadd.f32 %v3624, %v3625
    %v3627 = vadd.f32 %v3578, %v3582
    %v3628 = vadd.f32 %v3627, %v3588
    %v3629 = vadd.f32 %v3628, %v3592
    %v3630 = vadd.f32 %v3629, %v3598
    %v3631 = vadd.f32 %v3630, %v3602
    %v3632 = vadd.f32 %v3631, %v3608
    %v3633 = vadd.f32 %v3632, %v3612
    %v3634 = vrot.slane %v3633, 4
    %v3635 = vadd.f32 %v3633, %v3634
    %v3636 = vrot.slane %v3635, 2
    %v3637 = vadd.f32 %v3635, %v3636
    %v3638 = vrot.slane %v3637, 1
    %v3639 = vadd.f32 %v3637, %v3638
    %v3640 = vmul.f32 %v3576, %v3576
    %v3641 = vmul.f32 %v3578, %v3578
    %v3642 = vmul.f32 %v3580, %v3580
    %v3643 = vmul.f32 %v3582, %v3582
    %v3644 = vmul.f32 %v3586, %v3586
    %v3645 = vmul.f32 %v3588, %v3588
    %v3646 = vmul.f32 %v3590, %v3590
    %v3647 = vmul.f32 %v3592, %v3592
    %v3648 = vmul.f32 %v3596, %v3596
    %v3649 = vmul.f32 %v3598, %v3598
    %v3650 = vmul.f32 %v3600, %v3600
    %v3651 = vmul.f32 %v3602, %v3602
    %v3652 = vmul.f32 %v3606, %v3606
    %v3653 = vmul.f32 %v3608, %v3608
    %v3654 = vmul.f32 %v3610, %v3610
    %v3655 = vmul.f32 %v3612, %v3612
    %v3656 = vadd.f32 %v3640, %v3642
    %v3657 = vadd.f32 %v3656, %v3644
    %v3658 = vadd.f32 %v3657, %v3646
    %v3659 = vadd.f32 %v3658, %v3648
    %v3660 = vadd.f32 %v3659, %v3650
    %v3661 = vadd.f32 %v3660, %v3652
    %v3662 = vadd.f32 %v3661, %v3654
    %v3663 = vrot.slane %v3662, 4
    %v3664 = vadd.f32 %v3662, %v3663
    %v3665 = vrot.slane %v3664, 2
    %v3666 = vadd.f32 %v3664, %v3665
    %v3667 = vrot.slane %v3666, 1
    %v3668 = vadd.f32 %v3666, %v3667
    %v3669 = vadd.f32 %v3641, %v3643
    %v3670 = vadd.f32 %v3669, %v3645
    %v3671 = vadd.f32 %v3670, %v3647
    %v3672 = vadd.f32 %v3671, %v3649
    %v3673 = vadd.f32 %v3672, %v3651
    %v3674 = vadd.f32 %v3673, %v3653
    %v3675 = vadd.f32 %v3674, %v3655
    %v3676 = vrot.slane %v3675, 4
    %v3677 = vadd.f32 %v3675, %v3676
    %v3678 = vrot.slane %v3677, 2
    %v3679 = vadd.f32 %v3677, %v3678
    %v3680 = vrot.slane %v3679, 1
    %v3681 = vadd.f32 %v3679, %v3680
    %v3682 = vmul.f32 %v3626, 0.015625
    %v3683 = vmul.f32 %v3639, 0.015625
    %v3684 = vmul.f32 %v3668, 0.015625
    %v3685 = vmul.f32 %v3681, 0.015625
    %v3686 = vmul.f32 %v3682, %v3682
    %v3687 = vmul.f32 %v3683, %v3683
    %v3688 = vsub.f32 %v3684, %v3686
    %v3689 = vsub.f32 %v3685, %v3687
    %v3690 = vmax.f32 %v3688, 0.0
    %v3691 = vmax.f32 %v3689, 0.0
    %v3692 = vadd.f32 %v3690, 1e-05
    %v3693 = vadd.f32 %v3691, 1e-05
    %v3694 = vrsqrt.pop %v3692
    %v3695 = vrsqrt.pop %v3693
    %v3696 = vsub.f32 %v3576, %v3682
    %v3697 = vsub.f32 %v3578, %v3683
    %v3698 = vsub.f32 %v3580, %v3682
    %v3699 = vsub.f32 %v3582, %v3683
    %v3700 = vsub.f32 %v3586, %v3682
    %v3701 = vsub.f32 %v3588, %v3683
    %v3702 = vsub.f32 %v3590, %v3682
    %v3703 = vsub.f32 %v3592, %v3683
    %v3704 = vsub.f32 %v3596, %v3682
    %v3705 = vsub.f32 %v3598, %v3683
    %v3706 = vsub.f32 %v3600, %v3682
    %v3707 = vsub.f32 %v3602, %v3683
    %v3708 = vsub.f32 %v3606, %v3682
    %v3709 = vsub.f32 %v3608, %v3683
    %v3710 = vsub.f32 %v3610, %v3682
    %v3711 = vsub.f32 %v3612, %v3683
    %v3712 = vmul.f32 %v3696, %v3694
    %v3713 = vmul.f32 %v3697, %v3695
    %v3714 = vmul.f32 %v3698, %v3694
    %v3715 = vmul.f32 %v3699, %v3695
    %v3716 = vmul.f32 %v3700, %v3694
    %v3717 = vmul.f32 %v3701, %v3695
    %v3718 = vmul.f32 %v3702, %v3694
    %v3719 = vmul.f32 %v3703, %v3695
    %v3720 = vmul.f32 %v3704, %v3694
    %v3721 = vmul.f32 %v3705, %v3695
    %v3722 = vmul.f32 %v3706, %v3694
    %v3723 = vmul.f32 %v3707, %v3695
    %v3724 = vmul.f32 %v3708, %v3694
    %v3725 = vmul.f32 %v3709, %v3695
    %v3726 = vmul.f32 %v3710, %v3694
    %v3727 = vmul.f32 %v3711, %v3695
    %3728 = vset.pattern.permute.xlu0 1
    %3729 = vperm.xlu0 %3728, %v3453
    %v3730 = vpop.permute.xlu0 %3729
    %3732 = vset.pattern.permute.xlu0 1
    %3733 = vperm.xlu0 %3732, %v3454
    %v3734 = vpop.permute.xlu0 %3733
    %3736 = vset.pattern.permute.xlu0 1
    %3737 = vperm.xlu0 %3736, %v3455
    %v3738 = vpop.permute.xlu0 %3737
    %3740 = vset.pattern.permute.xlu0 1
    %3741 = vperm.xlu0 %3740, %v3456
    %v3742 = vpop.permute.xlu0 %3741
    %3744 = vset.pattern.permute.xlu0 1
    %3745 = vperm.xlu0 %3744, %v3457
    %v3746 = vpop.permute.xlu0 %3745
    %3748 = vset.pattern.permute.xlu0 1
    %3749 = vperm.xlu0 %3748, %v3458
    %v3750 = vpop.permute.xlu0 %3749
    %3752 = vset.pattern.permute.xlu0 1
    %3753 = vperm.xlu0 %3752, %v3459
    %v3754 = vpop.permute.xlu0 %3753
    %3756 = vset.pattern.permute.xlu0 1
    %3757 = vperm.xlu0 %3756, %v3460
    %v3758 = vpop.permute.xlu0 %3757
    %v3760 = vmul.f32 %v3712, %v3730
    %v3761 = vmul.f32 %v3713, %v3730
    %v3762 = vmul.f32 %v3714, %v3734
    %v3763 = vmul.f32 %v3715, %v3734
    %v3764 = vmul.f32 %v3716, %v3738
    %v3765 = vmul.f32 %v3717, %v3738
    %v3766 = vmul.f32 %v3718, %v3742
    %v3767 = vmul.f32 %v3719, %v3742
    %v3768 = vmul.f32 %v3720, %v3746
    %v3769 = vmul.f32 %v3721, %v3746
    %v3770 = vmul.f32 %v3722, %v3750
    %v3771 = vmul.f32 %v3723, %v3750
    %v3772 = vmul.f32 %v3724, %v3754
    %v3773 = vmul.f32 %v3725, %v3754
    %v3774 = vmul.f32 %v3726, %v3758
    %v3775 = vmul.f32 %v3727, %v3758
    %3776 = vset.pattern.permute.xlu0 2
    %3777 = vperm.xlu0 %3776, %v3453
    %v3778 = vpop.permute.xlu0 %3777
    %3780 = vset.pattern.permute.xlu0 2
    %3781 = vperm.xlu0 %3780, %v3454
    %v3782 = vpop.permute.xlu0 %3781
    %3784 = vset.pattern.permute.xlu0 2
    %3785 = vperm.xlu0 %3784, %v3455
    %v3786 = vpop.permute.xlu0 %3785
    %3788 = vset.pattern.permute.xlu0 2
    %3789 = vperm.xlu0 %3788, %v3456
    %v3790 = vpop.permute.xlu0 %3789
    %3792 = vset.pattern.permute.xlu0 2
    %3793 = vperm.xlu0 %3792, %v3457
    %v3794 = vpop.permute.xlu0 %3793
    %3796 = vset.pattern.permute.xlu0 2
    %3797 = vperm.xlu0 %3796, %v3458
    %v3798 = vpop.permute.xlu0 %3797
    %3800 = vset.pattern.permute.xlu0 2
    %3801 = vperm.xlu0 %3800, %v3459
    %v3802 = vpop.permute.xlu0 %3801
    %3804 = vset.pattern.permute.xlu0 2
    %3805 = vperm.xlu0 %3804, %v3460
    %v3806 = vpop.permute.xlu0 %3805
    %v3808 = vadd.f32 %v3760, %v3778
    %v3809 = vadd.f32 %v3761, %v3778
    %v3810 = vadd.f32 %v3762, %v3782
    %v3811 = vadd.f32 %v3763, %v3782
    %v3812 = vadd.f32 %v3764, %v3786
    %v3813 = vadd.f32 %v3765, %v3786
    %v3814 = vadd.f32 %v3766, %v3790
    %v3815 = vadd.f32 %v3767, %v3790
    %v3816 = vadd.f32 %v3768, %v3794
    %v3817 = vadd.f32 %v3769, %v3794
    %v3818 = vadd.f32 %v3770, %v3798
    %v3819 = vadd.f32 %v3771, %v3798
    %v3820 = vadd.f32 %v3772, %v3802
    %v3821 = vadd.f32 %v3773, %v3802
    %v3822 = vadd.f32 %v3774, %v3806
    %v3823 = vadd.f32 %v3775, %v3806
    %v3824 = vmax.f32 %v3808, 0.0
    %v3825 = vmax.f32 %v3809, 0.0
    %v3826 = vmax.f32 %v3810, 0.0
    %v3827 = vmax.f32 %v3811, 0.0
    %v3828 = vmax.f32 %v3812, 0.0
    %v3829 = vmax.f32 %v3813, 0.0
    %v3830 = vmax.f32 %v3814, 0.0
    %v3831 = vmax.f32 %v3815, 0.0
    %v3832 = vmax.f32 %v3816, 0.0
    %v3833 = vmax.f32 %v3817, 0.0
    %v3834 = vmax.f32 %v3818, 0.0
    %v3835 = vmax.f32 %v3819, 0.0
    %v3836 = vmax.f32 %v3820, 0.0
    %v3837 = vmax.f32 %v3821, 0.0
    %v3838 = vmax.f32 %v3822, 0.0
    %v3839 = vmax.f32 %v3823, 0.0
    %v3840 = vpack.c.bf16 %v3826, %v3824
    %v3841 = vpack.c.bf16 %v3827, %v3825
    %v3842 = vpack.c.bf16 %v3830, %v3828
    %v3843 = vpack.c.bf16 %v3831, %v3829
    %v3844 = vpack.c.bf16 %v3834, %v3832
    %v3845 = vpack.c.bf16 %v3835, %v3833
    %v3846 = vpack.c.bf16 %v3838, %v3836
    %v3847 = vpack.c.bf16 %v3839, %v3837
    %v3848 = vunpack.c.l.bf16 %v3840
    %v3849 = vunpack.c.l.bf16 %v3841
    %v3850 = vunpack.c.h.bf16 %v3840
    %v3851 = vunpack.c.h.bf16 %v3841
    %v3852 = vunpack.c.l.bf16 %v3842
    %v3853 = vunpack.c.l.bf16 %v3843
    %v3854 = vunpack.c.h.bf16 %v3842
    %v3855 = vunpack.c.h.bf16 %v3843
    %v3856 = vunpack.c.l.bf16 %v3844
    %v3857 = vunpack.c.l.bf16 %v3845
    %v3858 = vunpack.c.h.bf16 %v3844
    %v3859 = vunpack.c.h.bf16 %v3845
    %v3860 = vunpack.c.l.bf16 %v3846
    %v3861 = vunpack.c.l.bf16 %v3847
    %v3862 = vunpack.c.h.bf16 %v3846
    %v3863 = vunpack.c.h.bf16 %v3847
    %v3864 = vadd.f32 %v2042, %v3848
    %v3865 = vadd.f32 %v2043, %v3849
    %v3866 = vadd.f32 %v2044, %v3850
    %v3867 = vadd.f32 %v2045, %v3851
    %v3868 = vadd.f32 %v2046, %v3852
    %v3869 = vadd.f32 %v2047, %v3853
    %v3870 = vadd.f32 %v2048, %v3854
    %v3871 = vadd.f32 %v2049, %v3855
    %v3872 = vadd.f32 %v2050, %v3856
    %v3873 = vadd.f32 %v2051, %v3857
    %v3874 = vadd.f32 %v2052, %v3858
    %v3875 = vadd.f32 %v2053, %v3859
    %v3876 = vadd.f32 %v2054, %v3860
    %v3877 = vadd.f32 %v2055, %v3861
    %v3878 = vadd.f32 %v2056, %v3862
    %v3879 = vadd.f32 %v2057, %v3863
    %v3880 = vpack.c.bf16 %v3866, %v3864
    %v3881 = vpack.c.bf16 %v3867, %v3865
    %v3882 = vpack.c.bf16 %v3870, %v3868
    %v3883 = vpack.c.bf16 %v3871, %v3869
    %v3884 = vpack.c.bf16 %v3874, %v3872
    %v3885 = vpack.c.bf16 %v3875, %v3873
    %v3886 = vpack.c.bf16 %v3878, %v3876
    %v3887 = vpack.c.bf16 %v3879, %v3877
    %v3888 = vld [vmem:[%s11] sm:$0xf]
    %v3889 = vld [vmem:[%s11 + $0x4] sm:$0xf]
    %v3890 = vld [vmem:[%s11 + $0x8] sm:$0xf]
    %v3891 = vld [vmem:[%s11 + $0xc] sm:$0xf]
    %v3892 = vld [vmem:[%s11 + $0x10] sm:$0xf]
    %v3893 = vld [vmem:[%s11 + $0x14] sm:$0xf]
    %v3894 = vld [vmem:[%s11 + $0x18] sm:$0xf]
    %v3895 = vld [vmem:[%s11 + $0x1c] sm:$0xf]
    %v3896 = vld [vmem:[%s12] sm:$0xff]
    %v3897 = vld [vmem:[%s12 + $0x8] sm:$0xff]
    %v3898 = vld [vmem:[%s12 + $0x10] sm:$0xff]
    %v3899 = vld [vmem:[%s12 + $0x18] sm:$0xff]
    %v3900 = vld [vmem:[%s12 + $0x20] sm:$0xff]
    %v3901 = vld [vmem:[%s12 + $0x28] sm:$0xff]
    %v3902 = vld [vmem:[%s12 + $0x30] sm:$0xff]
    %v3903 = vld [vmem:[%s12 + $0x38] sm:$0xff]
    %3905 = vset.pattern.permute.xlu0 0
    %3906 = vperm.xlu0 %3905, %v3896
    %v3907 = vpop.permute.xlu0 %3906
    %3910 = vset.pattern.permute.xlu0 0
    %3911 = vperm.xlu0 %3910, %v3897
    %v3912 = vpop.permute.xlu0 %3911
    %3915 = vset.pattern.permute.xlu0 0
    %3916 = vperm.xlu0 %3915, %v3898
    %v3917 = vpop.permute.xlu0 %3916
    %3920 = vset.pattern.permute.xlu0 0
    %3921 = vperm.xlu0 %3920, %v3899
    %v3922 = vpop.permute.xlu0 %3921
    %3925 = vset.pattern.permute.xlu0 0
    %3926 = vperm.xlu0 %3925, %v3900
    %v3927 = vpop.permute.xlu0 %3926
    %3930 = vset.pattern.permute.xlu0 0
    %3931 = vperm.xlu0 %3930, %v3901
    %v3932 = vpop.permute.xlu0 %3931
    %3935 = vset.pattern.permute.xlu0 0
    %3936 = vperm.xlu0 %3935, %v3902
    %v3937 = vpop.permute.xlu0 %3936
    %3940 = vset.pattern.permute.xlu0 0
    %3941 = vperm.xlu0 %3940, %v3903
    %v3942 = vpop.permute.xlu0 %3941
    %v3952 = vunpack.c.l.b16 %v3888
    %v3953 = vunpack.c.l.b16 %v3889
    %v3954 = vunpack.c.l.b16 %v3890
    %v3955 = vunpack.c.l.b16 %v3891
    %v3956 = vunpack.c.l.b16 %v3892
    %v3957 = vunpack.c.l.b16 %v3893
    %v3958 = vunpack.c.l.b16 %v3894
    %v3959 = vunpack.c.l.b16 %v3895
    %v3960 = vpack.c.b16 %v3953, %v3952
    %v3961 = vpack.c.b16 %v3955, %v3954
    %v3962 = vpack.c.b16 %v3957, %v3956
    %v3963 = vpack.c.b16 %v3959, %v3958
    %v3965 = vsel %vm547, %v3960, 0
    %v3968 = vsel %vm547, %v3961, 0
    %v3971 = vsel %vm547, %v3962, 0
    %v3974 = vsel %vm547, %v3963, 0
    %3976 = vmatprep.subr.bf16.mxu0 %v3881
    %3977 = vmatpush1.bf16.msra.mxu0 %v3880
    %3978 = vmatprep.subr.bf16.mxu0 %v3883
    %3979 = vmatpush1.bf16.msra.mxu0 %v3882
    %3980 = vmatprep.subr.bf16.mxu0 %v3885
    %3981 = vmatpush1.bf16.msra.mxu0 %v3884
    %3982 = vmatprep.subr.bf16.mxu0 %v3887
    %3983 = vmatpush1.bf16.msra.mxu0 %v3886
    %3984 = vmatprep.subr.bf16.mxu0 0
    %3985 = vmatpush1.bf16.msra.mxu0 0
    %3986 = vmatprep.subr.bf16.mxu0 0
    %3987 = vmatpush1.bf16.msra.mxu0 0
    %3988 = vmatprep.subr.bf16.mxu0 0
    %3989 = vmatpush1.bf16.msra.mxu0 0
    %3990 = vmatprep.subr.bf16.mxu0 0
    %3991 = vmatpush1.bf16.msra.mxu0 0
    %3992 = vmatprep.subr.bf16.mxu0 0
    %3993 = vmatpush1.bf16.msra.mxu0 0
    %3994 = vmatprep.subr.bf16.mxu0 0
    %3995 = vmatpush1.bf16.msra.mxu0 0
    %3996 = vmatprep.subr.bf16.mxu0 0
    %3997 = vmatpush1.bf16.msra.mxu0 0
    %3998 = vmatprep.subr.bf16.mxu0 0
    %3999 = vmatpush1.bf16.msra.mxu0 0
    %4000 = vmatprep.subr.bf16.mxu0 0
    %4001 = vmatpush1.bf16.msra.mxu0 0
    %4002 = vmatprep.subr.bf16.mxu0 0
    %4003 = vmatpush1.bf16.msra.mxu0 0
    %4004 = vmatprep.subr.bf16.mxu0 0
    %4005 = vmatpush1.bf16.msra.mxu0 0
    %4006 = vmatprep.subr.bf16.mxu0 0
    %4007 = vmatpush1.bf16.msra.mxu0 0
    %4008 = vmatprep.mubr.bf16.mxu0 0
    %4009 = vmatmul.mubr.bf16.gmra.mrb[0].mxu0 %v3965
    %v4010 = vpop.f32.mrb[0].mxu0
    %v4011 = vadd.f32 %v3907, %v4010
    %v4012 = vpop.f32.mrb[0].mxu0
    %v4013 = vadd.f32 %v3907, %v4012
    %v4014 = vpop.f32.mrb[0].mxu0
    %v4015 = vadd.f32 %v3912, %v4014
    %v4016 = vpop.f32.mrb[0].mxu0
    %v4017 = vadd.f32 %v3912, %v4016
    %4018 = vmatprep.mubr.bf16.mxu0 0
    %4019 = vmatmul.mubr.bf16.gmra.mrb[0].mxu0 %v3968
    %v4020 = vpop.f32.mrb[0].mxu0
    %v4021 = vadd.f32 %v3917, %v4020
    %v4022 = vpop.f32.mrb[0].mxu0
    %v4023 = vadd.f32 %v3917, %v4022
    %v4024 = vpop.f32.mrb[0].mxu0
    %v4025 = vadd.f32 %v3922, %v4024
    %v4026 = vpop.f32.mrb[0].mxu0
    %v4027 = vadd.f32 %v3922, %v4026
    %4028 = vmatprep.mubr.bf16.mxu0 0
    %4029 = vmatmul.mubr.bf16.gmra.mrb[0].mxu0 %v3971
    %v4030 = vpop.f32.mrb[0].mxu0
    %v4031 = vadd.f32 %v3927, %v4030
    %v4032 = vpop.f32.mrb[0].mxu0
    %v4033 = vadd.f32 %v3927, %v4032
    %v4034 = vpop.f32.mrb[0].mxu0
    %v4035 = vadd.f32 %v3932, %v4034
    %v4036 = vpop.f32.mrb[0].mxu0
    %v4037 = vadd.f32 %v3932, %v4036
    %4038 = vmatprep.mubr.bf16.mxu0 0
    %4039 = vmatmul.mubr.bf16.gmra.mrb[0].mxu0 %v3974
    %v4040 = vpop.f32.mrb[0].mxu0
    %v4041 = vadd.f32 %v3937, %v4040
    %v4042 = vpop.f32.mrb[0].mxu0
    %v4043 = vadd.f32 %v3937, %v4042
    %v4044 = vpop.f32.mrb[0].mxu0
    %v4045 = vadd.f32 %v3942, %v4044
    %v4046 = vpop.f32.mrb[0].mxu0
    %v4047 = vadd.f32 %v3942, %v4046
    %4048 = vdwg.mxu0
    %v4049 = vadd.f32 %v4011, %v4015
    %v4050 = vadd.f32 %v4049, %v4021
    %v4051 = vadd.f32 %v4050, %v4025
    %v4052 = vadd.f32 %v4051, %v4031
    %v4053 = vadd.f32 %v4052, %v4035
    %v4054 = vadd.f32 %v4053, %v4041
    %v4055 = vadd.f32 %v4054, %v4045
    %v4056 = vrot.slane %v4055, 4
    %v4057 = vadd.f32 %v4055, %v4056
    %v4058 = vrot.slane %v4057, 2
    %v4059 = vadd.f32 %v4057, %v4058
    %v4060 = vrot.slane %v4059, 1
    %v4061 = vadd.f32 %v4059, %v4060
    %v4062 = vadd.f32 %v4013, %v4017
    %v4063 = vadd.f32 %v4062, %v4023
    %v4064 = vadd.f32 %v4063, %v4027
    %v4065 = vadd.f32 %v4064, %v4033
    %v4066 = vadd.f32 %v4065, %v4037
    %v4067 = vadd.f32 %v4066, %v4043
    %v4068 = vadd.f32 %v4067, %v4047
    %v4069 = vrot.slane %v4068, 4
    %v4070 = vadd.f32 %v4068, %v4069
    %v4071 = vrot.slane %v4070, 2
    %v4072 = vadd.f32 %v4070, %v4071
    %v4073 = vrot.slane %v4072, 1
    %v4074 = vadd.f32 %v4072, %v4073
    %v4075 = vmul.f32 %v4011, %v4011
    %v4076 = vmul.f32 %v4013, %v4013
    %v4077 = vmul.f32 %v4015, %v4015
    %v4078 = vmul.f32 %v4017, %v4017
    %v4079 = vmul.f32 %v4021, %v4021
    %v4080 = vmul.f32 %v4023, %v4023
    %v4081 = vmul.f32 %v4025, %v4025
    %v4082 = vmul.f32 %v4027, %v4027
    %v4083 = vmul.f32 %v4031, %v4031
    %v4084 = vmul.f32 %v4033, %v4033
    %v4085 = vmul.f32 %v4035, %v4035
    %v4086 = vmul.f32 %v4037, %v4037
    %v4087 = vmul.f32 %v4041, %v4041
    %v4088 = vmul.f32 %v4043, %v4043
    %v4089 = vmul.f32 %v4045, %v4045
    %v4090 = vmul.f32 %v4047, %v4047
    %v4091 = vadd.f32 %v4075, %v4077
    %v4092 = vadd.f32 %v4091, %v4079
    %v4093 = vadd.f32 %v4092, %v4081
    %v4094 = vadd.f32 %v4093, %v4083
    %v4095 = vadd.f32 %v4094, %v4085
    %v4096 = vadd.f32 %v4095, %v4087
    %v4097 = vadd.f32 %v4096, %v4089
    %v4098 = vrot.slane %v4097, 4
    %v4099 = vadd.f32 %v4097, %v4098
    %v4100 = vrot.slane %v4099, 2
    %v4101 = vadd.f32 %v4099, %v4100
    %v4102 = vrot.slane %v4101, 1
    %v4103 = vadd.f32 %v4101, %v4102
    %v4104 = vadd.f32 %v4076, %v4078
    %v4105 = vadd.f32 %v4104, %v4080
    %v4106 = vadd.f32 %v4105, %v4082
    %v4107 = vadd.f32 %v4106, %v4084
    %v4108 = vadd.f32 %v4107, %v4086
    %v4109 = vadd.f32 %v4108, %v4088
    %v4110 = vadd.f32 %v4109, %v4090
    %v4111 = vrot.slane %v4110, 4
    %v4112 = vadd.f32 %v4110, %v4111
    %v4113 = vrot.slane %v4112, 2
    %v4114 = vadd.f32 %v4112, %v4113
    %v4115 = vrot.slane %v4114, 1
    %v4116 = vadd.f32 %v4114, %v4115
    %v4117 = vmul.f32 %v4061, 0.015625
    %v4118 = vmul.f32 %v4074, 0.015625
    %v4119 = vmul.f32 %v4103, 0.015625
    %v4120 = vmul.f32 %v4116, 0.015625
    %v4121 = vmul.f32 %v4117, %v4117
    %v4122 = vmul.f32 %v4118, %v4118
    %v4123 = vsub.f32 %v4119, %v4121
    %v4124 = vsub.f32 %v4120, %v4122
    %v4125 = vmax.f32 %v4123, 0.0
    %v4126 = vmax.f32 %v4124, 0.0
    %v4127 = vadd.f32 %v4125, 1e-05
    %v4128 = vadd.f32 %v4126, 1e-05
    %v4129 = vrsqrt.pop %v4127
    %v4130 = vrsqrt.pop %v4128
    %v4131 = vsub.f32 %v4011, %v4117
    %v4132 = vsub.f32 %v4013, %v4118
    %v4133 = vsub.f32 %v4015, %v4117
    %v4134 = vsub.f32 %v4017, %v4118
    %v4135 = vsub.f32 %v4021, %v4117
    %v4136 = vsub.f32 %v4023, %v4118
    %v4137 = vsub.f32 %v4025, %v4117
    %v4138 = vsub.f32 %v4027, %v4118
    %v4139 = vsub.f32 %v4031, %v4117
    %v4140 = vsub.f32 %v4033, %v4118
    %v4141 = vsub.f32 %v4035, %v4117
    %v4142 = vsub.f32 %v4037, %v4118
    %v4143 = vsub.f32 %v4041, %v4117
    %v4144 = vsub.f32 %v4043, %v4118
    %v4145 = vsub.f32 %v4045, %v4117
    %v4146 = vsub.f32 %v4047, %v4118
    %v4147 = vmul.f32 %v4131, %v4129
    %v4148 = vmul.f32 %v4132, %v4130
    %v4149 = vmul.f32 %v4133, %v4129
    %v4150 = vmul.f32 %v4134, %v4130
    %v4151 = vmul.f32 %v4135, %v4129
    %v4152 = vmul.f32 %v4136, %v4130
    %v4153 = vmul.f32 %v4137, %v4129
    %v4154 = vmul.f32 %v4138, %v4130
    %v4155 = vmul.f32 %v4139, %v4129
    %v4156 = vmul.f32 %v4140, %v4130
    %v4157 = vmul.f32 %v4141, %v4129
    %v4158 = vmul.f32 %v4142, %v4130
    %v4159 = vmul.f32 %v4143, %v4129
    %v4160 = vmul.f32 %v4144, %v4130
    %v4161 = vmul.f32 %v4145, %v4129
    %v4162 = vmul.f32 %v4146, %v4130
    %4163 = vset.pattern.permute.xlu0 1
    %4164 = vperm.xlu0 %4163, %v3896
    %v4165 = vpop.permute.xlu0 %4164
    %4167 = vset.pattern.permute.xlu0 1
    %4168 = vperm.xlu0 %4167, %v3897
    %v4169 = vpop.permute.xlu0 %4168
    %4171 = vset.pattern.permute.xlu0 1
    %4172 = vperm.xlu0 %4171, %v3898
    %v4173 = vpop.permute.xlu0 %4172
    %4175 = vset.pattern.permute.xlu0 1
    %4176 = vperm.xlu0 %4175, %v3899
    %v4177 = vpop.permute.xlu0 %4176
    %4179 = vset.pattern.permute.xlu0 1
    %4180 = vperm.xlu0 %4179, %v3900
    %v4181 = vpop.permute.xlu0 %4180
    %4183 = vset.pattern.permute.xlu0 1
    %4184 = vperm.xlu0 %4183, %v3901
    %v4185 = vpop.permute.xlu0 %4184
    %4187 = vset.pattern.permute.xlu0 1
    %4188 = vperm.xlu0 %4187, %v3902
    %v4189 = vpop.permute.xlu0 %4188
    %4191 = vset.pattern.permute.xlu0 1
    %4192 = vperm.xlu0 %4191, %v3903
    %v4193 = vpop.permute.xlu0 %4192
    %v4195 = vmul.f32 %v4147, %v4165
    %v4196 = vmul.f32 %v4148, %v4165
    %v4197 = vmul.f32 %v4149, %v4169
    %v4198 = vmul.f32 %v4150, %v4169
    %v4199 = vmul.f32 %v4151, %v4173
    %v4200 = vmul.f32 %v4152, %v4173
    %v4201 = vmul.f32 %v4153, %v4177
    %v4202 = vmul.f32 %v4154, %v4177
    %v4203 = vmul.f32 %v4155, %v4181
    %v4204 = vmul.f32 %v4156, %v4181
    %v4205 = vmul.f32 %v4157, %v4185
    %v4206 = vmul.f32 %v4158, %v4185
    %v4207 = vmul.f32 %v4159, %v4189
    %v4208 = vmul.f32 %v4160, %v4189
    %v4209 = vmul.f32 %v4161, %v4193
    %v4210 = vmul.f32 %v4162, %v4193
    %4211 = vset.pattern.permute.xlu0 2
    %4212 = vperm.xlu0 %4211, %v3896
    %v4213 = vpop.permute.xlu0 %4212
    %4215 = vset.pattern.permute.xlu0 2
    %4216 = vperm.xlu0 %4215, %v3897
    %v4217 = vpop.permute.xlu0 %4216
    %4219 = vset.pattern.permute.xlu0 2
    %4220 = vperm.xlu0 %4219, %v3898
    %v4221 = vpop.permute.xlu0 %4220
    %4223 = vset.pattern.permute.xlu0 2
    %4224 = vperm.xlu0 %4223, %v3899
    %v4225 = vpop.permute.xlu0 %4224
    %4227 = vset.pattern.permute.xlu0 2
    %4228 = vperm.xlu0 %4227, %v3900
    %v4229 = vpop.permute.xlu0 %4228
    %4231 = vset.pattern.permute.xlu0 2
    %4232 = vperm.xlu0 %4231, %v3901
    %v4233 = vpop.permute.xlu0 %4232
    %4235 = vset.pattern.permute.xlu0 2
    %4236 = vperm.xlu0 %4235, %v3902
    %v4237 = vpop.permute.xlu0 %4236
    %4239 = vset.pattern.permute.xlu0 2
    %4240 = vperm.xlu0 %4239, %v3903
    %v4241 = vpop.permute.xlu0 %4240
    %v4243 = vadd.f32 %v4195, %v4213
    %v4244 = vadd.f32 %v4196, %v4213
    %v4245 = vadd.f32 %v4197, %v4217
    %v4246 = vadd.f32 %v4198, %v4217
    %v4247 = vadd.f32 %v4199, %v4221
    %v4248 = vadd.f32 %v4200, %v4221
    %v4249 = vadd.f32 %v4201, %v4225
    %v4250 = vadd.f32 %v4202, %v4225
    %v4251 = vadd.f32 %v4203, %v4229
    %v4252 = vadd.f32 %v4204, %v4229
    %v4253 = vadd.f32 %v4205, %v4233
    %v4254 = vadd.f32 %v4206, %v4233
    %v4255 = vadd.f32 %v4207, %v4237
    %v4256 = vadd.f32 %v4208, %v4237
    %v4257 = vadd.f32 %v4209, %v4241
    %v4258 = vadd.f32 %v4210, %v4241
    %v4259 = vmax.f32 %v4243, 0.0
    %v4260 = vmax.f32 %v4244, 0.0
    %v4261 = vmax.f32 %v4245, 0.0
    %v4262 = vmax.f32 %v4246, 0.0
    %v4263 = vmax.f32 %v4247, 0.0
    %v4264 = vmax.f32 %v4248, 0.0
    %v4265 = vmax.f32 %v4249, 0.0
    %v4266 = vmax.f32 %v4250, 0.0
    %v4267 = vmax.f32 %v4251, 0.0
    %v4268 = vmax.f32 %v4252, 0.0
    %v4269 = vmax.f32 %v4253, 0.0
    %v4270 = vmax.f32 %v4254, 0.0
    %v4271 = vmax.f32 %v4255, 0.0
    %v4272 = vmax.f32 %v4256, 0.0
    %v4273 = vmax.f32 %v4257, 0.0
    %v4274 = vmax.f32 %v4258, 0.0
    %v4275 = vpack.c.bf16 %v4261, %v4259
    %v4276 = vpack.c.bf16 %v4262, %v4260
    %v4277 = vpack.c.bf16 %v4265, %v4263
    %v4278 = vpack.c.bf16 %v4266, %v4264
    %v4279 = vpack.c.bf16 %v4269, %v4267
    %v4280 = vpack.c.bf16 %v4270, %v4268
    %v4281 = vpack.c.bf16 %v4273, %v4271
    %v4282 = vpack.c.bf16 %v4274, %v4272
    %v4283 = vld [vmem:[%s13] sm:$0xf]
    %v4284 = vld [vmem:[%s13 + $0x4] sm:$0xf]
    %v4285 = vld [vmem:[%s13 + $0x8] sm:$0xf]
    %v4286 = vld [vmem:[%s13 + $0xc] sm:$0xf]
    %v4287 = vld [vmem:[%s14] sm:$0xff]
    %v4288 = vld [vmem:[%s14 + $0x8] sm:$0xff]
    %v4289 = vld [vmem:[%s14 + $0x10] sm:$0xff]
    %v4290 = vld [vmem:[%s14 + $0x18] sm:$0xff]
    %4292 = vset.pattern.permute.xlu0 0
    %4293 = vperm.xlu0 %4292, %v4287
    %v4294 = vpop.permute.xlu0 %4293
    %4297 = vset.pattern.permute.xlu0 0
    %4298 = vperm.xlu0 %4297, %v4288
    %v4299 = vpop.permute.xlu0 %4298
    %4302 = vset.pattern.permute.xlu0 0
    %4303 = vperm.xlu0 %4302, %v4289
    %v4304 = vpop.permute.xlu0 %4303
    %4307 = vset.pattern.permute.xlu0 0
    %4308 = vperm.xlu0 %4307, %v4290
    %v4309 = vpop.permute.xlu0 %4308
    %v4315 = vunpack.c.l.b16 %v4283
    %v4316 = vunpack.c.l.b16 %v4284
    %v4317 = vunpack.c.l.b16 %v4285
    %v4318 = vunpack.c.l.b16 %v4286
    %v4319 = vpack.c.b16 %v4316, %v4315
    %v4320 = vpack.c.b16 %v4318, %v4317
    %v4322 = vsel %vm547, %v4319, 0
    %v4325 = vsel %vm547, %v4320, 0
    %4327 = vmatprep.subr.bf16.mxu0 %v4276
    %4328 = vmatpush1.bf16.msra.mxu0 %v4275
    %4329 = vmatprep.subr.bf16.mxu0 %v4278
    %4330 = vmatpush1.bf16.msra.mxu0 %v4277
    %4331 = vmatprep.subr.bf16.mxu0 %v4280
    %4332 = vmatpush1.bf16.msra.mxu0 %v4279
    %4333 = vmatprep.subr.bf16.mxu0 %v4282
    %4334 = vmatpush1.bf16.msra.mxu0 %v4281
    %4335 = vmatprep.subr.bf16.mxu0 0
    %4336 = vmatpush1.bf16.msra.mxu0 0
    %4337 = vmatprep.subr.bf16.mxu0 0
    %4338 = vmatpush1.bf16.msra.mxu0 0
    %4339 = vmatprep.subr.bf16.mxu0 0
    %4340 = vmatpush1.bf16.msra.mxu0 0
    %4341 = vmatprep.subr.bf16.mxu0 0
    %4342 = vmatpush1.bf16.msra.mxu0 0
    %4343 = vmatprep.subr.bf16.mxu0 0
    %4344 = vmatpush1.bf16.msra.mxu0 0
    %4345 = vmatprep.subr.bf16.mxu0 0
    %4346 = vmatpush1.bf16.msra.mxu0 0
    %4347 = vmatprep.subr.bf16.mxu0 0
    %4348 = vmatpush1.bf16.msra.mxu0 0
    %4349 = vmatprep.subr.bf16.mxu0 0
    %4350 = vmatpush1.bf16.msra.mxu0 0
    %4351 = vmatprep.subr.bf16.mxu0 0
    %4352 = vmatpush1.bf16.msra.mxu0 0
    %4353 = vmatprep.subr.bf16.mxu0 0
    %4354 = vmatpush1.bf16.msra.mxu0 0
    %4355 = vmatprep.subr.bf16.mxu0 0
    %4356 = vmatpush1.bf16.msra.mxu0 0
    %4357 = vmatprep.subr.bf16.mxu0 0
    %4358 = vmatpush1.bf16.msra.mxu0 0
    %4359 = vmatprep.mubr.bf16.mxu0 0
    %4360 = vmatmul.mubr.bf16.gmra.mrb[0].mxu0 %v4322
    %v4361 = vpop.f32.mrb[0].mxu0
    %v4362 = vadd.f32 %v4294, %v4361
    %v4363 = vpop.f32.mrb[0].mxu0
    %v4364 = vadd.f32 %v4294, %v4363
    %v4365 = vpop.f32.mrb[0].mxu0
    %v4366 = vadd.f32 %v4299, %v4365
    %v4367 = vpop.f32.mrb[0].mxu0
    %v4368 = vadd.f32 %v4299, %v4367
    %4369 = vmatprep.mubr.bf16.mxu0 0
    %4370 = vmatmul.mubr.bf16.gmra.mrb[0].mxu0 %v4325
    %v4371 = vpop.f32.mrb[0].mxu0
    %v4372 = vadd.f32 %v4304, %v4371
    %v4373 = vpop.f32.mrb[0].mxu0
    %v4374 = vadd.f32 %v4304, %v4373
    %v4375 = vpop.f32.mrb[0].mxu0
    %v4376 = vadd.f32 %v4309, %v4375
    %v4377 = vpop.f32.mrb[0].mxu0
    %v4378 = vadd.f32 %v4309, %v4377
    %4379 = vdwg.mxu0
    %v4380 = vadd.f32 %v4362, %v4366
    %v4381 = vadd.f32 %v4380, %v4372
    %v4382 = vadd.f32 %v4381, %v4376
    %v4383 = vrot.slane %v4382, 4
    %v4384 = vadd.f32 %v4382, %v4383
    %v4385 = vrot.slane %v4384, 2
    %v4386 = vadd.f32 %v4384, %v4385
    %v4387 = vrot.slane %v4386, 1
    %v4388 = vadd.f32 %v4386, %v4387
    %v4389 = vadd.f32 %v4364, %v4368
    %v4390 = vadd.f32 %v4389, %v4374
    %v4391 = vadd.f32 %v4390, %v4378
    %v4392 = vrot.slane %v4391, 4
    %v4393 = vadd.f32 %v4391, %v4392
    %v4394 = vrot.slane %v4393, 2
    %v4395 = vadd.f32 %v4393, %v4394
    %v4396 = vrot.slane %v4395, 1
    %v4397 = vadd.f32 %v4395, %v4396
    %v4398 = vmul.f32 %v4362, %v4362
    %v4399 = vmul.f32 %v4364, %v4364
    %v4400 = vmul.f32 %v4366, %v4366
    %v4401 = vmul.f32 %v4368, %v4368
    %v4402 = vmul.f32 %v4372, %v4372
    %v4403 = vmul.f32 %v4374, %v4374
    %v4404 = vmul.f32 %v4376, %v4376
    %v4405 = vmul.f32 %v4378, %v4378
    %v4406 = vadd.f32 %v4398, %v4400
    %v4407 = vadd.f32 %v4406, %v4402
    %v4408 = vadd.f32 %v4407, %v4404
    %v4409 = vrot.slane %v4408, 4
    %v4410 = vadd.f32 %v4408, %v4409
    %v4411 = vrot.slane %v4410, 2
    %v4412 = vadd.f32 %v4410, %v4411
    %v4413 = vrot.slane %v4412, 1
    %v4414 = vadd.f32 %v4412, %v4413
    %v4415 = vadd.f32 %v4399, %v4401
    %v4416 = vadd.f32 %v4415, %v4403
    %v4417 = vadd.f32 %v4416, %v4405
    %v4418 = vrot.slane %v4417, 4
    %v4419 = vadd.f32 %v4417, %v4418
    %v4420 = vrot.slane %v4419, 2
    %v4421 = vadd.f32 %v4419, %v4420
    %v4422 = vrot.slane %v4421, 1
    %v4423 = vadd.f32 %v4421, %v4422
    %v4424 = vmul.f32 %v4388, 0.03125
    %v4425 = vmul.f32 %v4397, 0.03125
    %v4426 = vmul.f32 %v4414, 0.03125
    %v4427 = vmul.f32 %v4423, 0.03125
    %v4428 = vmul.f32 %v4424, %v4424
    %v4429 = vmul.f32 %v4425, %v4425
    %v4430 = vsub.f32 %v4426, %v4428
    %v4431 = vsub.f32 %v4427, %v4429
    %v4432 = vmax.f32 %v4430, 0.0
    %v4433 = vmax.f32 %v4431, 0.0
    %v4434 = vadd.f32 %v4432, 1e-05
    %v4435 = vadd.f32 %v4433, 1e-05
    %v4436 = vrsqrt.pop %v4434
    %v4437 = vrsqrt.pop %v4435
    %v4438 = vsub.f32 %v4362, %v4424
    %v4439 = vsub.f32 %v4364, %v4425
    %v4440 = vsub.f32 %v4366, %v4424
    %v4441 = vsub.f32 %v4368, %v4425
    %v4442 = vsub.f32 %v4372, %v4424
    %v4443 = vsub.f32 %v4374, %v4425
    %v4444 = vsub.f32 %v4376, %v4424
    %v4445 = vsub.f32 %v4378, %v4425
    %v4446 = vmul.f32 %v4438, %v4436
    %v4447 = vmul.f32 %v4439, %v4437
    %v4448 = vmul.f32 %v4440, %v4436
    %v4449 = vmul.f32 %v4441, %v4437
    %v4450 = vmul.f32 %v4442, %v4436
    %v4451 = vmul.f32 %v4443, %v4437
    %v4452 = vmul.f32 %v4444, %v4436
    %v4453 = vmul.f32 %v4445, %v4437
    %4454 = vset.pattern.permute.xlu0 1
    %4455 = vperm.xlu0 %4454, %v4287
    %v4456 = vpop.permute.xlu0 %4455
    %4458 = vset.pattern.permute.xlu0 1
    %4459 = vperm.xlu0 %4458, %v4288
    %v4460 = vpop.permute.xlu0 %4459
    %4462 = vset.pattern.permute.xlu0 1
    %4463 = vperm.xlu0 %4462, %v4289
    %v4464 = vpop.permute.xlu0 %4463
    %4466 = vset.pattern.permute.xlu0 1
    %4467 = vperm.xlu0 %4466, %v4290
    %v4468 = vpop.permute.xlu0 %4467
    %v4470 = vmul.f32 %v4446, %v4456
    %v4471 = vmul.f32 %v4447, %v4456
    %v4472 = vmul.f32 %v4448, %v4460
    %v4473 = vmul.f32 %v4449, %v4460
    %v4474 = vmul.f32 %v4450, %v4464
    %v4475 = vmul.f32 %v4451, %v4464
    %v4476 = vmul.f32 %v4452, %v4468
    %v4477 = vmul.f32 %v4453, %v4468
    %4478 = vset.pattern.permute.xlu0 2
    %4479 = vperm.xlu0 %4478, %v4287
    %v4480 = vpop.permute.xlu0 %4479
    %4482 = vset.pattern.permute.xlu0 2
    %4483 = vperm.xlu0 %4482, %v4288
    %v4484 = vpop.permute.xlu0 %4483
    %4486 = vset.pattern.permute.xlu0 2
    %4487 = vperm.xlu0 %4486, %v4289
    %v4488 = vpop.permute.xlu0 %4487
    %4490 = vset.pattern.permute.xlu0 2
    %4491 = vperm.xlu0 %4490, %v4290
    %v4492 = vpop.permute.xlu0 %4491
    %v4494 = vadd.f32 %v4470, %v4480
    %v4495 = vadd.f32 %v4471, %v4480
    %v4496 = vadd.f32 %v4472, %v4484
    %v4497 = vadd.f32 %v4473, %v4484
    %v4498 = vadd.f32 %v4474, %v4488
    %v4499 = vadd.f32 %v4475, %v4488
    %v4500 = vadd.f32 %v4476, %v4492
    %v4501 = vadd.f32 %v4477, %v4492
    %v4502 = vmax.f32 %v4494, 0.0
    %v4503 = vmax.f32 %v4495, 0.0
    %v4504 = vmax.f32 %v4496, 0.0
    %v4505 = vmax.f32 %v4497, 0.0
    %v4506 = vmax.f32 %v4498, 0.0
    %v4507 = vmax.f32 %v4499, 0.0
    %v4508 = vmax.f32 %v4500, 0.0
    %v4509 = vmax.f32 %v4501, 0.0
    %v4510 = vpack.c.bf16 %v4504, %v4502
    %v4511 = vpack.c.bf16 %v4505, %v4503
    %v4512 = vpack.c.bf16 %v4508, %v4506
    %v4513 = vpack.c.bf16 %v4509, %v4507
    %v4514 = vld [vmem:[%s15] sm:$0xff]
    %v4515 = vld [vmem:[%s15 + $0x8] sm:$0xff]
    %v4516 = vld [vmem:[%s15 + $0x10] sm:$0xff]
    %v4517 = vld [vmem:[%s15 + $0x18] sm:$0xff]
    %v4518 = vunpack.c.l.bf16 %v4510
    %v4519 = vunpack.c.l.bf16 %v4511
    %v4520 = vunpack.c.h.bf16 %v4510
    %v4521 = vunpack.c.h.bf16 %v4511
    %v4522 = vunpack.c.l.bf16 %v4512
    %v4523 = vunpack.c.l.bf16 %v4513
    %v4524 = vunpack.c.h.bf16 %v4512
    %v4525 = vunpack.c.h.bf16 %v4513
    %4527 = vset.pattern.permute.xlu0 0
    %4528 = vperm.xlu0 %4527, %v4514
    %v4529 = vpop.permute.xlu0 %4528
    %4532 = vset.pattern.permute.xlu0 0
    %4533 = vperm.xlu0 %4532, %v4515
    %v4534 = vpop.permute.xlu0 %4533
    %4537 = vset.pattern.permute.xlu0 0
    %4538 = vperm.xlu0 %4537, %v4516
    %v4539 = vpop.permute.xlu0 %4538
    %4542 = vset.pattern.permute.xlu0 0
    %4543 = vperm.xlu0 %4542, %v4517
    %v4544 = vpop.permute.xlu0 %4543
    %v4546 = vmul.f32 %v4518, %v4529
    %v4547 = vmul.f32 %v4519, %v4529
    %v4548 = vmul.f32 %v4520, %v4534
    %v4549 = vmul.f32 %v4521, %v4534
    %v4550 = vmul.f32 %v4522, %v4539
    %v4551 = vmul.f32 %v4523, %v4539
    %v4552 = vmul.f32 %v4524, %v4544
    %v4553 = vmul.f32 %v4525, %v4544
    %v4554 = vadd.f32 %v4546, %v4548
    %v4555 = vadd.f32 %v4554, %v4550
    %v4556 = vadd.f32 %v4555, %v4552
    %v4557 = vrot.slane %v4556, 4
    %v4558 = vadd.f32 %v4556, %v4557
    %v4559 = vrot.slane %v4558, 2
    %v4560 = vadd.f32 %v4558, %v4559
    %v4561 = vrot.slane %v4560, 1
    %v4562 = vadd.f32 %v4560, %v4561
    %v4563 = vadd.f32 %v4547, %v4549
    %v4564 = vadd.f32 %v4563, %v4551
    %v4565 = vadd.f32 %v4564, %v4553
    %v4566 = vrot.slane %v4565, 4
    %v4567 = vadd.f32 %v4565, %v4566
    %v4568 = vrot.slane %v4567, 2
    %v4569 = vadd.f32 %v4567, %v4568
    %v4570 = vrot.slane %v4569, 1
    %v4571 = vadd.f32 %v4569, %v4570
    %v4572 = vld [vmem:[#allocation2] sm:$0x1]
    %4574 = vset.pattern.permute.xlu0 0
    %4575 = vperm.xlu0 %4574, %v4572
    %v4576 = vpop.permute.xlu0 %4575
    %v4578 = vlaneseq
    %v4579 = vshrl.u32 %v4578, 7
    %v4580 = vsub.s32 0, %v4579
    %v4581 = vrot.slane %v4576, %v4580
    %v4582 = vadd.f32 %v4562, %v4581
    %v4583 = vadd.f32 %v4571, %v4581
    %v4584 = vxor.u32 %v4582, 2147483648
    %v4585 = vxor.u32 %v4583, 2147483648
    %v4586 = vmul.f32 %v4584, 1.442695
    %v4587 = vpow.pop %v4586
    %v4588 = vmul.f32 %v4585, 1.442695
    %v4589 = vpow.pop %v4588
    %v4590 = vadd.f32 %v4587, 1.0
    %v4591 = vadd.f32 %v4589, 1.0
    %v4592 = vrcp.pop %v4590
    %v4593 = vmul.f32 1.0, %v4592
    %v4594 = vrcp.pop %v4591
    %v4595 = vmul.f32 1.0, %v4594
    %v4598 = vcombine.low %v4593, %v4595
    %v4600 = vunpack.c.l.s4 1966171168
    %v4601 = vunpack.c.0.s8 %v4600
    %v4602 = vlaneseq
    %v4603 = vshrl.u32 %v4602, 7
    %v4604 = vsub.s32 %v4601, %v4603
    %v4605 = vrot.slane %v4598, %v4604
    %v4607 = vunpack.c.l.s4 1966171168
    %v4608 = vunpack.c.0.s8 %v4607
    %v4609 = vlaneseq
    %v4610 = vshrl.u32 %v4609, 7
    %v4611 = vsub.s32 %v4608, %v4610
    %v4612 = vrot.slane %v4605, %v4611
    %v4614 = vlaneseq
    %vm4615 = vcmp.ge.s32.totalorder %v4614, 0
    %vm4616 = vcmp.lt.s32.totalorder %v4614, 256
    %vm4617 = vmand %vm4615, %vm4616
    %4618 = vst.msk [vmem:[#allocation3] sm:$0x3] %vm4617, %v4612
    // Predicated region
    $region70: #{tpu_custom_call.1} parent=1 // pred_check
      _
    $region71: #{tpu_custom_call.1} parent=1 // pred_check_branch
      %4620 = sbr.rel (0) target = $region73
    $region72: #{tpu_custom_call.1} parent=1 // pred_region
      %s4622 = ssub.s32 32, 32
      %4623 = vsyncadd [#allocation4], %s4622
      %s4625 = sshll.u32 [#allocation3], 4
      %s4626 = int_to_ptr.vmem [resolvable:$true] %s4625
      %4628 = dma.vmem_to_hbm [thread:$0]  %s4626, 32, %s17, [#allocation4]
    $region73: #{tpu_custom_call.1} parent=1 // pred_fallthru
      _
    // Predicated region
    $region74: #{tpu_custom_call.1} parent=1 // pred_check
      _
    $region75: #{tpu_custom_call.1} parent=1 // pred_check_branch
      %4630 = sbr.rel (0) target = $region77
    $region76: #{tpu_custom_call.1} parent=1 // pred_region
      %4631 = dma.done [#allocation4], 32
    $region77: #{tpu_custom_call.1} parent=1 // pred_fallthru
      _
    %4632 = vsyncpa [#allocation4], 1

</llo_original>
